<compile_context>
chip_gen: v5e
topology: v5e:2x2
jax: 0.10.0
libtpu: 0.0.40
codegen_flags: <defaults>
</compile_context>

<pallas_src>
import jax
import jax.numpy as jnp
from jax.experimental import pallas as pl
from jax.experimental.pallas import tpu as pltpu

# ----------------------------- config ---------------------------------------
B = 2          # batch
C = 3          # image channels
IMG = 16       # image spatial size (n_px)
P = 4          # patch size
NP = (IMG // P) ** 2          # num patches = 16
T = NP + 1                    # real tokens incl. cls = 17
TP = 24                       # token axis padded to a multiple of 8 sublanes
CPP = C * P * P               # flattened patch features = 48
WD = 64        # transformer width
NH = 4         # heads
DH = WD // NH  # head dim
LAYERS = 2     # transformer layers
OUT = 32       # encoder output / adapter dim (768 in the real ViT-L/14)
LN_EPS = 1e-5

# preprocessing constants (from _transform): the two chained channel-wise
# Normalizes compose into a single per-channel affine  y = (x*_STD + _CTR - _M2)/_S2.
_CTR = jnp.array([0.4914, 0.4822, 0.4465], jnp.float32)
_STD = jnp.array([0.2023, 0.1994, 0.2010], jnp.float32)
_M2 = jnp.array([0.48145466, 0.4578275, 0.40821073], jnp.float32)
_S2 = jnp.array([0.26862954, 0.26130258, 0.27577711], jnp.float32)
PRE_SCALE = _STD / _S2                 # (3,)
PRE_BIAS = (_CTR - _M2) / _S2          # (3,)
# TODO(synk): bicubic Resize + CenterCrop are identity here (input already
# n_px); a general bicubic resampler is not implemented.


# ----------------------------- in-kernel helpers -----------------------------

def _softplus(x):
    # numerically stable softplus == torch.nn.Softplus()
    return jnp.maximum(x, 0.0) + jnp.log1p(jnp.exp(-jnp.abs(x)))


def _layernorm(x, g, b):
    mu = jnp.mean(x, axis=-1, keepdims=True)
    var = jnp.mean((x - mu) ** 2, axis=-1, keepdims=True)
    return (x - mu) * jax.lax.rsqrt(var + LN_EPS) * g + b


def _mm(a_f32, w_bf16):
    # activation cast to bf16 at the matmul; weight is pre-cast bf16; f32 acc.
    return jnp.dot(a_f32.astype(jnp.bfloat16), w_bf16,
                   preferred_element_type=jnp.float32)


# ----------------------------- fused kernel ----------------------------------

def fused_encoder_kernel(
    xp_ref,        # [1, M, CPP]  f32   padded flattened patches (M = G*TP)
    base_ref,      # [M, WD]      f32   cls + pos (+ folded conv bias), tiled G times
    bias_ref,      # [M, M]       f32   additive attn mask (block-diag, pads = -1e30)
    convw_ref,     # [CPP, WD]    bf16  conv weight w/ preprocess fold
    qkvw_ref,      # [L, WD, 3WD] bf16  (Q third pre-scaled by 1/sqrt(DH))
    qkvb_ref,      # [L, 3WD]     f32
    outw_ref,      # [L, WD, WD]  bf16  attention out-proj (fused, K=WD)
    fcw_ref,       # [L, WD, 4WD] bf16
    fcb_ref,       # [L, 4WD]     f32
    pjw_ref,       # [L, 4WD, WD] bf16
    ln_ref,        # [4+6L, WD]   f32   packed LN params + attn/mlp out biases
    proj_ref,      # [WD, OUT]    bf16
    adw1_ref,      # [OUT, OUT]   bf16
    adw2_ref,      # [OUT, OUT]   bf16
    adb_ref,       # [2, OUT]     f32
    o_ref,         # [1, G, OUT]  f32
):
    g = o_ref.shape[1]                 # images stacked in this grid step (static)

    ln = ln_ref[...]                   # [16, WD], one load, static row slices
    bias = bias_ref[...]               # [M, M]

    # patch embedding (preprocess affine folded into convw/base), cls + pos, ln_pre
    x = _mm(xp_ref[0], convw_ref[...]) + base_ref[...]            # [M, WD] f32
    x = _layernorm(x, ln[0:1, :], ln[1:2, :])

    for l in range(LAYERS):
        r = 4 + 6 * l
        # --- multi-head self-attention -----------------------------------
        h = _layernorm(x, ln[r:r + 1, :], ln[r + 1:r + 2, :])
        qkv = _mm(h, qkvw_ref[l]) + qkvb_ref[l:l + 1, :]          # [M, 3WD] f32
        qkv_bf = qkv.astype(jnp.bfloat16)                          # one cast of the slab
        heads = []
        for hd in range(NH):                                       # unrolled, in-kernel
            q = qkv_bf[:, hd * DH:(hd + 1) * DH]                   # scale pre-folded
            k = qkv_bf[:, WD + hd * DH:WD + (hd + 1) * DH]
            v = qkv_bf[:, 2 * WD + hd * DH:2 * WD + (hd + 1) * DH]
            s = jax.lax.dot_general(q, k, (((1,), (1,)), ((), ())),
                                    preferred_element_type=jnp.float32)
            s = s + bias                                            # mask via add
            s = s - jnp.max(s, axis=-1, keepdims=True)
            p = jnp.exp(s)
            p = p * pl.reciprocal(jnp.sum(p, axis=-1, keepdims=True), approx=True)
            heads.append(jnp.dot(p.astype(jnp.bfloat16), v,
                                 preferred_element_type=jnp.float32))   # [M, DH]
        attn = jnp.concatenate(heads, axis=-1).astype(jnp.bfloat16)     # [M, WD]
        x = x + jnp.dot(attn, outw_ref[l],
                        preferred_element_type=jnp.float32) + ln[r + 4:r + 5, :]

        # --- MLP: fc -> QuickGELU -> proj ---------------------------------
        h = _layernorm(x, ln[r + 2:r + 3, :], ln[r + 3:r + 4, :])
        h1 = _mm(h, fcw_ref[l]) + fcb_ref[l:l + 1, :]               # [M, 4WD]
        h1 = h1 * jax.nn.sigmoid(1.702 * h1)                        # CLIP QuickGELU
        x = x + _mm(h1, pjw_ref[l]) + ln[r + 5:r + 6, :]

    # ln_post + projection + Adapter on the per-image cls rows only
    cls_rows = jnp.concatenate([x[gi * TP:gi * TP + 1, :] for gi in range(g)],
                               axis=0)                               # [G, WD]
    cls_rows = _layernorm(cls_rows, ln[2:3, :], ln[3:4, :])
    feat = _mm(cls_rows, proj_ref[...])                              # [G, OUT]
    a = _softplus(_mm(feat, adw1_ref[...]) + adb_ref[0:1, :])
    a = _softplus(_mm(a, adw2_ref[...]) + adb_ref[1:2, :])
    o_ref[0] = a


# ----------------------------- parameters ------------------------------------

def init_params(key):
    def nrm(k, shape, s=0.02):
        return s * jax.random.normal(k, shape, jnp.float32)

    keys = iter(jax.random.split(key, 64))
    p = {}
    # patch-embed conv1 (bias=False in CLIP); weight stored as [C*P*P, WD]
    p["conv_w"] = nrm(next(keys), (CPP, WD))
    p["cls"] = nrm(next(keys), (WD,))
    p["pos"] = nrm(next(keys), (T, WD))
    p["ln_pre_g"] = jnp.ones((1, WD), jnp.float32)
    p["ln_pre_b"] = jnp.zeros((1, WD), jnp.float32)
    layers = []
    for _ in range(LAYERS):
        layers.append(dict(
            ln1_g=jnp.ones((1, WD), jnp.float32),
            ln1_b=jnp.zeros((1, WD), jnp.float32),
            qkv_w=nrm(next(keys), (WD, 3 * WD)),
            qkv_b=jnp.zeros((1, 3 * WD), jnp.float32),
            out_w=nrm(next(keys), (WD, WD)),
            out_b=jnp.zeros((1, WD), jnp.float32),
            ln2_g=jnp.ones((1, WD), jnp.float32),
            ln2_b=jnp.zeros((1, WD), jnp.float32),
            fc_w=nrm(next(keys), (WD, 4 * WD)),
            fc_b=jnp.zeros((1, 4 * WD), jnp.float32),
            proj_w=nrm(next(keys), (4 * WD, WD)),
            proj_b=jnp.zeros((1, WD), jnp.float32),
        ))
    p["layers"] = layers
    p["ln_post_g"] = jnp.ones((1, WD), jnp.float32)
    p["ln_post_b"] = jnp.zeros((1, WD), jnp.float32)
    p["proj"] = nrm(next(keys), (WD, OUT))
    # adapter: Linear(OUT,OUT) -> Softplus -> Linear(OUT,OUT) -> Softplus
    p["ad_w1"] = nrm(next(keys), (OUT, OUT))
    p["ad_b1"] = jnp.zeros((1, OUT), jnp.float32)
    p["ad_w2"] = nrm(next(keys), (OUT, OUT))
    p["ad_b2"] = jnp.zeros((1, OUT), jnp.float32)
    return p


def prepare_kernel_params(p, g):
    """Offline folds / packing:
      * preprocess affine folded into conv weight + token base,
      * 1/sqrt(DH) attention scale folded into the Q third of qkv_w / qkv_b,
      * all MXU weight operands pre-cast to bf16,
      * tiny per-vector params packed into one [16, WD] slab + one [2, OUT],
      * additive block-diagonal attention mask for `g` images stacked along
        the token axis (0 for valid same-image keys, -1e30 otherwise)."""
    scale = 1.0 / (DH ** 0.5)
    bf16 = lambda a: a.astype(jnp.bfloat16)

    s_flat = jnp.repeat(PRE_SCALE, P * P)                     # [CPP]
    b_flat = jnp.repeat(PRE_BIAS, P * P)                      # [CPP]
    conv_w = s_flat[:, None] * p["conv_w"]                    # diag(scale) @ W
    conv_b = b_flat[None, :] @ p["conv_w"]                    # [1, WD]

    base1 = jnp.zeros((TP, WD), jnp.float32)
    base1 = base1.at[0].set(p["cls"] + p["pos"][0])           # cls row
    base1 = base1.at[1:T].set(p["pos"][1:] + conv_b[0])       # patch rows
    base = jnp.tile(base1, (g, 1))                            # [g*TP, WD]

    def stk(name):
        return jnp.stack([lyr[name] for lyr in p["layers"]], axis=0)

    qkv_w = stk("qkv_w")                                      # [L, WD, 3WD]
    qkv_w = qkv_w.at[:, :, :WD].multiply(scale)               # fold attn scale (Q)
    qkv_b = stk("qkv_b").reshape(LAYERS, 3 * WD)
    qkv_b = qkv_b.at[:, :WD].multiply(scale)

    # packed LN / small-bias slab: rows 0-3 = ln_pre_g/b, ln_post_g/b;
    # per layer l rows 4+6l .. : ln1_g, ln1_b, ln2_g, ln2_b, attn_out_b, mlp_proj_b
    rows = [p["ln_pre_g"][0], p["ln_pre_b"][0], p["ln_post_g"][0], p["ln_post_b"][0]]
    for lyr in p["layers"]:
        rows += [lyr["ln1_g"][0], lyr["ln1_b"][0], lyr["ln2_g"][0], lyr["ln2_b"][0],
                 lyr["out_b"][0], lyr["proj_b"][0]]
    ln_slab = jnp.stack(rows, axis=0)                         # [4+6L, WD]

    # additive attention mask: block-diagonal per stacked image + pad-key mask
    m = g * TP
    qi = jnp.arange(m)[:, None]
    kj = jnp.arange(m)[None, :]
    valid = ((qi // TP) == (kj // TP)) & ((kj % TP) < T)
    attn_bias = jnp.where(valid, 0.0, -1e30).astype(jnp.float32)   # keep f32

    ad_b = jnp.concatenate([p["ad_b1"], p["ad_b2"]], axis=0)  # [2, OUT]

    return dict(
        base=base,
        attn_bias=attn_bias,
        conv_w=bf16(conv_w),
        qkv_w=bf16(qkv_w), qkv_b=qkv_b,
        out_w=bf16(stk("out_w")),                             # [L, WD, WD]
        fc_w=bf16(stk("fc_w")), fc_b=stk("fc_b").reshape(LAYERS, 4 * WD),
        c_proj_w=bf16(stk("proj_w")),
        ln_slab=ln_slab,
        proj=bf16(p["proj"]),
        ad_w1=bf16(p["ad_w1"]), ad_w2=bf16(p["ad_w2"]), ad_b=ad_b,
    )


# ----------------------------- forward ----------------------------------------

def _tensorcores_per_chip():
    """1 TC on v5e/v6e, 2 TCs on v7x. Conservative fallback = 1 (batch-fold)."""
    try:
        kind = jax.devices()[0].device_kind.lower()
    except Exception:
        return 1
    return 2 if ("v7" in kind or "7x" in kind) else 1


def clip_img_adapter_forward(image, kp, images_per_step):
    # image: [B, 3, IMG, IMG] float32 (NCHW, like PyTorch)
    b = image.shape[0]
    g = images_per_step
    steps = b // g
    hp = IMG // P

    # patchify glue: [B,C,H,W] -> [B, NP, C*P*P] (same flatten order as conv
    # weight), pad the token axis to TP (row 0 = cls slot, rows >=T = pad),
    # then stack `g` images along the token/sublane axis per grid step.
    xp = image.reshape(b, C, hp, P, hp, P).transpose(0, 2, 4, 1, 3, 5)
    xp = xp.reshape(b, NP, CPP)
    xp_pad = jnp.zeros((b, TP, CPP), jnp.float32).at[:, 1:NP + 1, :].set(xp)
    xp_pad = xp_pad.reshape(steps, g * TP, CPP)

    names = ["base", "attn_bias", "conv_w", "qkv_w", "qkv_b", "out_w",
             "fc_w", "fc_b", "c_proj_w", "ln_slab", "proj",
             "ad_w1", "ad_w2", "ad_b"]
    weights = [kp[n] for n in names]

    def full_spec(a):
        nd = a.ndim
        return pl.BlockSpec(a.shape, lambda i, nd=nd: (0,) * nd)   # VMEM-resident

    feat = pl.pallas_call(
        fused_encoder_kernel,
        out_shape=jax.ShapeDtypeStruct((steps, g, OUT), jnp.float32),
        grid=(steps,),
        in_specs=[pl.BlockSpec((1, g * TP, CPP), lambda i: (i, 0, 0))]
        + [full_spec(a) for a in weights],
        out_specs=pl.BlockSpec((1, g, OUT), lambda i: (i, 0, 0)),
        compiler_params=pltpu.CompilerParams(
            dimension_semantics=("parallel",)),   # shards steps over v7x's 2 TCs
    )(xp_pad, *weights)
    return feat.reshape(b, OUT)


# ----------------------------- main -------------------------------------------

if __name__ == "__main__":
    key = jax.random.PRNGKey(0)
    k_img, k_par = jax.random.split(key)
    image = jax.random.normal(k_img, (B, C, IMG, IMG), dtype=jnp.float32)
    params = init_params(k_par)

    # v7x: one image per step, 2-wide parallel grid (one per TensorCore).
    # v5e/v6e: fold the whole batch into one grid step (batch on sublane axis).
    ntc = _tensorcores_per_chip()
    g = B if ntc <= 1 else max(1, B // ntc)
    while B % g:
        g -= 1

    kparams = prepare_kernel_params(params, g)

    fwd = jax.jit(clip_img_adapter_forward, static_argnums=2)
    feat = jax.block_until_ready(fwd(image, kparams, g))

    assert feat.shape == (B, OUT), feat.shape
    assert feat.dtype == jnp.float32
    assert bool(jnp.all(jnp.isfinite(feat)))
    print("KERNEL_OK")
</pallas_src>

<mosaic_0001>
module attributes {stable_mosaic.version = 11 : i64} {
  func.func @fused_encoder_kernel(%arg0: i32, %arg1: memref<1x48x48xf32, #tpu.memory_space<vmem>>, %arg2: memref<48x64xf32, #tpu.memory_space<vmem>>, %arg3: memref<48x48xf32, #tpu.memory_space<vmem>>, %arg4: memref<48x64xbf16, #tpu.memory_space<vmem>>, %arg5: memref<2x64x192xbf16, #tpu.memory_space<vmem>>, %arg6: memref<2x192xf32, #tpu.memory_space<vmem>>, %arg7: memref<2x64x64xbf16, #tpu.memory_space<vmem>>, %arg8: memref<2x64x256xbf16, #tpu.memory_space<vmem>>, %arg9: memref<2x256xf32, #tpu.memory_space<vmem>>, %arg10: memref<2x256x64xbf16, #tpu.memory_space<vmem>>, %arg11: memref<16x64xf32, #tpu.memory_space<vmem>>, %arg12: memref<64x32xbf16, #tpu.memory_space<vmem>>, %arg13: memref<32x32xbf16, #tpu.memory_space<vmem>>, %arg14: memref<32x32xbf16, #tpu.memory_space<vmem>>, %arg15: memref<2x32xf32, #tpu.memory_space<vmem>>, %arg16: memref<1x2x32xf32, #tpu.memory_space<vmem>>) attributes {dimension_semantics = [#tpu.dimension_semantics<parallel>], iteration_bounds = array<i64: 1>, scalar_prefetch = 0 : i64, scratch_operands = 0 : i64, tpu.core_type = #tpu.core_type<tc>, window_params = [{transform_indices = @transform_0, window_bounds = array<i64: 1, 48, 48>}, {pipeline_mode = #tpu.pipeline_mode<synchronous>, transform_indices = @transform_1, window_bounds = array<i64: 48, 64>}, {pipeline_mode = #tpu.pipeline_mode<synchronous>, transform_indices = @transform_2, window_bounds = array<i64: 48, 48>}, {pipeline_mode = #tpu.pipeline_mode<synchronous>, transform_indices = @transform_3, window_bounds = array<i64: 48, 64>}, {pipeline_mode = #tpu.pipeline_mode<synchronous>, transform_indices = @transform_4, window_bounds = array<i64: 2, 64, 192>}, {pipeline_mode = #tpu.pipeline_mode<synchronous>, transform_indices = @transform_5, window_bounds = array<i64: 2, 192>}, {pipeline_mode = #tpu.pipeline_mode<synchronous>, transform_indices = @transform_6, window_bounds = array<i64: 2, 64, 64>}, {pipeline_mode = #tpu.pipeline_mode<synchronous>, transform_indices = @transform_7, window_bounds = array<i64: 2, 64, 256>}, {pipeline_mode = #tpu.pipeline_mode<synchronous>, transform_indices = @transform_8, window_bounds = array<i64: 2, 256>}, {pipeline_mode = #tpu.pipeline_mode<synchronous>, transform_indices = @transform_9, window_bounds = array<i64: 2, 256, 64>}, {pipeline_mode = #tpu.pipeline_mode<synchronous>, transform_indices = @transform_10, window_bounds = array<i64: 16, 64>}, {pipeline_mode = #tpu.pipeline_mode<synchronous>, transform_indices = @transform_11, window_bounds = array<i64: 64, 32>}, {pipeline_mode = #tpu.pipeline_mode<synchronous>, transform_indices = @transform_12, window_bounds = array<i64: 32, 32>}, {pipeline_mode = #tpu.pipeline_mode<synchronous>, transform_indices = @transform_13, window_bounds = array<i64: 32, 32>}, {pipeline_mode = #tpu.pipeline_mode<synchronous>, transform_indices = @transform_14, window_bounds = array<i64: 2, 32>}, {transform_indices = @transform_15, window_bounds = array<i64: 1, 2, 32>}]} {
    %c0 = arith.constant 0 : index
    %c0_0 = arith.constant 0 : index
    %0 = vector.load %arg11[%c0, %c0_0] : memref<16x64xf32, #tpu.memory_space<vmem>>, vector<16x64xf32>
    %c0_1 = arith.constant 0 : index
    %c0_2 = arith.constant 0 : index
    %1 = vector.load %arg3[%c0_1, %c0_2] : memref<48x48xf32, #tpu.memory_space<vmem>>, vector<48x48xf32>
    %c0_3 = arith.constant 0 : index
    %c0_4 = arith.constant 0 : index
    %c0_5 = arith.constant 0 : index
    %2 = vector.load %arg1[%c0_3, %c0_4, %c0_5] : memref<1x48x48xf32, #tpu.memory_space<vmem>>, vector<1x48x48xf32>
    %3 = vector.shape_cast %2 : vector<1x48x48xf32> to vector<48x48xf32>
    %c0_6 = arith.constant 0 : index
    %c0_7 = arith.constant 0 : index
    %4 = vector.load %arg4[%c0_6, %c0_7] : memref<48x64xbf16, #tpu.memory_space<vmem>>, vector<48x64xbf16>
    %5 = arith.truncf %3 : vector<48x48xf32> to vector<48x48xbf16>
    %cst = arith.constant dense<0.000000e+00> : vector<48x64xf32>
    %6 = tpu.matmul %5, %4, %cst {dimension_numbers = #tpu.dot_dimension_numbers<[1], [0], [0], [1], [0, 0, 1, 1], [], []>} : vector<48x48xbf16>, vector<48x64xbf16>, vector<48x64xf32> -> vector<48x64xf32>
    %c0_8 = arith.constant 0 : index
    %c0_9 = arith.constant 0 : index
    %7 = vector.load %arg2[%c0_8, %c0_9] : memref<48x64xf32, #tpu.memory_space<vmem>>, vector<48x64xf32>
    %8 = arith.addf %6, %7 : vector<48x64xf32>
    %9 = vector.extract_strided_slice %0 {offsets = [0, 0], sizes = [1, 64], strides = [1, 1]} : vector<16x64xf32> to vector<1x64xf32>
    %10 = vector.extract_strided_slice %0 {offsets = [1, 0], sizes = [1, 64], strides = [1, 1]} : vector<16x64xf32> to vector<1x64xf32>
    %cst_10 = arith.constant dense<0.000000e+00> : vector<48xf32>
    %11 = vector.multi_reduction <add>, %8, %cst_10 [1] : vector<48x64xf32> to vector<48xf32>
    %12 = vector.shape_cast %11 : vector<48xf32> to vector<48x1xf32>
    %cst_11 = arith.constant 6.400000e+01 : f32
    %13 = vector.broadcast %cst_11 : f32 to vector<48x1xf32>
    %14 = arith.divf %12, %13 : vector<48x1xf32>
    %15 = vector.broadcast %14 : vector<48x1xf32> to vector<48x64xf32>
    %16 = arith.subf %8, %15 : vector<48x64xf32>
    %17 = arith.mulf %16, %16 : vector<48x64xf32>
    %cst_12 = arith.constant dense<0.000000e+00> : vector<48xf32>
    %18 = vector.multi_reduction <add>, %17, %cst_12 [1] : vector<48x64xf32> to vector<48xf32>
    %19 = vector.shape_cast %18 : vector<48xf32> to vector<48x1xf32>
    %cst_13 = arith.constant 6.400000e+01 : f32
    %20 = vector.broadcast %cst_13 : f32 to vector<48x1xf32>
    %21 = arith.divf %19, %20 : vector<48x1xf32>
    %22 = vector.broadcast %14 : vector<48x1xf32> to vector<48x64xf32>
    %23 = arith.subf %8, %22 : vector<48x64xf32>
    %cst_14 = arith.constant 9.99999974E-6 : f32
    %24 = vector.broadcast %cst_14 : f32 to vector<48x1xf32>
    %25 = arith.addf %21, %24 : vector<48x1xf32>
    %26 = math.rsqrt %25 : vector<48x1xf32>
    %27 = vector.broadcast %26 : vector<48x1xf32> to vector<48x64xf32>
    %28 = arith.mulf %23, %27 : vector<48x64xf32>
    %29 = vector.broadcast %9 : vector<1x64xf32> to vector<48x64xf32>
    %30 = arith.mulf %28, %29 : vector<48x64xf32>
    %31 = vector.broadcast %10 : vector<1x64xf32> to vector<48x64xf32>
    %32 = arith.addf %30, %31 : vector<48x64xf32>
    %33 = vector.extract_strided_slice %0 {offsets = [4, 0], sizes = [1, 64], strides = [1, 1]} : vector<16x64xf32> to vector<1x64xf32>
    %34 = vector.extract_strided_slice %0 {offsets = [5, 0], sizes = [1, 64], strides = [1, 1]} : vector<16x64xf32> to vector<1x64xf32>
    %cst_15 = arith.constant dense<0.000000e+00> : vector<48xf32>
    %35 = vector.multi_reduction <add>, %32, %cst_15 [1] : vector<48x64xf32> to vector<48xf32>
    %36 = vector.shape_cast %35 : vector<48xf32> to vector<48x1xf32>
    %cst_16 = arith.constant 6.400000e+01 : f32
    %37 = vector.broadcast %cst_16 : f32 to vector<48x1xf32>
    %38 = arith.divf %36, %37 : vector<48x1xf32>
    %39 = vector.broadcast %38 : vector<48x1xf32> to vector<48x64xf32>
    %40 = arith.subf %32, %39 : vector<48x64xf32>
    %41 = arith.mulf %40, %40 : vector<48x64xf32>
    %cst_17 = arith.constant dense<0.000000e+00> : vector<48xf32>
    %42 = vector.multi_reduction <add>, %41, %cst_17 [1] : vector<48x64xf32> to vector<48xf32>
    %43 = vector.shape_cast %42 : vector<48xf32> to vector<48x1xf32>
    %cst_18 = arith.constant 6.400000e+01 : f32
    %44 = vector.broadcast %cst_18 : f32 to vector<48x1xf32>
    %45 = arith.divf %43, %44 : vector<48x1xf32>
    %46 = vector.broadcast %38 : vector<48x1xf32> to vector<48x64xf32>
    %47 = arith.subf %32, %46 : vector<48x64xf32>
    %cst_19 = arith.constant 9.99999974E-6 : f32
    %48 = vector.broadcast %cst_19 : f32 to vector<48x1xf32>
    %49 = arith.addf %45, %48 : vector<48x1xf32>
    %50 = math.rsqrt %49 : vector<48x1xf32>
    %51 = vector.broadcast %50 : vector<48x1xf32> to vector<48x64xf32>
    %52 = arith.mulf %47, %51 : vector<48x64xf32>
    %53 = vector.broadcast %33 : vector<1x64xf32> to vector<48x64xf32>
    %54 = arith.mulf %52, %53 : vector<48x64xf32>
    %55 = vector.broadcast %34 : vector<1x64xf32> to vector<48x64xf32>
    %56 = arith.addf %54, %55 : vector<48x64xf32>
    %c0_20 = arith.constant 0 : index
    %c0_21 = arith.constant 0 : index
    %c0_22 = arith.constant 0 : index
    %57 = vector.load %arg5[%c0_20, %c0_21, %c0_22] : memref<2x64x192xbf16, #tpu.memory_space<vmem>>, vector<1x64x192xbf16>
    %58 = vector.shape_cast %57 : vector<1x64x192xbf16> to vector<64x192xbf16>
    %59 = arith.truncf %56 : vector<48x64xf32> to vector<48x64xbf16>
    %cst_23 = arith.constant dense<0.000000e+00> : vector<48x192xf32>
    %60 = tpu.matmul %59, %58, %cst_23 {dimension_numbers = #tpu.dot_dimension_numbers<[1], [0], [0], [1], [0, 0, 1, 1], [], []>} : vector<48x64xbf16>, vector<64x192xbf16>, vector<48x192xf32> -> vector<48x192xf32>
    %c0_24 = arith.constant 0 : index
    %c0_25 = arith.constant 0 : index
    %61 = vector.load %arg6[%c0_24, %c0_25] : memref<2x192xf32, #tpu.memory_space<vmem>>, vector<1x192xf32>
    %62 = vector.broadcast %61 : vector<1x192xf32> to vector<48x192xf32>
    %63 = arith.addf %60, %62 : vector<48x192xf32>
    %64 = arith.truncf %63 : vector<48x192xf32> to vector<48x192xbf16>
    %65 = vector.extract_strided_slice %64 {offsets = [0, 0], sizes = [48, 16], strides = [1, 1]} : vector<48x192xbf16> to vector<48x16xbf16>
    %66 = vector.extract_strided_slice %64 {offsets = [0, 64], sizes = [48, 16], strides = [1, 1]} : vector<48x192xbf16> to vector<48x16xbf16>
    %67 = vector.extract_strided_slice %64 {offsets = [0, 128], sizes = [48, 16], strides = [1, 1]} : vector<48x192xbf16> to vector<48x16xbf16>
    %cst_26 = arith.constant dense<0.000000e+00> : vector<48x48xf32>
    %68 = tpu.matmul %65, %66, %cst_26 {dimension_numbers = #tpu.dot_dimension_numbers<[1], [1], [0], [0], [0, 0, 1, 0], [], []>} : vector<48x16xbf16>, vector<48x16xbf16>, vector<48x48xf32> -> vector<48x48xf32>
    %69 = arith.addf %68, %1 : vector<48x48xf32>
    %cst_27 = arith.constant dense<0xFF800000> : vector<48xf32>
    %70 = vector.multi_reduction <maximumf>, %69, %cst_27 [1] : vector<48x48xf32> to vector<48xf32>
    %71 = vector.shape_cast %70 : vector<48xf32> to vector<48x1xf32>
    %72 = vector.broadcast %71 : vector<48x1xf32> to vector<48x48xf32>
    %73 = arith.subf %69, %72 : vector<48x48xf32>
    %74 = math.exp %73 : vector<48x48xf32>
    %cst_28 = arith.constant dense<0.000000e+00> : vector<48xf32>
    %75 = vector.multi_reduction <add>, %74, %cst_28 [1] : vector<48x48xf32> to vector<48xf32>
    %76 = vector.shape_cast %75 : vector<48xf32> to vector<48x1xf32>
    %77 = tpu.reciprocal %76 {approx = true} : vector<48x1xf32> -> vector<48x1xf32>
    %78 = vector.broadcast %77 : vector<48x1xf32> to vector<48x48xf32>
    %79 = arith.mulf %74, %78 : vector<48x48xf32>
    %80 = arith.truncf %79 : vector<48x48xf32> to vector<48x48xbf16>
    %cst_29 = arith.constant dense<0.000000e+00> : vector<48x16xf32>
    %81 = tpu.matmul %80, %67, %cst_29 {dimension_numbers = #tpu.dot_dimension_numbers<[1], [0], [0], [1], [0, 0, 1, 1], [], []>} : vector<48x48xbf16>, vector<48x16xbf16>, vector<48x16xf32> -> vector<48x16xf32>
    %82 = vector.extract_strided_slice %64 {offsets = [0, 16], sizes = [48, 16], strides = [1, 1]} : vector<48x192xbf16> to vector<48x16xbf16>
    %83 = vector.extract_strided_slice %64 {offsets = [0, 80], sizes = [48, 16], strides = [1, 1]} : vector<48x192xbf16> to vector<48x16xbf16>
    %84 = vector.extract_strided_slice %64 {offsets = [0, 144], sizes = [48, 16], strides = [1, 1]} : vector<48x192xbf16> to vector<48x16xbf16>
    %cst_30 = arith.constant dense<0.000000e+00> : vector<48x48xf32>
    %85 = tpu.matmul %82, %83, %cst_30 {dimension_numbers = #tpu.dot_dimension_numbers<[1], [1], [0], [0], [0, 0, 1, 0], [], []>} : vector<48x16xbf16>, vector<48x16xbf16>, vector<48x48xf32> -> vector<48x48xf32>
    %86 = arith.addf %85, %1 : vector<48x48xf32>
    %cst_31 = arith.constant dense<0xFF800000> : vector<48xf32>
    %87 = vector.multi_reduction <maximumf>, %86, %cst_31 [1] : vector<48x48xf32> to vector<48xf32>
    %88 = vector.shape_cast %87 : vector<48xf32> to vector<48x1xf32>
    %89 = vector.broadcast %88 : vector<48x1xf32> to vector<48x48xf32>
    %90 = arith.subf %86, %89 : vector<48x48xf32>
    %91 = math.exp %90 : vector<48x48xf32>
    %cst_32 = arith.constant dense<0.000000e+00> : vector<48xf32>
    %92 = vector.multi_reduction <add>, %91, %cst_32 [1] : vector<48x48xf32> to vector<48xf32>
    %93 = vector.shape_cast %92 : vector<48xf32> to vector<48x1xf32>
    %94 = tpu.reciprocal %93 {approx = true} : vector<48x1xf32> -> vector<48x1xf32>
    %95 = vector.broadcast %94 : vector<48x1xf32> to vector<48x48xf32>
    %96 = arith.mulf %91, %95 : vector<48x48xf32>
    %97 = arith.truncf %96 : vector<48x48xf32> to vector<48x48xbf16>
    %cst_33 = arith.constant dense<0.000000e+00> : vector<48x16xf32>
    %98 = tpu.matmul %97, %84, %cst_33 {dimension_numbers = #tpu.dot_dimension_numbers<[1], [0], [0], [1], [0, 0, 1, 1], [], []>} : vector<48x48xbf16>, vector<48x16xbf16>, vector<48x16xf32> -> vector<48x16xf32>
    %99 = vector.extract_strided_slice %64 {offsets = [0, 32], sizes = [48, 16], strides = [1, 1]} : vector<48x192xbf16> to vector<48x16xbf16>
    %100 = vector.extract_strided_slice %64 {offsets = [0, 96], sizes = [48, 16], strides = [1, 1]} : vector<48x192xbf16> to vector<48x16xbf16>
    %101 = vector.extract_strided_slice %64 {offsets = [0, 160], sizes = [48, 16], strides = [1, 1]} : vector<48x192xbf16> to vector<48x16xbf16>
    %cst_34 = arith.constant dense<0.000000e+00> : vector<48x48xf32>
    %102 = tpu.matmul %99, %100, %cst_34 {dimension_numbers = #tpu.dot_dimension_numbers<[1], [1], [0], [0], [0, 0, 1, 0], [], []>} : vector<48x16xbf16>, vector<48x16xbf16>, vector<48x48xf32> -> vector<48x48xf32>
    %103 = arith.addf %102, %1 : vector<48x48xf32>
    %cst_35 = arith.constant dense<0xFF800000> : vector<48xf32>
    %104 = vector.multi_reduction <maximumf>, %103, %cst_35 [1] : vector<48x48xf32> to vector<48xf32>
    %105 = vector.shape_cast %104 : vector<48xf32> to vector<48x1xf32>
    %106 = vector.broadcast %105 : vector<48x1xf32> to vector<48x48xf32>
    %107 = arith.subf %103, %106 : vector<48x48xf32>
    %108 = math.exp %107 : vector<48x48xf32>
    %cst_36 = arith.constant dense<0.000000e+00> : vector<48xf32>
    %109 = vector.multi_reduction <add>, %108, %cst_36 [1] : vector<48x48xf32> to vector<48xf32>
    %110 = vector.shape_cast %109 : vector<48xf32> to vector<48x1xf32>
    %111 = tpu.reciprocal %110 {approx = true} : vector<48x1xf32> -> vector<48x1xf32>
    %112 = vector.broadcast %111 : vector<48x1xf32> to vector<48x48xf32>
    %113 = arith.mulf %108, %112 : vector<48x48xf32>
    %114 = arith.truncf %113 : vector<48x48xf32> to vector<48x48xbf16>
    %cst_37 = arith.constant dense<0.000000e+00> : vector<48x16xf32>
    %115 = tpu.matmul %114, %101, %cst_37 {dimension_numbers = #tpu.dot_dimension_numbers<[1], [0], [0], [1], [0, 0, 1, 1], [], []>} : vector<48x48xbf16>, vector<48x16xbf16>, vector<48x16xf32> -> vector<48x16xf32>
    %116 = vector.extract_strided_slice %64 {offsets = [0, 48], sizes = [48, 16], strides = [1, 1]} : vector<48x192xbf16> to vector<48x16xbf16>
    %117 = vector.extract_strided_slice %64 {offsets = [0, 112], sizes = [48, 16], strides = [1, 1]} : vector<48x192xbf16> to vector<48x16xbf16>
    %118 = vector.extract_strided_slice %64 {offsets = [0, 176], sizes = [48, 16], strides = [1, 1]} : vector<48x192xbf16> to vector<48x16xbf16>
    %cst_38 = arith.constant dense<0.000000e+00> : vector<48x48xf32>
    %119 = tpu.matmul %116, %117, %cst_38 {dimension_numbers = #tpu.dot_dimension_numbers<[1], [1], [0], [0], [0, 0, 1, 0], [], []>} : vector<48x16xbf16>, vector<48x16xbf16>, vector<48x48xf32> -> vector<48x48xf32>
    %120 = arith.addf %119, %1 : vector<48x48xf32>
    %cst_39 = arith.constant dense<0xFF800000> : vector<48xf32>
    %121 = vector.multi_reduction <maximumf>, %120, %cst_39 [1] : vector<48x48xf32> to vector<48xf32>
    %122 = vector.shape_cast %121 : vector<48xf32> to vector<48x1xf32>
    %123 = vector.broadcast %122 : vector<48x1xf32> to vector<48x48xf32>
    %124 = arith.subf %120, %123 : vector<48x48xf32>
    %125 = math.exp %124 : vector<48x48xf32>
    %cst_40 = arith.constant dense<0.000000e+00> : vector<48xf32>
    %126 = vector.multi_reduction <add>, %125, %cst_40 [1] : vector<48x48xf32> to vector<48xf32>
    %127 = vector.shape_cast %126 : vector<48xf32> to vector<48x1xf32>
    %128 = tpu.reciprocal %127 {approx = true} : vector<48x1xf32> -> vector<48x1xf32>
    %129 = vector.broadcast %128 : vector<48x1xf32> to vector<48x48xf32>
    %130 = arith.mulf %125, %129 : vector<48x48xf32>
    %131 = arith.truncf %130 : vector<48x48xf32> to vector<48x48xbf16>
    %cst_41 = arith.constant dense<0.000000e+00> : vector<48x16xf32>
    %132 = tpu.matmul %131, %118, %cst_41 {dimension_numbers = #tpu.dot_dimension_numbers<[1], [0], [0], [1], [0, 0, 1, 1], [], []>} : vector<48x48xbf16>, vector<48x16xbf16>, vector<48x16xf32> -> vector<48x16xf32>
    %133 = tpu.concatenate %81, %98, %115, %132 in 1 : vector<48x16xf32>, vector<48x16xf32>, vector<48x16xf32>, vector<48x16xf32> -> vector<48x64xf32>
    %134 = arith.truncf %133 : vector<48x64xf32> to vector<48x64xbf16>
    %c0_42 = arith.constant 0 : index
    %c0_43 = arith.constant 0 : index
    %c0_44 = arith.constant 0 : index
    %135 = vector.load %arg7[%c0_42, %c0_43, %c0_44] : memref<2x64x64xbf16, #tpu.memory_space<vmem>>, vector<1x64x64xbf16>
    %136 = vector.shape_cast %135 : vector<1x64x64xbf16> to vector<64x64xbf16>
    %cst_45 = arith.constant dense<0.000000e+00> : vector<48x64xf32>
    %137 = tpu.matmul %134, %136, %cst_45 {dimension_numbers = #tpu.dot_dimension_numbers<[1], [0], [0], [1], [0, 0, 1, 1], [], []>} : vector<48x64xbf16>, vector<64x64xbf16>, vector<48x64xf32> -> vector<48x64xf32>
    %138 = arith.addf %32, %137 : vector<48x64xf32>
    %139 = vector.extract_strided_slice %0 {offsets = [8, 0], sizes = [1, 64], strides = [1, 1]} : vector<16x64xf32> to vector<1x64xf32>
    %140 = vector.broadcast %139 : vector<1x64xf32> to vector<48x64xf32>
    %141 = arith.addf %138, %140 : vector<48x64xf32>
    %142 = vector.extract_strided_slice %0 {offsets = [6, 0], sizes = [1, 64], strides = [1, 1]} : vector<16x64xf32> to vector<1x64xf32>
    %143 = vector.extract_strided_slice %0 {offsets = [7, 0], sizes = [1, 64], strides = [1, 1]} : vector<16x64xf32> to vector<1x64xf32>
    %cst_46 = arith.constant dense<0.000000e+00> : vector<48xf32>
    %144 = vector.multi_reduction <add>, %141, %cst_46 [1] : vector<48x64xf32> to vector<48xf32>
    %145 = vector.shape_cast %144 : vector<48xf32> to vector<48x1xf32>
    %cst_47 = arith.constant 6.400000e+01 : f32
    %146 = vector.broadcast %cst_47 : f32 to vector<48x1xf32>
    %147 = arith.divf %145, %146 : vector<48x1xf32>
    %148 = vector.broadcast %147 : vector<48x1xf32> to vector<48x64xf32>
    %149 = arith.subf %141, %148 : vector<48x64xf32>
    %150 = arith.mulf %149, %149 : vector<48x64xf32>
    %cst_48 = arith.constant dense<0.000000e+00> : vector<48xf32>
    %151 = vector.multi_reduction <add>, %150, %cst_48 [1] : vector<48x64xf32> to vector<48xf32>
    %152 = vector.shape_cast %151 : vector<48xf32> to vector<48x1xf32>
    %cst_49 = arith.constant 6.400000e+01 : f32
    %153 = vector.broadcast %cst_49 : f32 to vector<48x1xf32>
    %154 = arith.divf %152, %153 : vector<48x1xf32>
    %155 = vector.broadcast %147 : vector<48x1xf32> to vector<48x64xf32>
    %156 = arith.subf %141, %155 : vector<48x64xf32>
    %cst_50 = arith.constant 9.99999974E-6 : f32
    %157 = vector.broadcast %cst_50 : f32 to vector<48x1xf32>
    %158 = arith.addf %154, %157 : vector<48x1xf32>
    %159 = math.rsqrt %158 : vector<48x1xf32>
    %160 = vector.broadcast %159 : vector<48x1xf32> to vector<48x64xf32>
    %161 = arith.mulf %156, %160 : vector<48x64xf32>
    %162 = vector.broadcast %142 : vector<1x64xf32> to vector<48x64xf32>
    %163 = arith.mulf %161, %162 : vector<48x64xf32>
    %164 = vector.broadcast %143 : vector<1x64xf32> to vector<48x64xf32>
    %165 = arith.addf %163, %164 : vector<48x64xf32>
    %c0_51 = arith.constant 0 : index
    %c0_52 = arith.constant 0 : index
    %c0_53 = arith.constant 0 : index
    %166 = vector.load %arg8[%c0_51, %c0_52, %c0_53] : memref<2x64x256xbf16, #tpu.memory_space<vmem>>, vector<1x64x256xbf16>
    %167 = vector.shape_cast %166 : vector<1x64x256xbf16> to vector<64x256xbf16>
    %168 = arith.truncf %165 : vector<48x64xf32> to vector<48x64xbf16>
    %cst_54 = arith.constant dense<0.000000e+00> : vector<48x256xf32>
    %169 = tpu.matmul %168, %167, %cst_54 {dimension_numbers = #tpu.dot_dimension_numbers<[1], [0], [0], [1], [0, 0, 1, 1], [], []>} : vector<48x64xbf16>, vector<64x256xbf16>, vector<48x256xf32> -> vector<48x256xf32>
    %c0_55 = arith.constant 0 : index
    %c0_56 = arith.constant 0 : index
    %170 = vector.load %arg9[%c0_55, %c0_56] : memref<2x256xf32, #tpu.memory_space<vmem>>, vector<1x256xf32>
    %171 = vector.broadcast %170 : vector<1x256xf32> to vector<48x256xf32>
    %172 = arith.addf %169, %171 : vector<48x256xf32>
    %cst_57 = arith.constant 1.702000e+00 : f32
    %173 = vector.broadcast %cst_57 : f32 to vector<48x256xf32>
    %174 = arith.mulf %173, %172 : vector<48x256xf32>
    %175 = arith.negf %174 : vector<48x256xf32>
    %176 = math.exp %175 : vector<48x256xf32>
    %cst_58 = arith.constant 1.000000e+00 : f32
    %177 = vector.broadcast %cst_58 : f32 to vector<48x256xf32>
    %178 = arith.addf %177, %176 : vector<48x256xf32>
    %179 = arith.divf %177, %178 : vector<48x256xf32>
    %180 = arith.mulf %172, %179 : vector<48x256xf32>
    %c0_59 = arith.constant 0 : index
    %c0_60 = arith.constant 0 : index
    %c0_61 = arith.constant 0 : index
    %181 = vector.load %arg10[%c0_59, %c0_60, %c0_61] : memref<2x256x64xbf16, #tpu.memory_space<vmem>>, vector<1x256x64xbf16>
    %182 = vector.shape_cast %181 : vector<1x256x64xbf16> to vector<256x64xbf16>
    %183 = arith.truncf %180 : vector<48x256xf32> to vector<48x256xbf16>
    %cst_62 = arith.constant dense<0.000000e+00> : vector<48x64xf32>
    %184 = tpu.matmul %183, %182, %cst_62 {dimension_numbers = #tpu.dot_dimension_numbers<[1], [0], [0], [1], [0, 0, 1, 1], [], []>} : vector<48x256xbf16>, vector<256x64xbf16>, vector<48x64xf32> -> vector<48x64xf32>
    %185 = arith.addf %141, %184 : vector<48x64xf32>
    %186 = vector.extract_strided_slice %0 {offsets = [9, 0], sizes = [1, 64], strides = [1, 1]} : vector<16x64xf32> to vector<1x64xf32>
    %187 = vector.broadcast %186 : vector<1x64xf32> to vector<48x64xf32>
    %188 = arith.addf %185, %187 : vector<48x64xf32>
    %189 = vector.extract_strided_slice %0 {offsets = [10, 0], sizes = [1, 64], strides = [1, 1]} : vector<16x64xf32> to vector<1x64xf32>
    %190 = vector.extract_strided_slice %0 {offsets = [11, 0], sizes = [1, 64], strides = [1, 1]} : vector<16x64xf32> to vector<1x64xf32>
    %cst_63 = arith.constant dense<0.000000e+00> : vector<48xf32>
    %191 = vector.multi_reduction <add>, %188, %cst_63 [1] : vector<48x64xf32> to vector<48xf32>
    %192 = vector.shape_cast %191 : vector<48xf32> to vector<48x1xf32>
    %cst_64 = arith.constant 6.400000e+01 : f32
    %193 = vector.broadcast %cst_64 : f32 to vector<48x1xf32>
    %194 = arith.divf %192, %193 : vector<48x1xf32>
    %195 = vector.broadcast %194 : vector<48x1xf32> to vector<48x64xf32>
    %196 = arith.subf %188, %195 : vector<48x64xf32>
    %197 = arith.mulf %196, %196 : vector<48x64xf32>
    %cst_65 = arith.constant dense<0.000000e+00> : vector<48xf32>
    %198 = vector.multi_reduction <add>, %197, %cst_65 [1] : vector<48x64xf32> to vector<48xf32>
    %199 = vector.shape_cast %198 : vector<48xf32> to vector<48x1xf32>
    %cst_66 = arith.constant 6.400000e+01 : f32
    %200 = vector.broadcast %cst_66 : f32 to vector<48x1xf32>
    %201 = arith.divf %199, %200 : vector<48x1xf32>
    %202 = vector.broadcast %194 : vector<48x1xf32> to vector<48x64xf32>
    %203 = arith.subf %188, %202 : vector<48x64xf32>
    %cst_67 = arith.constant 9.99999974E-6 : f32
    %204 = vector.broadcast %cst_67 : f32 to vector<48x1xf32>
    %205 = arith.addf %201, %204 : vector<48x1xf32>
    %206 = math.rsqrt %205 : vector<48x1xf32>
    %207 = vector.broadcast %206 : vector<48x1xf32> to vector<48x64xf32>
    %208 = arith.mulf %203, %207 : vector<48x64xf32>
    %209 = vector.broadcast %189 : vector<1x64xf32> to vector<48x64xf32>
    %210 = arith.mulf %208, %209 : vector<48x64xf32>
    %211 = vector.broadcast %190 : vector<1x64xf32> to vector<48x64xf32>
    %212 = arith.addf %210, %211 : vector<48x64xf32>
    %c1 = arith.constant 1 : index
    %c0_68 = arith.constant 0 : index
    %c0_69 = arith.constant 0 : index
    %213 = vector.load %arg5[%c1, %c0_68, %c0_69] : memref<2x64x192xbf16, #tpu.memory_space<vmem>>, vector<1x64x192xbf16>
    %214 = vector.shape_cast %213 : vector<1x64x192xbf16> to vector<64x192xbf16>
    %215 = arith.truncf %212 : vector<48x64xf32> to vector<48x64xbf16>
    %cst_70 = arith.constant dense<0.000000e+00> : vector<48x192xf32>
    %216 = tpu.matmul %215, %214, %cst_70 {dimension_numbers = #tpu.dot_dimension_numbers<[1], [0], [0], [1], [0, 0, 1, 1], [], []>} : vector<48x64xbf16>, vector<64x192xbf16>, vector<48x192xf32> -> vector<48x192xf32>
    %c1_71 = arith.constant 1 : index
    %c0_72 = arith.constant 0 : index
    %217 = vector.load %arg6[%c1_71, %c0_72] : memref<2x192xf32, #tpu.memory_space<vmem>>, vector<1x192xf32>
    %218 = vector.broadcast %217 : vector<1x192xf32> to vector<48x192xf32>
    %219 = arith.addf %216, %218 : vector<48x192xf32>
    %220 = arith.truncf %219 : vector<48x192xf32> to vector<48x192xbf16>
    %221 = vector.extract_strided_slice %220 {offsets = [0, 0], sizes = [48, 16], strides = [1, 1]} : vector<48x192xbf16> to vector<48x16xbf16>
    %222 = vector.extract_strided_slice %220 {offsets = [0, 64], sizes = [48, 16], strides = [1, 1]} : vector<48x192xbf16> to vector<48x16xbf16>
    %223 = vector.extract_strided_slice %220 {offsets = [0, 128], sizes = [48, 16], strides = [1, 1]} : vector<48x192xbf16> to vector<48x16xbf16>
    %cst_73 = arith.constant dense<0.000000e+00> : vector<48x48xf32>
    %224 = tpu.matmul %221, %222, %cst_73 {dimension_numbers = #tpu.dot_dimension_numbers<[1], [1], [0], [0], [0, 0, 1, 0], [], []>} : vector<48x16xbf16>, vector<48x16xbf16>, vector<48x48xf32> -> vector<48x48xf32>
    %225 = arith.addf %224, %1 : vector<48x48xf32>
    %cst_74 = arith.constant dense<0xFF800000> : vector<48xf32>
    %226 = vector.multi_reduction <maximumf>, %225, %cst_74 [1] : vector<48x48xf32> to vector<48xf32>
    %227 = vector.shape_cast %226 : vector<48xf32> to vector<48x1xf32>
    %228 = vector.broadcast %227 : vector<48x1xf32> to vector<48x48xf32>
    %229 = arith.subf %225, %228 : vector<48x48xf32>
    %230 = math.exp %229 : vector<48x48xf32>
    %cst_75 = arith.constant dense<0.000000e+00> : vector<48xf32>
    %231 = vector.multi_reduction <add>, %230, %cst_75 [1] : vector<48x48xf32> to vector<48xf32>
    %232 = vector.shape_cast %231 : vector<48xf32> to vector<48x1xf32>
    %233 = tpu.reciprocal %232 {approx = true} : vector<48x1xf32> -> vector<48x1xf32>
    %234 = vector.broadcast %233 : vector<48x1xf32> to vector<48x48xf32>
    %235 = arith.mulf %230, %234 : vector<48x48xf32>
    %236 = arith.truncf %235 : vector<48x48xf32> to vector<48x48xbf16>
    %cst_76 = arith.constant dense<0.000000e+00> : vector<48x16xf32>
    %237 = tpu.matmul %236, %223, %cst_76 {dimension_numbers = #tpu.dot_dimension_numbers<[1], [0], [0], [1], [0, 0, 1, 1], [], []>} : vector<48x48xbf16>, vector<48x16xbf16>, vector<48x16xf32> -> vector<48x16xf32>
    %238 = vector.extract_strided_slice %220 {offsets = [0, 16], sizes = [48, 16], strides = [1, 1]} : vector<48x192xbf16> to vector<48x16xbf16>
    %239 = vector.extract_strided_slice %220 {offsets = [0, 80], sizes = [48, 16], strides = [1, 1]} : vector<48x192xbf16> to vector<48x16xbf16>
    %240 = vector.extract_strided_slice %220 {offsets = [0, 144], sizes = [48, 16], strides = [1, 1]} : vector<48x192xbf16> to vector<48x16xbf16>
    %cst_77 = arith.constant dense<0.000000e+00> : vector<48x48xf32>
    %241 = tpu.matmul %238, %239, %cst_77 {dimension_numbers = #tpu.dot_dimension_numbers<[1], [1], [0], [0], [0, 0, 1, 0], [], []>} : vector<48x16xbf16>, vector<48x16xbf16>, vector<48x48xf32> -> vector<48x48xf32>
    %242 = arith.addf %241, %1 : vector<48x48xf32>
    %cst_78 = arith.constant dense<0xFF800000> : vector<48xf32>
    %243 = vector.multi_reduction <maximumf>, %242, %cst_78 [1] : vector<48x48xf32> to vector<48xf32>
    %244 = vector.shape_cast %243 : vector<48xf32> to vector<48x1xf32>
    %245 = vector.broadcast %244 : vector<48x1xf32> to vector<48x48xf32>
    %246 = arith.subf %242, %245 : vector<48x48xf32>
    %247 = math.exp %246 : vector<48x48xf32>
    %cst_79 = arith.constant dense<0.000000e+00> : vector<48xf32>
    %248 = vector.multi_reduction <add>, %247, %cst_79 [1] : vector<48x48xf32> to vector<48xf32>
    %249 = vector.shape_cast %248 : vector<48xf32> to vector<48x1xf32>
    %250 = tpu.reciprocal %249 {approx = true} : vector<48x1xf32> -> vector<48x1xf32>
    %251 = vector.broadcast %250 : vector<48x1xf32> to vector<48x48xf32>
    %252 = arith.mulf %247, %251 : vector<48x48xf32>
    %253 = arith.truncf %252 : vector<48x48xf32> to vector<48x48xbf16>
    %cst_80 = arith.constant dense<0.000000e+00> : vector<48x16xf32>
    %254 = tpu.matmul %253, %240, %cst_80 {dimension_numbers = #tpu.dot_dimension_numbers<[1], [0], [0], [1], [0, 0, 1, 1], [], []>} : vector<48x48xbf16>, vector<48x16xbf16>, vector<48x16xf32> -> vector<48x16xf32>
    %255 = vector.extract_strided_slice %220 {offsets = [0, 32], sizes = [48, 16], strides = [1, 1]} : vector<48x192xbf16> to vector<48x16xbf16>
    %256 = vector.extract_strided_slice %220 {offsets = [0, 96], sizes = [48, 16], strides = [1, 1]} : vector<48x192xbf16> to vector<48x16xbf16>
    %257 = vector.extract_strided_slice %220 {offsets = [0, 160], sizes = [48, 16], strides = [1, 1]} : vector<48x192xbf16> to vector<48x16xbf16>
    %cst_81 = arith.constant dense<0.000000e+00> : vector<48x48xf32>
    %258 = tpu.matmul %255, %256, %cst_81 {dimension_numbers = #tpu.dot_dimension_numbers<[1], [1], [0], [0], [0, 0, 1, 0], [], []>} : vector<48x16xbf16>, vector<48x16xbf16>, vector<48x48xf32> -> vector<48x48xf32>
    %259 = arith.addf %258, %1 : vector<48x48xf32>
    %cst_82 = arith.constant dense<0xFF800000> : vector<48xf32>
    %260 = vector.multi_reduction <maximumf>, %259, %cst_82 [1] : vector<48x48xf32> to vector<48xf32>
    %261 = vector.shape_cast %260 : vector<48xf32> to vector<48x1xf32>
    %262 = vector.broadcast %261 : vector<48x1xf32> to vector<48x48xf32>
    %263 = arith.subf %259, %262 : vector<48x48xf32>
    %264 = math.exp %263 : vector<48x48xf32>
    %cst_83 = arith.constant dense<0.000000e+00> : vector<48xf32>
    %265 = vector.multi_reduction <add>, %264, %cst_83 [1] : vector<48x48xf32> to vector<48xf32>
    %266 = vector.shape_cast %265 : vector<48xf32> to vector<48x1xf32>
    %267 = tpu.reciprocal %266 {approx = true} : vector<48x1xf32> -> vector<48x1xf32>
    %268 = vector.broadcast %267 : vector<48x1xf32> to vector<48x48xf32>
    %269 = arith.mulf %264, %268 : vector<48x48xf32>
    %270 = arith.truncf %269 : vector<48x48xf32> to vector<48x48xbf16>
    %cst_84 = arith.constant dense<0.000000e+00> : vector<48x16xf32>
    %271 = tpu.matmul %270, %257, %cst_84 {dimension_numbers = #tpu.dot_dimension_numbers<[1], [0], [0], [1], [0, 0, 1, 1], [], []>} : vector<48x48xbf16>, vector<48x16xbf16>, vector<48x16xf32> -> vector<48x16xf32>
    %272 = vector.extract_strided_slice %220 {offsets = [0, 48], sizes = [48, 16], strides = [1, 1]} : vector<48x192xbf16> to vector<48x16xbf16>
    %273 = vector.extract_strided_slice %220 {offsets = [0, 112], sizes = [48, 16], strides = [1, 1]} : vector<48x192xbf16> to vector<48x16xbf16>
    %274 = vector.extract_strided_slice %220 {offsets = [0, 176], sizes = [48, 16], strides = [1, 1]} : vector<48x192xbf16> to vector<48x16xbf16>
    %cst_85 = arith.constant dense<0.000000e+00> : vector<48x48xf32>
    %275 = tpu.matmul %272, %273, %cst_85 {dimension_numbers = #tpu.dot_dimension_numbers<[1], [1], [0], [0], [0, 0, 1, 0], [], []>} : vector<48x16xbf16>, vector<48x16xbf16>, vector<48x48xf32> -> vector<48x48xf32>
    %276 = arith.addf %275, %1 : vector<48x48xf32>
    %cst_86 = arith.constant dense<0xFF800000> : vector<48xf32>
    %277 = vector.multi_reduction <maximumf>, %276, %cst_86 [1] : vector<48x48xf32> to vector<48xf32>
    %278 = vector.shape_cast %277 : vector<48xf32> to vector<48x1xf32>
    %279 = vector.broadcast %278 : vector<48x1xf32> to vector<48x48xf32>
    %280 = arith.subf %276, %279 : vector<48x48xf32>
    %281 = math.exp %280 : vector<48x48xf32>
    %cst_87 = arith.constant dense<0.000000e+00> : vector<48xf32>
    %282 = vector.multi_reduction <add>, %281, %cst_87 [1] : vector<48x48xf32> to vector<48xf32>
    %283 = vector.shape_cast %282 : vector<48xf32> to vector<48x1xf32>
    %284 = tpu.reciprocal %283 {approx = true} : vector<48x1xf32> -> vector<48x1xf32>
    %285 = vector.broadcast %284 : vector<48x1xf32> to vector<48x48xf32>
    %286 = arith.mulf %281, %285 : vector<48x48xf32>
    %287 = arith.truncf %286 : vector<48x48xf32> to vector<48x48xbf16>
    %cst_88 = arith.constant dense<0.000000e+00> : vector<48x16xf32>
    %288 = tpu.matmul %287, %274, %cst_88 {dimension_numbers = #tpu.dot_dimension_numbers<[1], [0], [0], [1], [0, 0, 1, 1], [], []>} : vector<48x48xbf16>, vector<48x16xbf16>, vector<48x16xf32> -> vector<48x16xf32>
    %289 = tpu.concatenate %237, %254, %271, %288 in 1 : vector<48x16xf32>, vector<48x16xf32>, vector<48x16xf32>, vector<48x16xf32> -> vector<48x64xf32>
    %290 = arith.truncf %289 : vector<48x64xf32> to vector<48x64xbf16>
    %c1_89 = arith.constant 1 : index
    %c0_90 = arith.constant 0 : index
    %c0_91 = arith.constant 0 : index
    %291 = vector.load %arg7[%c1_89, %c0_90, %c0_91] : memref<2x64x64xbf16, #tpu.memory_space<vmem>>, vector<1x64x64xbf16>
    %292 = vector.shape_cast %291 : vector<1x64x64xbf16> to vector<64x64xbf16>
    %cst_92 = arith.constant dense<0.000000e+00> : vector<48x64xf32>
    %293 = tpu.matmul %290, %292, %cst_92 {dimension_numbers = #tpu.dot_dimension_numbers<[1], [0], [0], [1], [0, 0, 1, 1], [], []>} : vector<48x64xbf16>, vector<64x64xbf16>, vector<48x64xf32> -> vector<48x64xf32>
    %294 = arith.addf %188, %293 : vector<48x64xf32>
    %295 = vector.extract_strided_slice %0 {offsets = [14, 0], sizes = [1, 64], strides = [1, 1]} : vector<16x64xf32> to vector<1x64xf32>
    %296 = vector.broadcast %295 : vector<1x64xf32> to vector<48x64xf32>
    %297 = arith.addf %294, %296 : vector<48x64xf32>
    %298 = vector.extract_strided_slice %0 {offsets = [12, 0], sizes = [1, 64], strides = [1, 1]} : vector<16x64xf32> to vector<1x64xf32>
    %299 = vector.extract_strided_slice %0 {offsets = [13, 0], sizes = [1, 64], strides = [1, 1]} : vector<16x64xf32> to vector<1x64xf32>
    %cst_93 = arith.constant dense<0.000000e+00> : vector<48xf32>
    %300 = vector.multi_reduction <add>, %297, %cst_93 [1] : vector<48x64xf32> to vector<48xf32>
    %301 = vector.shape_cast %300 : vector<48xf32> to vector<48x1xf32>
    %cst_94 = arith.constant 6.400000e+01 : f32
    %302 = vector.broadcast %cst_94 : f32 to vector<48x1xf32>
    %303 = arith.divf %301, %302 : vector<48x1xf32>
    %304 = vector.broadcast %303 : vector<48x1xf32> to vector<48x64xf32>
    %305 = arith.subf %297, %304 : vector<48x64xf32>
    %306 = arith.mulf %305, %305 : vector<48x64xf32>
    %cst_95 = arith.constant dense<0.000000e+00> : vector<48xf32>
    %307 = vector.multi_reduction <add>, %306, %cst_95 [1] : vector<48x64xf32> to vector<48xf32>
    %308 = vector.shape_cast %307 : vector<48xf32> to vector<48x1xf32>
    %cst_96 = arith.constant 6.400000e+01 : f32
    %309 = vector.broadcast %cst_96 : f32 to vector<48x1xf32>
    %310 = arith.divf %308, %309 : vector<48x1xf32>
    %311 = vector.broadcast %303 : vector<48x1xf32> to vector<48x64xf32>
    %312 = arith.subf %297, %311 : vector<48x64xf32>
    %cst_97 = arith.constant 9.99999974E-6 : f32
    %313 = vector.broadcast %cst_97 : f32 to vector<48x1xf32>
    %314 = arith.addf %310, %313 : vector<48x1xf32>
    %315 = math.rsqrt %314 : vector<48x1xf32>
    %316 = vector.broadcast %315 : vector<48x1xf32> to vector<48x64xf32>
    %317 = arith.mulf %312, %316 : vector<48x64xf32>
    %318 = vector.broadcast %298 : vector<1x64xf32> to vector<48x64xf32>
    %319 = arith.mulf %317, %318 : vector<48x64xf32>
    %320 = vector.broadcast %299 : vector<1x64xf32> to vector<48x64xf32>
    %321 = arith.addf %319, %320 : vector<48x64xf32>
    %c1_98 = arith.constant 1 : index
    %c0_99 = arith.constant 0 : index
    %c0_100 = arith.constant 0 : index
    %322 = vector.load %arg8[%c1_98, %c0_99, %c0_100] : memref<2x64x256xbf16, #tpu.memory_space<vmem>>, vector<1x64x256xbf16>
    %323 = vector.shape_cast %322 : vector<1x64x256xbf16> to vector<64x256xbf16>
    %324 = arith.truncf %321 : vector<48x64xf32> to vector<48x64xbf16>
    %cst_101 = arith.constant dense<0.000000e+00> : vector<48x256xf32>
    %325 = tpu.matmul %324, %323, %cst_101 {dimension_numbers = #tpu.dot_dimension_numbers<[1], [0], [0], [1], [0, 0, 1, 1], [], []>} : vector<48x64xbf16>, vector<64x256xbf16>, vector<48x256xf32> -> vector<48x256xf32>
    %c1_102 = arith.constant 1 : index
    %c0_103 = arith.constant 0 : index
    %326 = vector.load %arg9[%c1_102, %c0_103] : memref<2x256xf32, #tpu.memory_space<vmem>>, vector<1x256xf32>
    %327 = vector.broadcast %326 : vector<1x256xf32> to vector<48x256xf32>
    %328 = arith.addf %325, %327 : vector<48x256xf32>
    %cst_104 = arith.constant 1.702000e+00 : f32
    %329 = vector.broadcast %cst_104 : f32 to vector<48x256xf32>
    %330 = arith.mulf %329, %328 : vector<48x256xf32>
    %331 = arith.negf %330 : vector<48x256xf32>
    %332 = math.exp %331 : vector<48x256xf32>
    %cst_105 = arith.constant 1.000000e+00 : f32
    %333 = vector.broadcast %cst_105 : f32 to vector<48x256xf32>
    %334 = arith.addf %333, %332 : vector<48x256xf32>
    %335 = arith.divf %333, %334 : vector<48x256xf32>
    %336 = arith.mulf %328, %335 : vector<48x256xf32>
    %c1_106 = arith.constant 1 : index
    %c0_107 = arith.constant 0 : index
    %c0_108 = arith.constant 0 : index
    %337 = vector.load %arg10[%c1_106, %c0_107, %c0_108] : memref<2x256x64xbf16, #tpu.memory_space<vmem>>, vector<1x256x64xbf16>
    %338 = vector.shape_cast %337 : vector<1x256x64xbf16> to vector<256x64xbf16>
    %339 = arith.truncf %336 : vector<48x256xf32> to vector<48x256xbf16>
    %cst_109 = arith.constant dense<0.000000e+00> : vector<48x64xf32>
    %340 = tpu.matmul %339, %338, %cst_109 {dimension_numbers = #tpu.dot_dimension_numbers<[1], [0], [0], [1], [0, 0, 1, 1], [], []>} : vector<48x256xbf16>, vector<256x64xbf16>, vector<48x64xf32> -> vector<48x64xf32>
    %341 = arith.addf %297, %340 : vector<48x64xf32>
    %342 = vector.extract_strided_slice %0 {offsets = [15, 0], sizes = [1, 64], strides = [1, 1]} : vector<16x64xf32> to vector<1x64xf32>
    %343 = vector.broadcast %342 : vector<1x64xf32> to vector<48x64xf32>
    %344 = arith.addf %341, %343 : vector<48x64xf32>
    %345 = vector.extract_strided_slice %344 {offsets = [0, 0], sizes = [1, 64], strides = [1, 1]} : vector<48x64xf32> to vector<1x64xf32>
    %346 = vector.extract_strided_slice %344 {offsets = [24, 0], sizes = [1, 64], strides = [1, 1]} : vector<48x64xf32> to vector<1x64xf32>
    %347 = tpu.concatenate %345, %346 in 0 : vector<1x64xf32>, vector<1x64xf32> -> vector<2x64xf32>
    %348 = vector.extract_strided_slice %0 {offsets = [2, 0], sizes = [1, 64], strides = [1, 1]} : vector<16x64xf32> to vector<1x64xf32>
    %349 = vector.extract_strided_slice %0 {offsets = [3, 0], sizes = [1, 64], strides = [1, 1]} : vector<16x64xf32> to vector<1x64xf32>
    %cst_110 = arith.constant dense<0.000000e+00> : vector<2xf32>
    %350 = vector.multi_reduction <add>, %347, %cst_110 [1] : vector<2x64xf32> to vector<2xf32>
    %351 = vector.shape_cast %350 : vector<2xf32> to vector<2x1xf32>
    %cst_111 = arith.constant 6.400000e+01 : f32
    %352 = vector.broadcast %cst_111 : f32 to vector<2x1xf32>
    %353 = arith.divf %351, %352 : vector<2x1xf32>
    %354 = vector.broadcast %353 : vector<2x1xf32> to vector<2x64xf32>
    %355 = arith.subf %347, %354 : vector<2x64xf32>
    %356 = arith.mulf %355, %355 : vector<2x64xf32>
    %cst_112 = arith.constant dense<0.000000e+00> : vector<2xf32>
    %357 = vector.multi_reduction <add>, %356, %cst_112 [1] : vector<2x64xf32> to vector<2xf32>
    %358 = vector.shape_cast %357 : vector<2xf32> to vector<2x1xf32>
    %cst_113 = arith.constant 6.400000e+01 : f32
    %359 = vector.broadcast %cst_113 : f32 to vector<2x1xf32>
    %360 = arith.divf %358, %359 : vector<2x1xf32>
    %361 = vector.broadcast %353 : vector<2x1xf32> to vector<2x64xf32>
    %362 = arith.subf %347, %361 : vector<2x64xf32>
    %cst_114 = arith.constant 9.99999974E-6 : f32
    %363 = vector.broadcast %cst_114 : f32 to vector<2x1xf32>
    %364 = arith.addf %360, %363 : vector<2x1xf32>
    %365 = math.rsqrt %364 : vector<2x1xf32>
    %366 = vector.broadcast %365 : vector<2x1xf32> to vector<2x64xf32>
    %367 = arith.mulf %362, %366 : vector<2x64xf32>
    %368 = vector.broadcast %348 : vector<1x64xf32> to vector<2x64xf32>
    %369 = arith.mulf %367, %368 : vector<2x64xf32>
    %370 = vector.broadcast %349 : vector<1x64xf32> to vector<2x64xf32>
    %371 = arith.addf %369, %370 : vector<2x64xf32>
    %c0_115 = arith.constant 0 : index
    %c0_116 = arith.constant 0 : index
    %372 = vector.load %arg12[%c0_115, %c0_116] : memref<64x32xbf16, #tpu.memory_space<vmem>>, vector<64x32xbf16>
    %373 = arith.truncf %371 : vector<2x64xf32> to vector<2x64xbf16>
    %cst_117 = arith.constant dense<0.000000e+00> : vector<2x32xf32>
    %374 = tpu.matmul %373, %372, %cst_117 {dimension_numbers = #tpu.dot_dimension_numbers<[1], [0], [0], [1], [0, 0, 1, 1], [], []>} : vector<2x64xbf16>, vector<64x32xbf16>, vector<2x32xf32> -> vector<2x32xf32>
    %c0_118 = arith.constant 0 : index
    %c0_119 = arith.constant 0 : index
    %375 = vector.load %arg13[%c0_118, %c0_119] : memref<32x32xbf16, #tpu.memory_space<vmem>>, vector<32x32xbf16>
    %376 = arith.truncf %374 : vector<2x32xf32> to vector<2x32xbf16>
    %cst_120 = arith.constant dense<0.000000e+00> : vector<2x32xf32>
    %377 = tpu.matmul %376, %375, %cst_120 {dimension_numbers = #tpu.dot_dimension_numbers<[1], [0], [0], [1], [0, 0, 1, 1], [], []>} : vector<2x32xbf16>, vector<32x32xbf16>, vector<2x32xf32> -> vector<2x32xf32>
    %c0_121 = arith.constant 0 : index
    %c0_122 = arith.constant 0 : index
    %378 = vector.load %arg15[%c0_121, %c0_122] : memref<2x32xf32, #tpu.memory_space<vmem>>, vector<1x32xf32>
    %379 = vector.broadcast %378 : vector<1x32xf32> to vector<2x32xf32>
    %380 = arith.addf %377, %379 : vector<2x32xf32>
    %cst_123 = arith.constant 0.000000e+00 : f32
    %381 = vector.broadcast %cst_123 : f32 to vector<2x32xf32>
    %382 = arith.maximumf %380, %381 : vector<2x32xf32>
    %383 = math.absf %380 : vector<2x32xf32>
    %cst_124 = arith.constant 0.000000e+00 : f32
    %384 = vector.broadcast %cst_124 : f32 to vector<2x32xf32>
    %385 = arith.subf %384, %383 : vector<2x32xf32>
    %386 = math.exp %385 : vector<2x32xf32>
    %387 = math.log1p %386 : vector<2x32xf32>
    %388 = arith.addf %382, %387 : vector<2x32xf32>
    %c0_125 = arith.constant 0 : index
    %c0_126 = arith.constant 0 : index
    %389 = vector.load %arg14[%c0_125, %c0_126] : memref<32x32xbf16, #tpu.memory_space<vmem>>, vector<32x32xbf16>
    %390 = arith.truncf %388 : vector<2x32xf32> to vector<2x32xbf16>
    %cst_127 = arith.constant dense<0.000000e+00> : vector<2x32xf32>
    %391 = tpu.matmul %390, %389, %cst_127 {dimension_numbers = #tpu.dot_dimension_numbers<[1], [0], [0], [1], [0, 0, 1, 1], [], []>} : vector<2x32xbf16>, vector<32x32xbf16>, vector<2x32xf32> -> vector<2x32xf32>
    %c1_128 = arith.constant 1 : index
    %c0_129 = arith.constant 0 : index
    %392 = vector.load %arg15[%c1_128, %c0_129] : memref<2x32xf32, #tpu.memory_space<vmem>>, vector<1x32xf32>
    %393 = vector.broadcast %392 : vector<1x32xf32> to vector<2x32xf32>
    %394 = arith.addf %391, %393 : vector<2x32xf32>
    %cst_130 = arith.constant 0.000000e+00 : f32
    %395 = vector.broadcast %cst_130 : f32 to vector<2x32xf32>
    %396 = arith.maximumf %394, %395 : vector<2x32xf32>
    %397 = math.absf %394 : vector<2x32xf32>
    %cst_131 = arith.constant 0.000000e+00 : f32
    %398 = vector.broadcast %cst_131 : f32 to vector<2x32xf32>
    %399 = arith.subf %398, %397 : vector<2x32xf32>
    %400 = math.exp %399 : vector<2x32xf32>
    %401 = math.log1p %400 : vector<2x32xf32>
    %402 = arith.addf %396, %401 : vector<2x32xf32>
    %c0_132 = arith.constant 0 : index
    %c0_133 = arith.constant 0 : index
    %c0_134 = arith.constant 0 : index
    %403 = vector.load %arg16[%c0_132, %c0_133, %c0_134] : memref<1x2x32xf32, #tpu.memory_space<vmem>>, vector<1x2x32xf32>
    %404 = vector.shape_cast %403 : vector<1x2x32xf32> to vector<2x32xf32>
    %405 = vector.shape_cast %402 : vector<2x32xf32> to vector<1x2x32xf32>
    tpu.vector_store %arg16[%c0_132, %c0_133, %c0_134], %405 {strides = array<i32>} : memref<1x2x32xf32, #tpu.memory_space<vmem>>, vector<1x2x32xf32>,
    return
  }
  func.func @transform_0(%arg0: i32) -> (i32, i32, i32) {
    %c0_i32 = arith.constant 0 : i32
    %c0_i32_0 = arith.constant 0 : i32
    %c0_i32_1 = arith.constant 0 : i32
    return %arg0, %c0_i32, %c0_i32_0 : i32, i32, i32
  }
  func.func @transform_1(%arg0: i32) -> (i32, i32) {
    %c0_i32 = arith.constant 0 : i32
    %c0_i32_0 = arith.constant 0 : i32
    %c0_i32_1 = arith.constant 0 : i32
    return %c0_i32, %c0_i32_0 : i32, i32
  }
  func.func @transform_2(%arg0: i32) -> (i32, i32) {
    %c0_i32 = arith.constant 0 : i32
    %c0_i32_0 = arith.constant 0 : i32
    %c0_i32_1 = arith.constant 0 : i32
    return %c0_i32, %c0_i32_0 : i32, i32
  }
  func.func @transform_3(%arg0: i32) -> (i32, i32) {
    %c0_i32 = arith.constant 0 : i32
    %c0_i32_0 = arith.constant 0 : i32
    %c0_i32_1 = arith.constant 0 : i32
    return %c0_i32, %c0_i32_0 : i32, i32
  }
  func.func @transform_4(%arg0: i32) -> (i32, i32, i32) {
    %c0_i32 = arith.constant 0 : i32
    %c0_i32_0 = arith.constant 0 : i32
    %c0_i32_1 = arith.constant 0 : i32
    %c0_i32_2 = arith.constant 0 : i32
    return %c0_i32, %c0_i32_0, %c0_i32_1 : i32, i32, i32
  }
  func.func @transform_5(%arg0: i32) -> (i32, i32) {
    %c0_i32 = arith.constant 0 : i32
    %c0_i32_0 = arith.constant 0 : i32
    %c0_i32_1 = arith.constant 0 : i32
    return %c0_i32, %c0_i32_0 : i32, i32
  }
  func.func @transform_6(%arg0: i32) -> (i32, i32, i32) {
    %c0_i32 = arith.constant 0 : i32
    %c0_i32_0 = arith.constant 0 : i32
    %c0_i32_1 = arith.constant 0 : i32
    %c0_i32_2 = arith.constant 0 : i32
    return %c0_i32, %c0_i32_0, %c0_i32_1 : i32, i32, i32
  }
  func.func @transform_7(%arg0: i32) -> (i32, i32, i32) {
    %c0_i32 = arith.constant 0 : i32
    %c0_i32_0 = arith.constant 0 : i32
    %c0_i32_1 = arith.constant 0 : i32
    %c0_i32_2 = arith.constant 0 : i32
    return %c0_i32, %c0_i32_0, %c0_i32_1 : i32, i32, i32
  }
  func.func @transform_8(%arg0: i32) -> (i32, i32) {
    %c0_i32 = arith.constant 0 : i32
    %c0_i32_0 = arith.constant 0 : i32
    %c0_i32_1 = arith.constant 0 : i32
    return %c0_i32, %c0_i32_0 : i32, i32
  }
  func.func @transform_9(%arg0: i32) -> (i32, i32, i32) {
    %c0_i32 = arith.constant 0 : i32
    %c0_i32_0 = arith.constant 0 : i32
    %c0_i32_1 = arith.constant 0 : i32
    %c0_i32_2 = arith.constant 0 : i32
    return %c0_i32, %c0_i32_0, %c0_i32_1 : i32, i32, i32
  }
  func.func @transform_10(%arg0: i32) -> (i32, i32) {
    %c0_i32 = arith.constant 0 : i32
    %c0_i32_0 = arith.constant 0 : i32
    %c0_i32_1 = arith.constant 0 : i32
    return %c0_i32, %c0_i32_0 : i32, i32
  }
  func.func @transform_11(%arg0: i32) -> (i32, i32) {
    %c0_i32 = arith.constant 0 : i32
    %c0_i32_0 = arith.constant 0 : i32
    %c0_i32_1 = arith.constant 0 : i32
    return %c0_i32, %c0_i32_0 : i32, i32
  }
  func.func @transform_12(%arg0: i32) -> (i32, i32) {
    %c0_i32 = arith.constant 0 : i32
    %c0_i32_0 = arith.constant 0 : i32
    %c0_i32_1 = arith.constant 0 : i32
    return %c0_i32, %c0_i32_0 : i32, i32
  }
  func.func @transform_13(%arg0: i32) -> (i32, i32) {
    %c0_i32 = arith.constant 0 : i32
    %c0_i32_0 = arith.constant 0 : i32
    %c0_i32_1 = arith.constant 0 : i32
    return %c0_i32, %c0_i32_0 : i32, i32
  }
  func.func @transform_14(%arg0: i32) -> (i32, i32) {
    %c0_i32 = arith.constant 0 : i32
    %c0_i32_0 = arith.constant 0 : i32
    %c0_i32_1 = arith.constant 0 : i32
    return %c0_i32, %c0_i32_0 : i32, i32
  }
  func.func @transform_15(%arg0: i32) -> (i32, i32, i32) {
    %c0_i32 = arith.constant 0 : i32
    %c0_i32_0 = arith.constant 0 : i32
    %c0_i32_1 = arith.constant 0 : i32
    return %arg0, %c0_i32, %c0_i32_0 : i32, i32, i32
  }
}

</mosaic_0001>

<llo_original>
// kernel: clip_img_adapter_forward.1
$region0: #{clip_img_adapter_forward.1}
  #allocation0 [shape = 'u32[]', space=smem, size = 0x4, offset = 0x4, fixed_abs, tag = 'smem constant byte address 0x4 - core index']
  #allocation1 [shape = 'u32[72,128]{1,0:T(1,128)}', space=vmem, size = 0x9000, scoped, tag = 'internal scratch']
  %s0 = inlined_call_operand.vmem [shape: f32[1,48,48], index: 0, kind: input, shape index: {}]
  %s1 = inlined_call_operand.vmem [shape: f32[48,64], index: 1, kind: input, shape index: {}]
  %s2 = inlined_call_operand.vmem [shape: f32[48,48], index: 2, kind: input, shape index: {}]
  %s3 = inlined_call_operand.vmem [shape: bf16[48,64], index: 3, kind: input, shape index: {}]
  %s4 = inlined_call_operand.vmem [shape: bf16[2,64,192], index: 4, kind: input, shape index: {}]
  %s5 = inlined_call_operand.vmem [shape: f32[2,192], index: 5, kind: input, shape index: {}]
  %s6 = inlined_call_operand.vmem [shape: bf16[2,64,64], index: 6, kind: input, shape index: {}]
  %s7 = inlined_call_operand.vmem [shape: bf16[2,64,256], index: 7, kind: input, shape index: {}]
  %s8 = inlined_call_operand.vmem [shape: f32[2,256], index: 8, kind: input, shape index: {}]
  %s9 = inlined_call_operand.vmem [shape: bf16[2,256,64], index: 9, kind: input, shape index: {}]
  %s10 = inlined_call_operand.vmem [shape: f32[16,64], index: 10, kind: input, shape index: {}]
  %s11 = inlined_call_operand.vmem [shape: bf16[64,32], index: 11, kind: input, shape index: {}]
  %s12 = inlined_call_operand.vmem [shape: bf16[32,32], index: 12, kind: input, shape index: {}]
  %s13 = inlined_call_operand.vmem [shape: bf16[32,32], index: 13, kind: input, shape index: {}]
  %s14 = inlined_call_operand.vmem [shape: f32[2,32], index: 14, kind: input, shape index: {}]
  %s15 = inlined_call_operand.hbm [shape: f32[1,2,32], index: 15, kind: output, shape index: {}]
  %s16 = sld [smem:[#allocation0]]
  $region70: #{clip_img_adapter_forward.1} parent=0
    _
  %s18 = ssub.s32 1, %s16
  %s19 = scalar_select 0, %s18, %s16
  $region1: #{clip_img_adapter_forward.1} parent=0
    #allocation2 [shape = 'u8[1024]{0}', space=vmem, size = 0x400, scoped, tag = 'output window, operand 0, single buffered']
    #allocation3 [shape = 's32[1]{0}', space=sflag, size = 0x4, scoped, tag = 'scoped memory for clip_img_adapter_forward.1']
    %20 = vsyncpa [#allocation3], 0
    // Predicated region
    $region2: #{clip_img_adapter_forward.1} parent=1 // pred_check
      _
    $region3: #{clip_img_adapter_forward.1} parent=1 // pred_check_branch
      %22 = sbr.rel (0) target = $region5
    $region4: #{clip_img_adapter_forward.1} parent=1 // pred_region
      _
    $region5: #{clip_img_adapter_forward.1} parent=1 // pred_fallthru
      _
    // Predicated region
    $region6: #{clip_img_adapter_forward.1} parent=1 // pred_check
      _
    $region7: #{clip_img_adapter_forward.1} parent=1 // pred_check_branch
      %24 = sbr.rel (0) target = $region9
    $region8: #{clip_img_adapter_forward.1} parent=1 // pred_region
      _
    $region9: #{clip_img_adapter_forward.1} parent=1 // pred_fallthru
      _
    // Predicated region
    $region10: #{clip_img_adapter_forward.1} parent=1 // pred_check
      _
    $region11: #{clip_img_adapter_forward.1} parent=1 // pred_check_branch
      %26 = sbr.rel (0) target = $region13
    $region12: #{clip_img_adapter_forward.1} parent=1 // pred_region
      _
    $region13: #{clip_img_adapter_forward.1} parent=1 // pred_fallthru
      _
    // Predicated region
    $region14: #{clip_img_adapter_forward.1} parent=1 // pred_check
      _
    $region15: #{clip_img_adapter_forward.1} parent=1 // pred_check_branch
      %28 = sbr.rel (0) target = $region17
    $region16: #{clip_img_adapter_forward.1} parent=1 // pred_region
      _
    $region17: #{clip_img_adapter_forward.1} parent=1 // pred_fallthru
      _
    // Predicated region
    $region18: #{clip_img_adapter_forward.1} parent=1 // pred_check
      _
    $region19: #{clip_img_adapter_forward.1} parent=1 // pred_check_branch
      %30 = sbr.rel (0) target = $region21
    $region20: #{clip_img_adapter_forward.1} parent=1 // pred_region
      _
    $region21: #{clip_img_adapter_forward.1} parent=1 // pred_fallthru
      _
    // Predicated region
    $region22: #{clip_img_adapter_forward.1} parent=1 // pred_check
      _
    $region23: #{clip_img_adapter_forward.1} parent=1 // pred_check_branch
      %32 = sbr.rel (0) target = $region25
    $region24: #{clip_img_adapter_forward.1} parent=1 // pred_region
      _
    $region25: #{clip_img_adapter_forward.1} parent=1 // pred_fallthru
      _
    // Predicated region
    $region26: #{clip_img_adapter_forward.1} parent=1 // pred_check
      _
    $region27: #{clip_img_adapter_forward.1} parent=1 // pred_check_branch
      %34 = sbr.rel (0) target = $region29
    $region28: #{clip_img_adapter_forward.1} parent=1 // pred_region
      _
    $region29: #{clip_img_adapter_forward.1} parent=1 // pred_fallthru
      _
    // Predicated region
    $region30: #{clip_img_adapter_forward.1} parent=1 // pred_check
      _
    $region31: #{clip_img_adapter_forward.1} parent=1 // pred_check_branch
      %36 = sbr.rel (0) target = $region33
    $region32: #{clip_img_adapter_forward.1} parent=1 // pred_region
      _
    $region33: #{clip_img_adapter_forward.1} parent=1 // pred_fallthru
      _
    // Predicated region
    $region34: #{clip_img_adapter_forward.1} parent=1 // pred_check
      _
    $region35: #{clip_img_adapter_forward.1} parent=1 // pred_check_branch
      %38 = sbr.rel (0) target = $region37
    $region36: #{clip_img_adapter_forward.1} parent=1 // pred_region
      _
    $region37: #{clip_img_adapter_forward.1} parent=1 // pred_fallthru
      _
    // Predicated region
    $region38: #{clip_img_adapter_forward.1} parent=1 // pred_check
      _
    $region39: #{clip_img_adapter_forward.1} parent=1 // pred_check_branch
      %40 = sbr.rel (0) target = $region41
    $region40: #{clip_img_adapter_forward.1} parent=1 // pred_region
      _
    $region41: #{clip_img_adapter_forward.1} parent=1 // pred_fallthru
      _
    // Predicated region
    $region42: #{clip_img_adapter_forward.1} parent=1 // pred_check
      _
    $region43: #{clip_img_adapter_forward.1} parent=1 // pred_check_branch
      %42 = sbr.rel (0) target = $region45
    $region44: #{clip_img_adapter_forward.1} parent=1 // pred_region
      _
    $region45: #{clip_img_adapter_forward.1} parent=1 // pred_fallthru
      _
    // Predicated region
    $region46: #{clip_img_adapter_forward.1} parent=1 // pred_check
      _
    $region47: #{clip_img_adapter_forward.1} parent=1 // pred_check_branch
      %44 = sbr.rel (0) target = $region49
    $region48: #{clip_img_adapter_forward.1} parent=1 // pred_region
      _
    $region49: #{clip_img_adapter_forward.1} parent=1 // pred_fallthru
      _
    // Predicated region
    $region50: #{clip_img_adapter_forward.1} parent=1 // pred_check
      _
    $region51: #{clip_img_adapter_forward.1} parent=1 // pred_check_branch
      %46 = sbr.rel (0) target = $region53
    $region52: #{clip_img_adapter_forward.1} parent=1 // pred_region
      _
    $region53: #{clip_img_adapter_forward.1} parent=1 // pred_fallthru
      _
    // Predicated region
    $region54: #{clip_img_adapter_forward.1} parent=1 // pred_check
      _
    $region55: #{clip_img_adapter_forward.1} parent=1 // pred_check_branch
      %48 = sbr.rel (0) target = $region57
    $region56: #{clip_img_adapter_forward.1} parent=1 // pred_region
      _
    $region57: #{clip_img_adapter_forward.1} parent=1 // pred_fallthru
      _
    // Predicated region
    $region58: #{clip_img_adapter_forward.1} parent=1 // pred_check
      _
    $region59: #{clip_img_adapter_forward.1} parent=1 // pred_check_branch
      %50 = sbr.rel (0) target = $region61
    $region60: #{clip_img_adapter_forward.1} parent=1 // pred_region
      _
    $region61: #{clip_img_adapter_forward.1} parent=1 // pred_fallthru
      _
    %v52 = vld [vmem:[%s10] sm:$0xff]
    %v53 = vld [vmem:[%s10 + $0x8] sm:$0xff]
    %v54 = vld [vmem:[%s2] sm:$0xff]
    %v55 = vld [vmem:[%s2 + $0x8] sm:$0xff]
    %v56 = vld [vmem:[%s2 + $0x10] sm:$0xff]
    %v57 = vld [vmem:[%s2 + $0x18] sm:$0xff]
    %v58 = vld [vmem:[%s2 + $0x20] sm:$0xff]
    %v59 = vld [vmem:[%s2 + $0x28] sm:$0xff]
    %v60 = vld [vmem:[%s0] sm:$0xff]
    %v61 = vld [vmem:[%s0 + $0x8] sm:$0xff]
    %v62 = vld [vmem:[%s0 + $0x10] sm:$0xff]
    %v63 = vld [vmem:[%s0 + $0x18] sm:$0xff]
    %v64 = vld [vmem:[%s0 + $0x20] sm:$0xff]
    %v65 = vld [vmem:[%s0 + $0x28] sm:$0xff]
    %v66 = vld [vmem:[%s3] sm:$0xf]
    %v67 = vld [vmem:[%s3 + $0x4] sm:$0xf]
    %v68 = vld [vmem:[%s3 + $0x8] sm:$0xf]
    %v69 = vld [vmem:[%s3 + $0xc] sm:$0xf]
    %v70 = vld [vmem:[%s3 + $0x10] sm:$0xf]
    %v71 = vld [vmem:[%s3 + $0x14] sm:$0xf]
    %v72 = vpack.c.bf16 %v61, %v60
    %v73 = vpack.c.bf16 %v63, %v62
    %v74 = vpack.c.bf16 %v65, %v64
    %v75 = vld [vmem:[%s1] sm:$0xff]
    %v76 = vld [vmem:[%s1 + $0x8] sm:$0xff]
    %v77 = vld [vmem:[%s1 + $0x10] sm:$0xff]
    %v78 = vld [vmem:[%s1 + $0x18] sm:$0xff]
    %v79 = vld [vmem:[%s1 + $0x20] sm:$0xff]
    %v80 = vld [vmem:[%s1 + $0x28] sm:$0xff]
    %v87 = vunpack.c.l.b16 %v66
    %v88 = vunpack.c.l.b16 %v67
    %v89 = vunpack.c.l.b16 %v68
    %v90 = vunpack.c.l.b16 %v69
    %v91 = vunpack.c.l.b16 %v70
    %v92 = vunpack.c.l.b16 %v71
    %v93 = vpack.c.b16 %v88, %v87
    %v94 = vpack.c.b16 %v90, %v89
    %v95 = vpack.c.b16 %v92, %v91
    %vm99 = vcmask 392192
    %v101 = vsel %vm99, %v72, 0
    %v104 = vsel %vm99, %v73, 0
    %v107 = vsel %vm99, %v74, 0
    %109 = vmatpush.bf16.msra.mxu0 0
    %110 = vmatpush.bf16.msra.mxu0 0
    %111 = vmatpush.bf16.msra.mxu0 0
    %112 = vmatpush.bf16.msra.mxu0 0
    %113 = vmatpush.bf16.msra.mxu0 0
    %114 = vmatpush.bf16.msra.mxu0 %v95
    %115 = vmatpush.bf16.msra.mxu0 %v94
    %116 = vmatpush.bf16.msra.mxu0 %v93
    %117 = vmatmul.bf16.gmra.mxu0 %v101
    %v118 = vpop.f32.mrf.mxu0
    %v119 = vadd.f32 %v75, %v118
    %v120 = vpop.f32.mrf.mxu0
    %v121 = vadd.f32 %v76, %v120
    %122 = vmatmul.bf16.gmra.mxu0 %v104
    %v123 = vpop.f32.mrf.mxu0
    %v124 = vadd.f32 %v77, %v123
    %v125 = vpop.f32.mrf.mxu0
    %v126 = vadd.f32 %v78, %v125
    %127 = vmatmul.bf16.gmra.mxu0 %v107
    %v128 = vpop.f32.mrf.mxu0
    %v129 = vadd.f32 %v79, %v128
    %v130 = vpop.f32.mrf.mxu0
    %v131 = vadd.f32 %v80, %v130
    %132 = vdwg.mxu0
    %vm133 = vcmask 523264
    %v134 = vsel %vm133, %v119, 0.0
    %135 = vadd.xlane.f32.xlu0 %v134
    %v136 = vpop.xlane.xlu0 %135
    %v137 = vsel %vm133, %v121, 0.0
    %138 = vadd.xlane.f32.xlu0 %v137
    %v139 = vpop.xlane.xlu0 %138
    %v140 = vsel %vm133, %v124, 0.0
    %141 = vadd.xlane.f32.xlu0 %v140
    %v142 = vpop.xlane.xlu0 %141
    %v143 = vsel %vm133, %v126, 0.0
    %144 = vadd.xlane.f32.xlu0 %v143
    %v145 = vpop.xlane.xlu0 %144
    %v146 = vsel %vm133, %v129, 0.0
    %147 = vadd.xlane.f32.xlu0 %v146
    %v148 = vpop.xlane.xlu0 %147
    %v149 = vsel %vm133, %v131, 0.0
    %150 = vadd.xlane.f32.xlu0 %v149
    %v151 = vpop.xlane.xlu0 %150
    %v152 = vrcp.pop 64.0
    %v153 = vmul.f32 64.0, %v152
    %v154 = vsub.f32 1.0, %v153
    %v155 = vmul.f32 %v152, %v154
    %v156 = vadd.f32 %v152, %v155
    %vm157 = vweird.f32 %v152
    %v158 = vsel %vm157, %v152, %v156
    %v159 = vmul.f32 %v136, %v158
    %v160 = vmul.f32 %v139, %v158
    %v161 = vmul.f32 %v142, %v158
    %v162 = vmul.f32 %v145, %v158
    %v163 = vmul.f32 %v148, %v158
    %v164 = vmul.f32 %v151, %v158
    %v165 = vsub.f32 %v119, %v159
    %v166 = vsub.f32 %v121, %v160
    %v167 = vsub.f32 %v124, %v161
    %v168 = vsub.f32 %v126, %v162
    %v169 = vsub.f32 %v129, %v163
    %v170 = vsub.f32 %v131, %v164
    %v171 = vmul.f32 %v165, %v165
    %v172 = vmul.f32 %v166, %v166
    %v173 = vmul.f32 %v167, %v167
    %v174 = vmul.f32 %v168, %v168
    %v175 = vmul.f32 %v169, %v169
    %v176 = vmul.f32 %v170, %v170
    %v177 = vsel %vm133, %v171, 0.0
    %178 = vadd.xlane.f32.xlu0 %v177
    %v179 = vpop.xlane.xlu0 %178
    %v180 = vsel %vm133, %v172, 0.0
    %181 = vadd.xlane.f32.xlu0 %v180
    %v182 = vpop.xlane.xlu0 %181
    %v183 = vsel %vm133, %v173, 0.0
    %184 = vadd.xlane.f32.xlu0 %v183
    %v185 = vpop.xlane.xlu0 %184
    %v186 = vsel %vm133, %v174, 0.0
    %187 = vadd.xlane.f32.xlu0 %v186
    %v188 = vpop.xlane.xlu0 %187
    %v189 = vsel %vm133, %v175, 0.0
    %190 = vadd.xlane.f32.xlu0 %v189
    %v191 = vpop.xlane.xlu0 %190
    %v192 = vsel %vm133, %v176, 0.0
    %193 = vadd.xlane.f32.xlu0 %v192
    %v194 = vpop.xlane.xlu0 %193
    %v195 = vmul.f32 %v179, %v158
    %v196 = vmul.f32 %v182, %v158
    %v197 = vmul.f32 %v185, %v158
    %v198 = vmul.f32 %v188, %v158
    %v199 = vmul.f32 %v191, %v158
    %v200 = vmul.f32 %v194, %v158
    %v201 = vadd.f32 %v195, 1e-05
    %v202 = vadd.f32 %v196, 1e-05
    %v203 = vadd.f32 %v197, 1e-05
    %v204 = vadd.f32 %v198, 1e-05
    %v205 = vadd.f32 %v199, 1e-05
    %v206 = vadd.f32 %v200, 1e-05
    %v207 = vrsqrt.pop %v201
    %v208 = vmul.f32 %v207, %v201
    %v209 = vmul.f32 %v208, %v207
    %v210 = vmul.f32 0.5, %v209
    %v211 = vsub.f32 1.5, %v210
    %v212 = vmul.f32 %v207, %v211
    %vm213 = vweird.f32 %v201
    %vm214 = vweird.f32 %v207
    %vm215 = vmor %vm213, %vm214
    %v216 = vsel %vm215, %v207, %v212
    %v217 = vrsqrt.pop %v202
    %v218 = vmul.f32 %v217, %v202
    %v219 = vmul.f32 %v218, %v217
    %v220 = vmul.f32 0.5, %v219
    %v221 = vsub.f32 1.5, %v220
    %v222 = vmul.f32 %v217, %v221
    %vm223 = vweird.f32 %v202
    %vm224 = vweird.f32 %v217
    %vm225 = vmor %vm223, %vm224
    %v226 = vsel %vm225, %v217, %v222
    %v227 = vrsqrt.pop %v203
    %v228 = vmul.f32 %v227, %v203
    %v229 = vmul.f32 %v228, %v227
    %v230 = vmul.f32 0.5, %v229
    %v231 = vsub.f32 1.5, %v230
    %v232 = vmul.f32 %v227, %v231
    %vm233 = vweird.f32 %v203
    %vm234 = vweird.f32 %v227
    %vm235 = vmor %vm233, %vm234
    %v236 = vsel %vm235, %v227, %v232
    %v237 = vrsqrt.pop %v204
    %v238 = vmul.f32 %v237, %v204
    %v239 = vmul.f32 %v238, %v237
    %v240 = vmul.f32 0.5, %v239
    %v241 = vsub.f32 1.5, %v240
    %v242 = vmul.f32 %v237, %v241
    %vm243 = vweird.f32 %v204
    %vm244 = vweird.f32 %v237
    %vm245 = vmor %vm243, %vm244
    %v246 = vsel %vm245, %v237, %v242
    %v247 = vrsqrt.pop %v205
    %v248 = vmul.f32 %v247, %v205
    %v249 = vmul.f32 %v248, %v247
    %v250 = vmul.f32 0.5, %v249
    %v251 = vsub.f32 1.5, %v250
    %v252 = vmul.f32 %v247, %v251
    %vm253 = vweird.f32 %v205
    %vm254 = vweird.f32 %v247
    %vm255 = vmor %vm253, %vm254
    %v256 = vsel %vm255, %v247, %v252
    %v257 = vrsqrt.pop %v206
    %v258 = vmul.f32 %v257, %v206
    %v259 = vmul.f32 %v258, %v257
    %v260 = vmul.f32 0.5, %v259
    %v261 = vsub.f32 1.5, %v260
    %v262 = vmul.f32 %v257, %v261
    %vm263 = vweird.f32 %v206
    %vm264 = vweird.f32 %v257
    %vm265 = vmor %vm263, %vm264
    %v266 = vsel %vm265, %v257, %v262
    %v267 = vmul.f32 %v165, %v216
    %v268 = vmul.f32 %v166, %v226
    %v269 = vmul.f32 %v167, %v236
    %v270 = vmul.f32 %v168, %v246
    %v271 = vmul.f32 %v169, %v256
    %v272 = vmul.f32 %v170, %v266
    %v273 = vperm.slane %v52, 0
    %v274 = vmul.f32 %v267, %v273
    %v275 = vmul.f32 %v268, %v273
    %v276 = vmul.f32 %v269, %v273
    %v277 = vmul.f32 %v270, %v273
    %v278 = vmul.f32 %v271, %v273
    %v279 = vmul.f32 %v272, %v273
    %v280 = vperm.slane %v52, 1
    %v281 = vadd.f32 %v274, %v280
    %v282 = vadd.f32 %v275, %v280
    %v283 = vadd.f32 %v276, %v280
    %v284 = vadd.f32 %v277, %v280
    %v285 = vadd.f32 %v278, %v280
    %v286 = vadd.f32 %v279, %v280
    %v287 = vsel %vm133, %v281, 0.0
    %288 = vadd.xlane.f32.xlu0 %v287
    %v289 = vpop.xlane.xlu0 %288
    %v290 = vsel %vm133, %v282, 0.0
    %291 = vadd.xlane.f32.xlu0 %v290
    %v292 = vpop.xlane.xlu0 %291
    %v293 = vsel %vm133, %v283, 0.0
    %294 = vadd.xlane.f32.xlu0 %v293
    %v295 = vpop.xlane.xlu0 %294
    %v296 = vsel %vm133, %v284, 0.0
    %297 = vadd.xlane.f32.xlu0 %v296
    %v298 = vpop.xlane.xlu0 %297
    %v299 = vsel %vm133, %v285, 0.0
    %300 = vadd.xlane.f32.xlu0 %v299
    %v301 = vpop.xlane.xlu0 %300
    %v302 = vsel %vm133, %v286, 0.0
    %303 = vadd.xlane.f32.xlu0 %v302
    %v304 = vpop.xlane.xlu0 %303
    %v305 = vmul.f32 %v289, %v158
    %v306 = vmul.f32 %v292, %v158
    %v307 = vmul.f32 %v295, %v158
    %v308 = vmul.f32 %v298, %v158
    %v309 = vmul.f32 %v301, %v158
    %v310 = vmul.f32 %v304, %v158
    %v311 = vsub.f32 %v281, %v305
    %v312 = vsub.f32 %v282, %v306
    %v313 = vsub.f32 %v283, %v307
    %v314 = vsub.f32 %v284, %v308
    %v315 = vsub.f32 %v285, %v309
    %v316 = vsub.f32 %v286, %v310
    %v317 = vmul.f32 %v311, %v311
    %v318 = vmul.f32 %v312, %v312
    %v319 = vmul.f32 %v313, %v313
    %v320 = vmul.f32 %v314, %v314
    %v321 = vmul.f32 %v315, %v315
    %v322 = vmul.f32 %v316, %v316
    %v323 = vsel %vm133, %v317, 0.0
    %324 = vadd.xlane.f32.xlu0 %v323
    %v325 = vpop.xlane.xlu0 %324
    %v326 = vsel %vm133, %v318, 0.0
    %327 = vadd.xlane.f32.xlu0 %v326
    %v328 = vpop.xlane.xlu0 %327
    %v329 = vsel %vm133, %v319, 0.0
    %330 = vadd.xlane.f32.xlu0 %v329
    %v331 = vpop.xlane.xlu0 %330
    %v332 = vsel %vm133, %v320, 0.0
    %333 = vadd.xlane.f32.xlu0 %v332
    %v334 = vpop.xlane.xlu0 %333
    %v335 = vsel %vm133, %v321, 0.0
    %336 = vadd.xlane.f32.xlu0 %v335
    %v337 = vpop.xlane.xlu0 %336
    %v338 = vsel %vm133, %v322, 0.0
    %339 = vadd.xlane.f32.xlu0 %v338
    %v340 = vpop.xlane.xlu0 %339
    %v341 = vmul.f32 %v325, %v158
    %v342 = vmul.f32 %v328, %v158
    %v343 = vmul.f32 %v331, %v158
    %v344 = vmul.f32 %v334, %v158
    %v345 = vmul.f32 %v337, %v158
    %v346 = vmul.f32 %v340, %v158
    %v347 = vadd.f32 %v341, 1e-05
    %v348 = vadd.f32 %v342, 1e-05
    %v349 = vadd.f32 %v343, 1e-05
    %v350 = vadd.f32 %v344, 1e-05
    %v351 = vadd.f32 %v345, 1e-05
    %v352 = vadd.f32 %v346, 1e-05
    %v353 = vrsqrt.pop %v347
    %v354 = vmul.f32 %v353, %v347
    %v355 = vmul.f32 %v354, %v353
    %v356 = vmul.f32 0.5, %v355
    %v357 = vsub.f32 1.5, %v356
    %v358 = vmul.f32 %v353, %v357
    %vm359 = vweird.f32 %v347
    %vm360 = vweird.f32 %v353
    %vm361 = vmor %vm359, %vm360
    %v362 = vsel %vm361, %v353, %v358
    %v363 = vrsqrt.pop %v348
    %v364 = vmul.f32 %v363, %v348
    %v365 = vmul.f32 %v364, %v363
    %v366 = vmul.f32 0.5, %v365
    %v367 = vsub.f32 1.5, %v366
    %v368 = vmul.f32 %v363, %v367
    %vm369 = vweird.f32 %v348
    %vm370 = vweird.f32 %v363
    %vm371 = vmor %vm369, %vm370
    %v372 = vsel %vm371, %v363, %v368
    %v373 = vrsqrt.pop %v349
    %v374 = vmul.f32 %v373, %v349
    %v375 = vmul.f32 %v374, %v373
    %v376 = vmul.f32 0.5, %v375
    %v377 = vsub.f32 1.5, %v376
    %v378 = vmul.f32 %v373, %v377
    %vm379 = vweird.f32 %v349
    %vm380 = vweird.f32 %v373
    %vm381 = vmor %vm379, %vm380
    %v382 = vsel %vm381, %v373, %v378
    %v383 = vrsqrt.pop %v350
    %v384 = vmul.f32 %v383, %v350
    %v385 = vmul.f32 %v384, %v383
    %v386 = vmul.f32 0.5, %v385
    %v387 = vsub.f32 1.5, %v386
    %v388 = vmul.f32 %v383, %v387
    %vm389 = vweird.f32 %v350
    %vm390 = vweird.f32 %v383
    %vm391 = vmor %vm389, %vm390
    %v392 = vsel %vm391, %v383, %v388
    %v393 = vrsqrt.pop %v351
    %v394 = vmul.f32 %v393, %v351
    %v395 = vmul.f32 %v394, %v393
    %v396 = vmul.f32 0.5, %v395
    %v397 = vsub.f32 1.5, %v396
    %v398 = vmul.f32 %v393, %v397
    %vm399 = vweird.f32 %v351
    %vm400 = vweird.f32 %v393
    %vm401 = vmor %vm399, %vm400
    %v402 = vsel %vm401, %v393, %v398
    %v403 = vrsqrt.pop %v352
    %v404 = vmul.f32 %v403, %v352
    %v405 = vmul.f32 %v404, %v403
    %v406 = vmul.f32 0.5, %v405
    %v407 = vsub.f32 1.5, %v406
    %v408 = vmul.f32 %v403, %v407
    %vm409 = vweird.f32 %v352
    %vm410 = vweird.f32 %v403
    %vm411 = vmor %vm409, %vm410
    %v412 = vsel %vm411, %v403, %v408
    %v413 = vmul.f32 %v311, %v362
    %v414 = vmul.f32 %v312, %v372
    %v415 = vmul.f32 %v313, %v382
    %v416 = vmul.f32 %v314, %v392
    %v417 = vmul.f32 %v315, %v402
    %v418 = vmul.f32 %v316, %v412
    %v419 = vperm.slane %v52, 4
    %v420 = vmul.f32 %v413, %v419
    %v421 = vmul.f32 %v414, %v419
    %v422 = vmul.f32 %v415, %v419
    %v423 = vmul.f32 %v416, %v419
    %v424 = vmul.f32 %v417, %v419
    %v425 = vmul.f32 %v418, %v419
    %v426 = vperm.slane %v52, 5
    %v427 = vadd.f32 %v420, %v426
    %v428 = vadd.f32 %v421, %v426
    %v429 = vadd.f32 %v422, %v426
    %v430 = vadd.f32 %v423, %v426
    %v431 = vadd.f32 %v424, %v426
    %v432 = vadd.f32 %v425, %v426
    %v433 = vld [vmem:[%s4] sm:$0xff]
    %v434 = vld [vmem:[%s4 + $0x8] sm:$0xff]
    %v435 = vld [vmem:[%s4 + $0x10] sm:$0xff]
    %v436 = vld [vmem:[%s4 + $0x18] sm:$0xff]
    %v437 = vld [vmem:[%s4 + $0x20] sm:$0xff]
    %v438 = vld [vmem:[%s4 + $0x28] sm:$0xff]
    %v439 = vld [vmem:[%s4 + $0x30] sm:$0xff]
    %v440 = vld [vmem:[%s4 + $0x38] sm:$0xff]
    %v441 = vpack.c.bf16 %v428, %v427
    %v442 = vpack.c.bf16 %v430, %v429
    %v443 = vpack.c.bf16 %v432, %v431
    %v444 = vld [vmem:[%s5] ss:$2 sm:$0x3]
    %v446 = vperm.slane %v444, 0
    %v447 = vperm.slane %v444, 1
    %v458 = vunpack.c.l.b16 %v433
    %v459 = vunpack.c.h.b16 %v433
    %v460 = vunpack.c.l.b16 %v434
    %v461 = vunpack.c.h.b16 %v434
    %v462 = vunpack.c.l.b16 %v435
    %v463 = vunpack.c.h.b16 %v435
    %v464 = vunpack.c.l.b16 %v436
    %v465 = vunpack.c.h.b16 %v436
    %v466 = vunpack.c.l.b16 %v437
    %v467 = vunpack.c.h.b16 %v437
    %v468 = vunpack.c.l.b16 %v438
    %v469 = vunpack.c.h.b16 %v438
    %v470 = vunpack.c.l.b16 %v439
    %v471 = vunpack.c.h.b16 %v439
    %v472 = vunpack.c.l.b16 %v440
    %v473 = vunpack.c.h.b16 %v440
    %v474 = vpack.c.b16 %v460, %v458
    %v475 = vpack.c.b16 %v461, %v459
    %v476 = vpack.c.b16 %v464, %v462
    %v477 = vpack.c.b16 %v465, %v463
    %v478 = vpack.c.b16 %v468, %v466
    %v479 = vpack.c.b16 %v469, %v467
    %v480 = vpack.c.b16 %v472, %v470
    %v481 = vpack.c.b16 %v473, %v471
    %v491 = vsel %vm133, %v441, 0
    %v494 = vsel %vm133, %v442, 0
    %v497 = vsel %vm133, %v443, 0
    %499 = vmatpush.bf16.msra.mxu0 0
    %500 = vmatpush.bf16.msra.mxu0 0
    %501 = vmatpush.bf16.msra.mxu0 0
    %502 = vmatpush.bf16.msra.mxu0 0
    %503 = vmatpush.bf16.msra.mxu0 %v480
    %504 = vmatpush.bf16.msra.mxu0 %v478
    %505 = vmatpush.bf16.msra.mxu0 %v476
    %506 = vmatpush.bf16.msra.mxu0 %v474
    %507 = vmatmul.bf16.gmra.mxu0 %v491
    %v508 = vpop.f32.mrf.mxu0
    %v509 = vadd.f32 %v446, %v508
    %v510 = vpop.f32.mrf.mxu0
    %v511 = vadd.f32 %v446, %v510
    %512 = vmatmul.bf16.gmra.mxu0 %v494
    %v513 = vpop.f32.mrf.mxu0
    %v514 = vadd.f32 %v446, %v513
    %v515 = vpop.f32.mrf.mxu0
    %v516 = vadd.f32 %v446, %v515
    %517 = vmatmul.bf16.gmra.mxu0 %v497
    %v518 = vpop.f32.mrf.mxu0
    %v519 = vadd.f32 %v446, %v518
    %v520 = vpop.f32.mrf.mxu0
    %v521 = vadd.f32 %v446, %v520
    %522 = vdwg.mxu0
    %523 = vmatpush.bf16.msra.mxu0 0
    %524 = vmatpush.bf16.msra.mxu0 0
    %525 = vmatpush.bf16.msra.mxu0 0
    %526 = vmatpush.bf16.msra.mxu0 0
    %527 = vmatpush.bf16.msra.mxu0 %v481
    %528 = vmatpush.bf16.msra.mxu0 %v479
    %529 = vmatpush.bf16.msra.mxu0 %v477
    %530 = vmatpush.bf16.msra.mxu0 %v475
    %531 = vmatmul.bf16.gmra.mxu0 %v491
    %v532 = vpop.f32.mrf.mxu0
    %v533 = vadd.f32 %v447, %v532
    %v534 = vpop.f32.mrf.mxu0
    %v535 = vadd.f32 %v447, %v534
    %536 = vmatmul.bf16.gmra.mxu0 %v494
    %v537 = vpop.f32.mrf.mxu0
    %v538 = vadd.f32 %v447, %v537
    %v539 = vpop.f32.mrf.mxu0
    %v540 = vadd.f32 %v447, %v539
    %541 = vmatmul.bf16.gmra.mxu0 %v497
    %v542 = vpop.f32.mrf.mxu0
    %v543 = vadd.f32 %v447, %v542
    %v544 = vpop.f32.mrf.mxu0
    %v545 = vadd.f32 %v447, %v544
    %546 = vdwg.mxu0
    %v547 = vpack.c.bf16 %v533, %v509
    %v548 = vpack.c.bf16 %v535, %v511
    %v549 = vpack.c.bf16 %v538, %v514
    %v550 = vpack.c.bf16 %v540, %v516
    %v551 = vpack.c.bf16 %v543, %v519
    %v552 = vpack.c.bf16 %v545, %v521
    %v559 = vunpack.c.l.b16 %v547
    %v560 = vunpack.c.l.b16 %v548
    %v561 = vunpack.c.l.b16 %v549
    %v562 = vunpack.c.l.b16 %v550
    %v563 = vunpack.c.l.b16 %v551
    %v564 = vunpack.c.l.b16 %v552
    %v565 = vpack.c.b16 %v560, %v559
    %v566 = vpack.c.b16 %v562, %v561
    %v567 = vpack.c.b16 %v564, %v563
    %568 = vrot.lane.b32.xlu0 %v565, 64
    %v569 = vpop.permute.xlu0 %568
    %570 = vrot.lane.b32.xlu0 %v566, 64
    %v571 = vpop.permute.xlu0 %570
    %572 = vrot.lane.b32.xlu0 %v567, 64
    %v573 = vpop.permute.xlu0 %572
    %vm574 = vcmask 130048
    %v576 = vsel %vm574, %v565, 0
    %v579 = vsel %vm574, %v566, 0
    %v582 = vsel %vm574, %v567, 0
    %v585 = vsel %vm574, %v569, 0
    %v588 = vsel %vm574, %v571, 0
    %v591 = vsel %vm574, %v573, 0
    %593 = vmatpush.bf16.xpose.msra.mxu0 0
    %594 = vmatpush.bf16.xpose.msra.mxu0 0
    %595 = vmatpush.bf16.xpose.msra.mxu0 0
    %596 = vmatpush.bf16.xpose.msra.mxu0 0
    %597 = vmatpush.bf16.xpose.msra.mxu0 0
    %598 = vmatpush.bf16.xpose.msra.mxu0 %v591
    %599 = vmatpush.bf16.xpose.msra.mxu0 %v588
    %600 = vmatpush.bf16.xpose.msra.mxu0 %v585
    %601 = vmatmul.bf16.gmra.mxu0 %v576
    %v602 = vpop.f32.mrf.mxu0
    %v603 = vadd.f32 %v54, %v602
    %v604 = vpop.f32.mrf.mxu0
    %v605 = vadd.f32 %v55, %v604
    %606 = vmatmul.bf16.gmra.mxu0 %v579
    %v607 = vpop.f32.mrf.mxu0
    %v608 = vadd.f32 %v56, %v607
    %v609 = vpop.f32.mrf.mxu0
    %v610 = vadd.f32 %v57, %v609
    %611 = vmatmul.bf16.gmra.mxu0 %v582
    %v612 = vpop.f32.mrf.mxu0
    %v613 = vadd.f32 %v58, %v612
    %v614 = vpop.f32.mrf.mxu0
    %v615 = vadd.f32 %v59, %v614
    %616 = vdwg.mxu0
    %v617 = vsel %vm99, %v603, -inf
    %618 = vmax.xlane.f32.xlu0 %v617
    %v619 = vpop.xlane.xlu0 %618
    %v620 = vsel %vm99, %v605, -inf
    %621 = vmax.xlane.f32.xlu0 %v620
    %v622 = vpop.xlane.xlu0 %621
    %v623 = vsel %vm99, %v608, -inf
    %624 = vmax.xlane.f32.xlu0 %v623
    %v625 = vpop.xlane.xlu0 %624
    %v626 = vsel %vm99, %v610, -inf
    %627 = vmax.xlane.f32.xlu0 %v626
    %v628 = vpop.xlane.xlu0 %627
    %v629 = vsel %vm99, %v613, -inf
    %630 = vmax.xlane.f32.xlu0 %v629
    %v631 = vpop.xlane.xlu0 %630
    %v632 = vsel %vm99, %v615, -inf
    %633 = vmax.xlane.f32.xlu0 %v632
    %v634 = vpop.xlane.xlu0 %633
    %v635 = vsub.f32 %v603, %v619
    %v636 = vsub.f32 %v605, %v622
    %v637 = vsub.f32 %v608, %v625
    %v638 = vsub.f32 %v610, %v628
    %v639 = vsub.f32 %v613, %v631
    %v640 = vsub.f32 %v615, %v634
    %v641 = vmul.f32 %v635, 1.442695
    %v642 = vpow.pop %v641
    %v643 = vmul.f32 %v636, 1.442695
    %v644 = vpow.pop %v643
    %v645 = vmul.f32 %v637, 1.442695
    %v646 = vpow.pop %v645
    %v647 = vmul.f32 %v638, 1.442695
    %v648 = vpow.pop %v647
    %v649 = vmul.f32 %v639, 1.442695
    %v650 = vpow.pop %v649
    %v651 = vmul.f32 %v640, 1.442695
    %v652 = vpow.pop %v651
    %v653 = vsel %vm99, %v642, 0.0
    %654 = vadd.xlane.f32.xlu0 %v653
    %v655 = vpop.xlane.xlu0 %654
    %v656 = vsel %vm99, %v644, 0.0
    %657 = vadd.xlane.f32.xlu0 %v656
    %v658 = vpop.xlane.xlu0 %657
    %v659 = vsel %vm99, %v646, 0.0
    %660 = vadd.xlane.f32.xlu0 %v659
    %v661 = vpop.xlane.xlu0 %660
    %v662 = vsel %vm99, %v648, 0.0
    %663 = vadd.xlane.f32.xlu0 %v662
    %v664 = vpop.xlane.xlu0 %663
    %v665 = vsel %vm99, %v650, 0.0
    %666 = vadd.xlane.f32.xlu0 %v665
    %v667 = vpop.xlane.xlu0 %666
    %v668 = vsel %vm99, %v652, 0.0
    %669 = vadd.xlane.f32.xlu0 %v668
    %v670 = vpop.xlane.xlu0 %669
    %v671 = vrcp.pop %v655
    %v672 = vrcp.pop %v658
    %v673 = vrcp.pop %v661
    %v674 = vrcp.pop %v664
    %v675 = vrcp.pop %v667
    %v676 = vrcp.pop %v670
    %v677 = vmul.f32 %v642, %v671
    %v678 = vmul.f32 %v644, %v672
    %v679 = vmul.f32 %v646, %v673
    %v680 = vmul.f32 %v648, %v674
    %v681 = vmul.f32 %v650, %v675
    %v682 = vmul.f32 %v652, %v676
    %v683 = vpack.c.bf16 %v678, %v677
    %v684 = vpack.c.bf16 %v680, %v679
    %v685 = vpack.c.bf16 %v682, %v681
    %v686 = vunpack.c.h.b16 %v547
    %v687 = vunpack.c.h.b16 %v548
    %v688 = vunpack.c.h.b16 %v549
    %v689 = vunpack.c.h.b16 %v550
    %v690 = vunpack.c.h.b16 %v551
    %v691 = vunpack.c.h.b16 %v552
    %v692 = vpack.c.b16 %v687, %v686
    %v693 = vpack.c.b16 %v689, %v688
    %v694 = vpack.c.b16 %v691, %v690
    %v699 = vsel %vm99, %v683, 0
    %v702 = vsel %vm99, %v684, 0
    %v705 = vsel %vm99, %v685, 0
    %707 = vmatpush.bf16.msra.mxu0 0
    %708 = vmatpush.bf16.msra.mxu0 0
    %709 = vmatpush.bf16.msra.mxu0 0
    %710 = vmatpush.bf16.msra.mxu0 0
    %711 = vmatpush.bf16.msra.mxu0 0
    %712 = vmatpush.bf16.msra.mxu0 %v694
    %713 = vmatpush.bf16.msra.mxu0 %v693
    %714 = vmatpush.bf16.msra.mxu0 %v692
    %715 = vmatmul.bf16.gmra.mxu0 %v699
    %v716 = vpop.f32.mrf.mxu0
    %v717 = vadd.f32 0.0, %v716
    %v718 = vpop.f32.mrf.mxu0
    %v719 = vadd.f32 0.0, %v718
    %720 = vmatmul.bf16.gmra.mxu0 %v702
    %v721 = vpop.f32.mrf.mxu0
    %v722 = vadd.f32 0.0, %v721
    %v723 = vpop.f32.mrf.mxu0
    %v724 = vadd.f32 0.0, %v723
    %725 = vmatmul.bf16.gmra.mxu0 %v705
    %v726 = vpop.f32.mrf.mxu0
    %v727 = vadd.f32 0.0, %v726
    %v728 = vpop.f32.mrf.mxu0
    %v729 = vadd.f32 0.0, %v728
    %730 = vdwg.mxu0
    %731 = vrot.lane.b32.xlu0 %v565, 112
    %v732 = vpop.permute.xlu0 %731
    %733 = vrot.lane.b32.xlu0 %v566, 112
    %v734 = vpop.permute.xlu0 %733
    %735 = vrot.lane.b32.xlu0 %v567, 112
    %v736 = vpop.permute.xlu0 %735
    %737 = vrot.lane.b32.xlu0 %v565, 48
    %v738 = vpop.permute.xlu0 %737
    %739 = vrot.lane.b32.xlu0 %v566, 48
    %v740 = vpop.permute.xlu0 %739
    %741 = vrot.lane.b32.xlu0 %v567, 48
    %v742 = vpop.permute.xlu0 %741
    %v744 = vsel %vm574, %v732, 0
    %v747 = vsel %vm574, %v734, 0
    %v750 = vsel %vm574, %v736, 0
    %v753 = vsel %vm574, %v738, 0
    %v756 = vsel %vm574, %v740, 0
    %v759 = vsel %vm574, %v742, 0
    %761 = vmatpush.bf16.xpose.msra.mxu0 0
    %762 = vmatpush.bf16.xpose.msra.mxu0 0
    %763 = vmatpush.bf16.xpose.msra.mxu0 0
    %764 = vmatpush.bf16.xpose.msra.mxu0 0
    %765 = vmatpush.bf16.xpose.msra.mxu0 0
    %766 = vmatpush.bf16.xpose.msra.mxu0 %v759
    %767 = vmatpush.bf16.xpose.msra.mxu0 %v756
    %768 = vmatpush.bf16.xpose.msra.mxu0 %v753
    %769 = vmatmul.bf16.gmra.mxu0 %v744
    %v770 = vpop.f32.mrf.mxu0
    %v771 = vadd.f32 %v54, %v770
    %v772 = vpop.f32.mrf.mxu0
    %v773 = vadd.f32 %v55, %v772
    %774 = vmatmul.bf16.gmra.mxu0 %v747
    %v775 = vpop.f32.mrf.mxu0
    %v776 = vadd.f32 %v56, %v775
    %v777 = vpop.f32.mrf.mxu0
    %v778 = vadd.f32 %v57, %v777
    %779 = vmatmul.bf16.gmra.mxu0 %v750
    %v780 = vpop.f32.mrf.mxu0
    %v781 = vadd.f32 %v58, %v780
    %v782 = vpop.f32.mrf.mxu0
    %v783 = vadd.f32 %v59, %v782
    %784 = vdwg.mxu0
    %v785 = vsel %vm99, %v771, -inf
    %786 = vmax.xlane.f32.xlu0 %v785
    %v787 = vpop.xlane.xlu0 %786
    %v788 = vsel %vm99, %v773, -inf
    %789 = vmax.xlane.f32.xlu0 %v788
    %v790 = vpop.xlane.xlu0 %789
    %v791 = vsel %vm99, %v776, -inf
    %792 = vmax.xlane.f32.xlu0 %v791
    %v793 = vpop.xlane.xlu0 %792
    %v794 = vsel %vm99, %v778, -inf
    %795 = vmax.xlane.f32.xlu0 %v794
    %v796 = vpop.xlane.xlu0 %795
    %v797 = vsel %vm99, %v781, -inf
    %798 = vmax.xlane.f32.xlu0 %v797
    %v799 = vpop.xlane.xlu0 %798
    %v800 = vsel %vm99, %v783, -inf
    %801 = vmax.xlane.f32.xlu0 %v800
    %v802 = vpop.xlane.xlu0 %801
    %v803 = vsub.f32 %v771, %v787
    %v804 = vsub.f32 %v773, %v790
    %v805 = vsub.f32 %v776, %v793
    %v806 = vsub.f32 %v778, %v796
    %v807 = vsub.f32 %v781, %v799
    %v808 = vsub.f32 %v783, %v802
    %v809 = vmul.f32 %v803, 1.442695
    %v810 = vpow.pop %v809
    %v811 = vmul.f32 %v804, 1.442695
    %v812 = vpow.pop %v811
    %v813 = vmul.f32 %v805, 1.442695
    %v814 = vpow.pop %v813
    %v815 = vmul.f32 %v806, 1.442695
    %v816 = vpow.pop %v815
    %v817 = vmul.f32 %v807, 1.442695
    %v818 = vpow.pop %v817
    %v819 = vmul.f32 %v808, 1.442695
    %v820 = vpow.pop %v819
    %v821 = vsel %vm99, %v810, 0.0
    %822 = vadd.xlane.f32.xlu0 %v821
    %v823 = vpop.xlane.xlu0 %822
    %v824 = vsel %vm99, %v812, 0.0
    %825 = vadd.xlane.f32.xlu0 %v824
    %v826 = vpop.xlane.xlu0 %825
    %v827 = vsel %vm99, %v814, 0.0
    %828 = vadd.xlane.f32.xlu0 %v827
    %v829 = vpop.xlane.xlu0 %828
    %v830 = vsel %vm99, %v816, 0.0
    %831 = vadd.xlane.f32.xlu0 %v830
    %v832 = vpop.xlane.xlu0 %831
    %v833 = vsel %vm99, %v818, 0.0
    %834 = vadd.xlane.f32.xlu0 %v833
    %v835 = vpop.xlane.xlu0 %834
    %v836 = vsel %vm99, %v820, 0.0
    %837 = vadd.xlane.f32.xlu0 %v836
    %v838 = vpop.xlane.xlu0 %837
    %v839 = vrcp.pop %v823
    %v840 = vrcp.pop %v826
    %v841 = vrcp.pop %v829
    %v842 = vrcp.pop %v832
    %v843 = vrcp.pop %v835
    %v844 = vrcp.pop %v838
    %v845 = vmul.f32 %v810, %v839
    %v846 = vmul.f32 %v812, %v840
    %v847 = vmul.f32 %v814, %v841
    %v848 = vmul.f32 %v816, %v842
    %v849 = vmul.f32 %v818, %v843
    %v850 = vmul.f32 %v820, %v844
    %v851 = vpack.c.bf16 %v846, %v845
    %v852 = vpack.c.bf16 %v848, %v847
    %v853 = vpack.c.bf16 %v850, %v849
    %854 = vrot.lane.b32.xlu0 %v692, 112
    %v855 = vpop.permute.xlu0 %854
    %856 = vrot.lane.b32.xlu0 %v693, 112
    %v857 = vpop.permute.xlu0 %856
    %858 = vrot.lane.b32.xlu0 %v694, 112
    %v859 = vpop.permute.xlu0 %858
    %v864 = vsel %vm99, %v851, 0
    %v867 = vsel %vm99, %v852, 0
    %v870 = vsel %vm99, %v853, 0
    %872 = vmatpush.bf16.msra.mxu0 0
    %873 = vmatpush.bf16.msra.mxu0 0
    %874 = vmatpush.bf16.msra.mxu0 0
    %875 = vmatpush.bf16.msra.mxu0 0
    %876 = vmatpush.bf16.msra.mxu0 0
    %877 = vmatpush.bf16.msra.mxu0 %v859
    %878 = vmatpush.bf16.msra.mxu0 %v857
    %879 = vmatpush.bf16.msra.mxu0 %v855
    %880 = vmatmul.bf16.gmra.mxu0 %v864
    %v881 = vpop.f32.mrf.mxu0
    %v882 = vadd.f32 0.0, %v881
    %v883 = vpop.f32.mrf.mxu0
    %v884 = vadd.f32 0.0, %v883
    %885 = vmatmul.bf16.gmra.mxu0 %v867
    %v886 = vpop.f32.mrf.mxu0
    %v887 = vadd.f32 0.0, %v886
    %v888 = vpop.f32.mrf.mxu0
    %v889 = vadd.f32 0.0, %v888
    %890 = vmatmul.bf16.gmra.mxu0 %v870
    %v891 = vpop.f32.mrf.mxu0
    %v892 = vadd.f32 0.0, %v891
    %v893 = vpop.f32.mrf.mxu0
    %v894 = vadd.f32 0.0, %v893
    %895 = vdwg.mxu0
    %896 = vrot.lane.b32.xlu0 %v565, 96
    %v897 = vpop.permute.xlu0 %896
    %898 = vrot.lane.b32.xlu0 %v566, 96
    %v899 = vpop.permute.xlu0 %898
    %900 = vrot.lane.b32.xlu0 %v567, 96
    %v901 = vpop.permute.xlu0 %900
    %902 = vrot.lane.b32.xlu0 %v565, 32
    %v903 = vpop.permute.xlu0 %902
    %904 = vrot.lane.b32.xlu0 %v566, 32
    %v905 = vpop.permute.xlu0 %904
    %906 = vrot.lane.b32.xlu0 %v567, 32
    %v907 = vpop.permute.xlu0 %906
    %v909 = vsel %vm574, %v897, 0
    %v912 = vsel %vm574, %v899, 0
    %v915 = vsel %vm574, %v901, 0
    %v918 = vsel %vm574, %v903, 0
    %v921 = vsel %vm574, %v905, 0
    %v924 = vsel %vm574, %v907, 0
    %926 = vmatpush.bf16.xpose.msra.mxu0 0
    %927 = vmatpush.bf16.xpose.msra.mxu0 0
    %928 = vmatpush.bf16.xpose.msra.mxu0 0
    %929 = vmatpush.bf16.xpose.msra.mxu0 0
    %930 = vmatpush.bf16.xpose.msra.mxu0 0
    %931 = vmatpush.bf16.xpose.msra.mxu0 %v924
    %932 = vmatpush.bf16.xpose.msra.mxu0 %v921
    %933 = vmatpush.bf16.xpose.msra.mxu0 %v918
    %934 = vmatmul.bf16.gmra.mxu0 %v909
    %v935 = vpop.f32.mrf.mxu0
    %v936 = vadd.f32 %v54, %v935
    %v937 = vpop.f32.mrf.mxu0
    %v938 = vadd.f32 %v55, %v937
    %939 = vmatmul.bf16.gmra.mxu0 %v912
    %v940 = vpop.f32.mrf.mxu0
    %v941 = vadd.f32 %v56, %v940
    %v942 = vpop.f32.mrf.mxu0
    %v943 = vadd.f32 %v57, %v942
    %944 = vmatmul.bf16.gmra.mxu0 %v915
    %v945 = vpop.f32.mrf.mxu0
    %v946 = vadd.f32 %v58, %v945
    %v947 = vpop.f32.mrf.mxu0
    %v948 = vadd.f32 %v59, %v947
    %949 = vdwg.mxu0
    %v950 = vsel %vm99, %v936, -inf
    %951 = vmax.xlane.f32.xlu0 %v950
    %v952 = vpop.xlane.xlu0 %951
    %v953 = vsel %vm99, %v938, -inf
    %954 = vmax.xlane.f32.xlu0 %v953
    %v955 = vpop.xlane.xlu0 %954
    %v956 = vsel %vm99, %v941, -inf
    %957 = vmax.xlane.f32.xlu0 %v956
    %v958 = vpop.xlane.xlu0 %957
    %v959 = vsel %vm99, %v943, -inf
    %960 = vmax.xlane.f32.xlu0 %v959
    %v961 = vpop.xlane.xlu0 %960
    %v962 = vsel %vm99, %v946, -inf
    %963 = vmax.xlane.f32.xlu0 %v962
    %v964 = vpop.xlane.xlu0 %963
    %v965 = vsel %vm99, %v948, -inf
    %966 = vmax.xlane.f32.xlu0 %v965
    %v967 = vpop.xlane.xlu0 %966
    %v968 = vsub.f32 %v936, %v952
    %v969 = vsub.f32 %v938, %v955
    %v970 = vsub.f32 %v941, %v958
    %v971 = vsub.f32 %v943, %v961
    %v972 = vsub.f32 %v946, %v964
    %v973 = vsub.f32 %v948, %v967
    %v974 = vmul.f32 %v968, 1.442695
    %v975 = vpow.pop %v974
    %v976 = vmul.f32 %v969, 1.442695
    %v977 = vpow.pop %v976
    %v978 = vmul.f32 %v970, 1.442695
    %v979 = vpow.pop %v978
    %v980 = vmul.f32 %v971, 1.442695
    %v981 = vpow.pop %v980
    %v982 = vmul.f32 %v972, 1.442695
    %v983 = vpow.pop %v982
    %v984 = vmul.f32 %v973, 1.442695
    %v985 = vpow.pop %v984
    %v986 = vsel %vm99, %v975, 0.0
    %987 = vadd.xlane.f32.xlu0 %v986
    %v988 = vpop.xlane.xlu0 %987
    %v989 = vsel %vm99, %v977, 0.0
    %990 = vadd.xlane.f32.xlu0 %v989
    %v991 = vpop.xlane.xlu0 %990
    %v992 = vsel %vm99, %v979, 0.0
    %993 = vadd.xlane.f32.xlu0 %v992
    %v994 = vpop.xlane.xlu0 %993
    %v995 = vsel %vm99, %v981, 0.0
    %996 = vadd.xlane.f32.xlu0 %v995
    %v997 = vpop.xlane.xlu0 %996
    %v998 = vsel %vm99, %v983, 0.0
    %999 = vadd.xlane.f32.xlu0 %v998
    %v1000 = vpop.xlane.xlu0 %999
    %v1001 = vsel %vm99, %v985, 0.0
    %1002 = vadd.xlane.f32.xlu0 %v1001
    %v1003 = vpop.xlane.xlu0 %1002
    %v1004 = vrcp.pop %v988
    %v1005 = vrcp.pop %v991
    %v1006 = vrcp.pop %v994
    %v1007 = vrcp.pop %v997
    %v1008 = vrcp.pop %v1000
    %v1009 = vrcp.pop %v1003
    %v1010 = vmul.f32 %v975, %v1004
    %v1011 = vmul.f32 %v977, %v1005
    %v1012 = vmul.f32 %v979, %v1006
    %v1013 = vmul.f32 %v981, %v1007
    %v1014 = vmul.f32 %v983, %v1008
    %v1015 = vmul.f32 %v985, %v1009
    %v1016 = vpack.c.bf16 %v1011, %v1010
    %v1017 = vpack.c.bf16 %v1013, %v1012
    %v1018 = vpack.c.bf16 %v1015, %v1014
    %1019 = vrot.lane.b32.xlu0 %v692, 96
    %v1020 = vpop.permute.xlu0 %1019
    %1021 = vrot.lane.b32.xlu0 %v693, 96
    %v1022 = vpop.permute.xlu0 %1021
    %1023 = vrot.lane.b32.xlu0 %v694, 96
    %v1024 = vpop.permute.xlu0 %1023
    %v1029 = vsel %vm99, %v1016, 0
    %v1032 = vsel %vm99, %v1017, 0
    %v1035 = vsel %vm99, %v1018, 0
    %1037 = vmatpush.bf16.msra.mxu0 0
    %1038 = vmatpush.bf16.msra.mxu0 0
    %1039 = vmatpush.bf16.msra.mxu0 0
    %1040 = vmatpush.bf16.msra.mxu0 0
    %1041 = vmatpush.bf16.msra.mxu0 0
    %1042 = vmatpush.bf16.msra.mxu0 %v1024
    %1043 = vmatpush.bf16.msra.mxu0 %v1022
    %1044 = vmatpush.bf16.msra.mxu0 %v1020
    %1045 = vmatmul.bf16.gmra.mxu0 %v1029
    %v1046 = vpop.f32.mrf.mxu0
    %v1047 = vadd.f32 0.0, %v1046
    %v1048 = vpop.f32.mrf.mxu0
    %v1049 = vadd.f32 0.0, %v1048
    %1050 = vmatmul.bf16.gmra.mxu0 %v1032
    %v1051 = vpop.f32.mrf.mxu0
    %v1052 = vadd.f32 0.0, %v1051
    %v1053 = vpop.f32.mrf.mxu0
    %v1054 = vadd.f32 0.0, %v1053
    %1055 = vmatmul.bf16.gmra.mxu0 %v1035
    %v1056 = vpop.f32.mrf.mxu0
    %v1057 = vadd.f32 0.0, %v1056
    %v1058 = vpop.f32.mrf.mxu0
    %v1059 = vadd.f32 0.0, %v1058
    %1060 = vdwg.mxu0
    %1061 = vrot.lane.b32.xlu0 %v565, 80
    %v1062 = vpop.permute.xlu0 %1061
    %1063 = vrot.lane.b32.xlu0 %v566, 80
    %v1064 = vpop.permute.xlu0 %1063
    %1065 = vrot.lane.b32.xlu0 %v567, 80
    %v1066 = vpop.permute.xlu0 %1065
    %1067 = vrot.lane.b32.xlu0 %v565, 16
    %v1068 = vpop.permute.xlu0 %1067
    %1069 = vrot.lane.b32.xlu0 %v566, 16
    %v1070 = vpop.permute.xlu0 %1069
    %1071 = vrot.lane.b32.xlu0 %v567, 16
    %v1072 = vpop.permute.xlu0 %1071
    %v1074 = vsel %vm574, %v1062, 0
    %v1077 = vsel %vm574, %v1064, 0
    %v1080 = vsel %vm574, %v1066, 0
    %v1083 = vsel %vm574, %v1068, 0
    %v1086 = vsel %vm574, %v1070, 0
    %v1089 = vsel %vm574, %v1072, 0
    %1091 = vmatpush.bf16.xpose.msra.mxu0 0
    %1092 = vmatpush.bf16.xpose.msra.mxu0 0
    %1093 = vmatpush.bf16.xpose.msra.mxu0 0
    %1094 = vmatpush.bf16.xpose.msra.mxu0 0
    %1095 = vmatpush.bf16.xpose.msra.mxu0 0
    %1096 = vmatpush.bf16.xpose.msra.mxu0 %v1089
    %1097 = vmatpush.bf16.xpose.msra.mxu0 %v1086
    %1098 = vmatpush.bf16.xpose.msra.mxu0 %v1083
    %1099 = vmatmul.bf16.gmra.mxu0 %v1074
    %v1100 = vpop.f32.mrf.mxu0
    %v1101 = vadd.f32 %v54, %v1100
    %v1102 = vpop.f32.mrf.mxu0
    %v1103 = vadd.f32 %v55, %v1102
    %1104 = vmatmul.bf16.gmra.mxu0 %v1077
    %v1105 = vpop.f32.mrf.mxu0
    %v1106 = vadd.f32 %v56, %v1105
    %v1107 = vpop.f32.mrf.mxu0
    %v1108 = vadd.f32 %v57, %v1107
    %1109 = vmatmul.bf16.gmra.mxu0 %v1080
    %v1110 = vpop.f32.mrf.mxu0
    %v1111 = vadd.f32 %v58, %v1110
    %v1112 = vpop.f32.mrf.mxu0
    %v1113 = vadd.f32 %v59, %v1112
    %1114 = vdwg.mxu0
    %v1115 = vsel %vm99, %v1101, -inf
    %1116 = vmax.xlane.f32.xlu0 %v1115
    %v1117 = vpop.xlane.xlu0 %1116
    %v1118 = vsel %vm99, %v1103, -inf
    %1119 = vmax.xlane.f32.xlu0 %v1118
    %v1120 = vpop.xlane.xlu0 %1119
    %v1121 = vsel %vm99, %v1106, -inf
    %1122 = vmax.xlane.f32.xlu0 %v1121
    %v1123 = vpop.xlane.xlu0 %1122
    %v1124 = vsel %vm99, %v1108, -inf
    %1125 = vmax.xlane.f32.xlu0 %v1124
    %v1126 = vpop.xlane.xlu0 %1125
    %v1127 = vsel %vm99, %v1111, -inf
    %1128 = vmax.xlane.f32.xlu0 %v1127
    %v1129 = vpop.xlane.xlu0 %1128
    %v1130 = vsel %vm99, %v1113, -inf
    %1131 = vmax.xlane.f32.xlu0 %v1130
    %v1132 = vpop.xlane.xlu0 %1131
    %v1133 = vsub.f32 %v1101, %v1117
    %v1134 = vsub.f32 %v1103, %v1120
    %v1135 = vsub.f32 %v1106, %v1123
    %v1136 = vsub.f32 %v1108, %v1126
    %v1137 = vsub.f32 %v1111, %v1129
    %v1138 = vsub.f32 %v1113, %v1132
    %v1139 = vmul.f32 %v1133, 1.442695
    %v1140 = vpow.pop %v1139
    %v1141 = vmul.f32 %v1134, 1.442695
    %v1142 = vpow.pop %v1141
    %v1143 = vmul.f32 %v1135, 1.442695
    %v1144 = vpow.pop %v1143
    %v1145 = vmul.f32 %v1136, 1.442695
    %v1146 = vpow.pop %v1145
    %v1147 = vmul.f32 %v1137, 1.442695
    %v1148 = vpow.pop %v1147
    %v1149 = vmul.f32 %v1138, 1.442695
    %v1150 = vpow.pop %v1149
    %v1151 = vsel %vm99, %v1140, 0.0
    %1152 = vadd.xlane.f32.xlu0 %v1151
    %v1153 = vpop.xlane.xlu0 %1152
    %v1154 = vsel %vm99, %v1142, 0.0
    %1155 = vadd.xlane.f32.xlu0 %v1154
    %v1156 = vpop.xlane.xlu0 %1155
    %v1157 = vsel %vm99, %v1144, 0.0
    %1158 = vadd.xlane.f32.xlu0 %v1157
    %v1159 = vpop.xlane.xlu0 %1158
    %v1160 = vsel %vm99, %v1146, 0.0
    %1161 = vadd.xlane.f32.xlu0 %v1160
    %v1162 = vpop.xlane.xlu0 %1161
    %v1163 = vsel %vm99, %v1148, 0.0
    %1164 = vadd.xlane.f32.xlu0 %v1163
    %v1165 = vpop.xlane.xlu0 %1164
    %v1166 = vsel %vm99, %v1150, 0.0
    %1167 = vadd.xlane.f32.xlu0 %v1166
    %v1168 = vpop.xlane.xlu0 %1167
    %v1169 = vrcp.pop %v1153
    %v1170 = vrcp.pop %v1156
    %v1171 = vrcp.pop %v1159
    %v1172 = vrcp.pop %v1162
    %v1173 = vrcp.pop %v1165
    %v1174 = vrcp.pop %v1168
    %v1175 = vmul.f32 %v1140, %v1169
    %v1176 = vmul.f32 %v1142, %v1170
    %v1177 = vmul.f32 %v1144, %v1171
    %v1178 = vmul.f32 %v1146, %v1172
    %v1179 = vmul.f32 %v1148, %v1173
    %v1180 = vmul.f32 %v1150, %v1174
    %v1181 = vpack.c.bf16 %v1176, %v1175
    %v1182 = vpack.c.bf16 %v1178, %v1177
    %v1183 = vpack.c.bf16 %v1180, %v1179
    %1184 = vrot.lane.b32.xlu0 %v692, 80
    %v1185 = vpop.permute.xlu0 %1184
    %1186 = vrot.lane.b32.xlu0 %v693, 80
    %v1187 = vpop.permute.xlu0 %1186
    %1188 = vrot.lane.b32.xlu0 %v694, 80
    %v1189 = vpop.permute.xlu0 %1188
    %v1194 = vsel %vm99, %v1181, 0
    %v1197 = vsel %vm99, %v1182, 0
    %v1200 = vsel %vm99, %v1183, 0
    %1202 = vmatpush.bf16.msra.mxu0 0
    %1203 = vmatpush.bf16.msra.mxu0 0
    %1204 = vmatpush.bf16.msra.mxu0 0
    %1205 = vmatpush.bf16.msra.mxu0 0
    %1206 = vmatpush.bf16.msra.mxu0 0
    %1207 = vmatpush.bf16.msra.mxu0 %v1189
    %1208 = vmatpush.bf16.msra.mxu0 %v1187
    %1209 = vmatpush.bf16.msra.mxu0 %v1185
    %1210 = vmatmul.bf16.gmra.mxu0 %v1194
    %v1211 = vpop.f32.mrf.mxu0
    %v1212 = vadd.f32 0.0, %v1211
    %v1213 = vpop.f32.mrf.mxu0
    %v1214 = vadd.f32 0.0, %v1213
    %1215 = vmatmul.bf16.gmra.mxu0 %v1197
    %v1216 = vpop.f32.mrf.mxu0
    %v1217 = vadd.f32 0.0, %v1216
    %v1218 = vpop.f32.mrf.mxu0
    %v1219 = vadd.f32 0.0, %v1218
    %1220 = vmatmul.bf16.gmra.mxu0 %v1200
    %v1221 = vpop.f32.mrf.mxu0
    %v1222 = vadd.f32 0.0, %v1221
    %v1223 = vpop.f32.mrf.mxu0
    %v1224 = vadd.f32 0.0, %v1223
    %1225 = vdwg.mxu0
    %1232 = vrot.lane.b32.xlu0 %v882, 16
    %v1233 = vpop.permute.xlu0 %1232
    %1234 = vrot.lane.b32.xlu0 %v884, 16
    %v1235 = vpop.permute.xlu0 %1234
    %1236 = vrot.lane.b32.xlu0 %v887, 16
    %v1237 = vpop.permute.xlu0 %1236
    %1238 = vrot.lane.b32.xlu0 %v889, 16
    %v1239 = vpop.permute.xlu0 %1238
    %1240 = vrot.lane.b32.xlu0 %v892, 16
    %v1241 = vpop.permute.xlu0 %1240
    %1242 = vrot.lane.b32.xlu0 %v894, 16
    %v1243 = vpop.permute.xlu0 %1242
    %1256 = vrot.lane.b32.xlu0 %v1047, 32
    %v1257 = vpop.permute.xlu0 %1256
    %1258 = vrot.lane.b32.xlu0 %v1049, 32
    %v1259 = vpop.permute.xlu0 %1258
    %1260 = vrot.lane.b32.xlu0 %v1052, 32
    %v1261 = vpop.permute.xlu0 %1260
    %1262 = vrot.lane.b32.xlu0 %v1054, 32
    %v1263 = vpop.permute.xlu0 %1262
    %1264 = vrot.lane.b32.xlu0 %v1057, 32
    %v1265 = vpop.permute.xlu0 %1264
    %1266 = vrot.lane.b32.xlu0 %v1059, 32
    %v1267 = vpop.permute.xlu0 %1266
    %1280 = vrot.lane.b32.xlu0 %v1212, 48
    %v1281 = vpop.permute.xlu0 %1280
    %1282 = vrot.lane.b32.xlu0 %v1214, 48
    %v1283 = vpop.permute.xlu0 %1282
    %1284 = vrot.lane.b32.xlu0 %v1217, 48
    %v1285 = vpop.permute.xlu0 %1284
    %1286 = vrot.lane.b32.xlu0 %v1219, 48
    %v1287 = vpop.permute.xlu0 %1286
    %1288 = vrot.lane.b32.xlu0 %v1222, 48
    %v1289 = vpop.permute.xlu0 %1288
    %1290 = vrot.lane.b32.xlu0 %v1224, 48
    %v1291 = vpop.permute.xlu0 %1290
    %v1298 = vsel %vm574, %v717, %v1233
    %v1299 = vsel %vm574, %v719, %v1235
    %v1300 = vsel %vm574, %v722, %v1237
    %v1301 = vsel %vm574, %v724, %v1239
    %v1302 = vsel %vm574, %v727, %v1241
    %v1303 = vsel %vm574, %v729, %v1243
    %vm1304 = vcmask 261120
    %v1305 = vsel %vm1304, %v1298, %v1257
    %v1306 = vsel %vm1304, %v1299, %v1259
    %v1307 = vsel %vm1304, %v1300, %v1261
    %v1308 = vsel %vm1304, %v1301, %v1263
    %v1309 = vsel %vm1304, %v1302, %v1265
    %v1310 = vsel %vm1304, %v1303, %v1267
    %v1311 = vsel %vm99, %v1305, %v1281
    %v1312 = vsel %vm99, %v1306, %v1283
    %v1313 = vsel %vm99, %v1307, %v1285
    %v1314 = vsel %vm99, %v1308, %v1287
    %v1315 = vsel %vm99, %v1309, %v1289
    %v1316 = vsel %vm99, %v1310, %v1291
    %v1317 = vpack.c.bf16 %v1312, %v1311
    %v1318 = vpack.c.bf16 %v1314, %v1313
    %v1319 = vpack.c.bf16 %v1316, %v1315
    %v1320 = vld [vmem:[%s6] sm:$0xf]
    %v1321 = vld [vmem:[%s6 + $0x4] sm:$0xf]
    %v1322 = vld [vmem:[%s6 + $0x8] sm:$0xf]
    %v1323 = vld [vmem:[%s6 + $0xc] sm:$0xf]
    %v1324 = vld [vmem:[%s6 + $0x10] sm:$0xf]
    %v1325 = vld [vmem:[%s6 + $0x14] sm:$0xf]
    %v1326 = vld [vmem:[%s6 + $0x18] sm:$0xf]
    %v1327 = vld [vmem:[%s6 + $0x1c] sm:$0xf]
    %v1336 = vunpack.c.l.b16 %v1320
    %v1337 = vunpack.c.l.b16 %v1321
    %v1338 = vunpack.c.l.b16 %v1322
    %v1339 = vunpack.c.l.b16 %v1323
    %v1340 = vunpack.c.l.b16 %v1324
    %v1341 = vunpack.c.l.b16 %v1325
    %v1342 = vunpack.c.l.b16 %v1326
    %v1343 = vunpack.c.l.b16 %v1327
    %v1344 = vpack.c.b16 %v1337, %v1336
    %v1345 = vpack.c.b16 %v1339, %v1338
    %v1346 = vpack.c.b16 %v1341, %v1340
    %v1347 = vpack.c.b16 %v1343, %v1342
    %v1353 = vsel %vm133, %v1317, 0
    %v1356 = vsel %vm133, %v1318, 0
    %v1359 = vsel %vm133, %v1319, 0
    %1361 = vmatpush.bf16.msra.mxu0 0
    %1362 = vmatpush.bf16.msra.mxu0 0
    %1363 = vmatpush.bf16.msra.mxu0 0
    %1364 = vmatpush.bf16.msra.mxu0 0
    %1365 = vmatpush.bf16.msra.mxu0 %v1347
    %1366 = vmatpush.bf16.msra.mxu0 %v1346
    %1367 = vmatpush.bf16.msra.mxu0 %v1345
    %1368 = vmatpush.bf16.msra.mxu0 %v1344
    %1369 = vmatmul.bf16.gmra.mxu0 %v1353
    %v1370 = vpop.f32.mrf.mxu0
    %v1371 = vadd.f32 0.0, %v1370
    %v1372 = vpop.f32.mrf.mxu0
    %v1373 = vadd.f32 0.0, %v1372
    %1374 = vmatmul.bf16.gmra.mxu0 %v1356
    %v1375 = vpop.f32.mrf.mxu0
    %v1376 = vadd.f32 0.0, %v1375
    %v1377 = vpop.f32.mrf.mxu0
    %v1378 = vadd.f32 0.0, %v1377
    %1379 = vmatmul.bf16.gmra.mxu0 %v1359
    %v1380 = vpop.f32.mrf.mxu0
    %v1381 = vadd.f32 0.0, %v1380
    %v1382 = vpop.f32.mrf.mxu0
    %v1383 = vadd.f32 0.0, %v1382
    %1384 = vdwg.mxu0
    %v1385 = vadd.f32 %v281, %v1371
    %v1386 = vadd.f32 %v282, %v1373
    %v1387 = vadd.f32 %v283, %v1376
    %v1388 = vadd.f32 %v284, %v1378
    %v1389 = vadd.f32 %v285, %v1381
    %v1390 = vadd.f32 %v286, %v1383
    %v1391 = vperm.slane %v53, 0
    %v1392 = vadd.f32 %v1385, %v1391
    %v1393 = vadd.f32 %v1386, %v1391
    %v1394 = vadd.f32 %v1387, %v1391
    %v1395 = vadd.f32 %v1388, %v1391
    %v1396 = vadd.f32 %v1389, %v1391
    %v1397 = vadd.f32 %v1390, %v1391
    %v1398 = vsel %vm133, %v1392, 0.0
    %1399 = vadd.xlane.f32.xlu0 %v1398
    %v1400 = vpop.xlane.xlu0 %1399
    %v1401 = vsel %vm133, %v1393, 0.0
    %1402 = vadd.xlane.f32.xlu0 %v1401
    %v1403 = vpop.xlane.xlu0 %1402
    %v1404 = vsel %vm133, %v1394, 0.0
    %1405 = vadd.xlane.f32.xlu0 %v1404
    %v1406 = vpop.xlane.xlu0 %1405
    %v1407 = vsel %vm133, %v1395, 0.0
    %1408 = vadd.xlane.f32.xlu0 %v1407
    %v1409 = vpop.xlane.xlu0 %1408
    %v1410 = vsel %vm133, %v1396, 0.0
    %1411 = vadd.xlane.f32.xlu0 %v1410
    %v1412 = vpop.xlane.xlu0 %1411
    %v1413 = vsel %vm133, %v1397, 0.0
    %1414 = vadd.xlane.f32.xlu0 %v1413
    %v1415 = vpop.xlane.xlu0 %1414
    %v1416 = vmul.f32 %v1400, %v158
    %v1417 = vmul.f32 %v1403, %v158
    %v1418 = vmul.f32 %v1406, %v158
    %v1419 = vmul.f32 %v1409, %v158
    %v1420 = vmul.f32 %v1412, %v158
    %v1421 = vmul.f32 %v1415, %v158
    %v1422 = vsub.f32 %v1392, %v1416
    %v1423 = vsub.f32 %v1393, %v1417
    %v1424 = vsub.f32 %v1394, %v1418
    %v1425 = vsub.f32 %v1395, %v1419
    %v1426 = vsub.f32 %v1396, %v1420
    %v1427 = vsub.f32 %v1397, %v1421
    %v1428 = vmul.f32 %v1422, %v1422
    %v1429 = vmul.f32 %v1423, %v1423
    %v1430 = vmul.f32 %v1424, %v1424
    %v1431 = vmul.f32 %v1425, %v1425
    %v1432 = vmul.f32 %v1426, %v1426
    %v1433 = vmul.f32 %v1427, %v1427
    %v1434 = vsel %vm133, %v1428, 0.0
    %1435 = vadd.xlane.f32.xlu0 %v1434
    %v1436 = vpop.xlane.xlu0 %1435
    %v1437 = vsel %vm133, %v1429, 0.0
    %1438 = vadd.xlane.f32.xlu0 %v1437
    %v1439 = vpop.xlane.xlu0 %1438
    %v1440 = vsel %vm133, %v1430, 0.0
    %1441 = vadd.xlane.f32.xlu0 %v1440
    %v1442 = vpop.xlane.xlu0 %1441
    %v1443 = vsel %vm133, %v1431, 0.0
    %1444 = vadd.xlane.f32.xlu0 %v1443
    %v1445 = vpop.xlane.xlu0 %1444
    %v1446 = vsel %vm133, %v1432, 0.0
    %1447 = vadd.xlane.f32.xlu0 %v1446
    %v1448 = vpop.xlane.xlu0 %1447
    %v1449 = vsel %vm133, %v1433, 0.0
    %1450 = vadd.xlane.f32.xlu0 %v1449
    %v1451 = vpop.xlane.xlu0 %1450
    %v1452 = vmul.f32 %v1436, %v158
    %v1453 = vmul.f32 %v1439, %v158
    %v1454 = vmul.f32 %v1442, %v158
    %v1455 = vmul.f32 %v1445, %v158
    %v1456 = vmul.f32 %v1448, %v158
    %v1457 = vmul.f32 %v1451, %v158
    %v1458 = vadd.f32 %v1452, 1e-05
    %v1459 = vadd.f32 %v1453, 1e-05
    %v1460 = vadd.f32 %v1454, 1e-05
    %v1461 = vadd.f32 %v1455, 1e-05
    %v1462 = vadd.f32 %v1456, 1e-05
    %v1463 = vadd.f32 %v1457, 1e-05
    %v1464 = vrsqrt.pop %v1458
    %v1465 = vmul.f32 %v1464, %v1458
    %v1466 = vmul.f32 %v1465, %v1464
    %v1467 = vmul.f32 0.5, %v1466
    %v1468 = vsub.f32 1.5, %v1467
    %v1469 = vmul.f32 %v1464, %v1468
    %vm1470 = vweird.f32 %v1458
    %vm1471 = vweird.f32 %v1464
    %vm1472 = vmor %vm1470, %vm1471
    %v1473 = vsel %vm1472, %v1464, %v1469
    %v1474 = vrsqrt.pop %v1459
    %v1475 = vmul.f32 %v1474, %v1459
    %v1476 = vmul.f32 %v1475, %v1474
    %v1477 = vmul.f32 0.5, %v1476
    %v1478 = vsub.f32 1.5, %v1477
    %v1479 = vmul.f32 %v1474, %v1478
    %vm1480 = vweird.f32 %v1459
    %vm1481 = vweird.f32 %v1474
    %vm1482 = vmor %vm1480, %vm1481
    %v1483 = vsel %vm1482, %v1474, %v1479
    %v1484 = vrsqrt.pop %v1460
    %v1485 = vmul.f32 %v1484, %v1460
    %v1486 = vmul.f32 %v1485, %v1484
    %v1487 = vmul.f32 0.5, %v1486
    %v1488 = vsub.f32 1.5, %v1487
    %v1489 = vmul.f32 %v1484, %v1488
    %vm1490 = vweird.f32 %v1460
    %vm1491 = vweird.f32 %v1484
    %vm1492 = vmor %vm1490, %vm1491
    %v1493 = vsel %vm1492, %v1484, %v1489
    %v1494 = vrsqrt.pop %v1461
    %v1495 = vmul.f32 %v1494, %v1461
    %v1496 = vmul.f32 %v1495, %v1494
    %v1497 = vmul.f32 0.5, %v1496
    %v1498 = vsub.f32 1.5, %v1497
    %v1499 = vmul.f32 %v1494, %v1498
    %vm1500 = vweird.f32 %v1461
    %vm1501 = vweird.f32 %v1494
    %vm1502 = vmor %vm1500, %vm1501
    %v1503 = vsel %vm1502, %v1494, %v1499
    %v1504 = vrsqrt.pop %v1462
    %v1505 = vmul.f32 %v1504, %v1462
    %v1506 = vmul.f32 %v1505, %v1504
    %v1507 = vmul.f32 0.5, %v1506
    %v1508 = vsub.f32 1.5, %v1507
    %v1509 = vmul.f32 %v1504, %v1508
    %vm1510 = vweird.f32 %v1462
    %vm1511 = vweird.f32 %v1504
    %vm1512 = vmor %vm1510, %vm1511
    %v1513 = vsel %vm1512, %v1504, %v1509
    %v1514 = vrsqrt.pop %v1463
    %v1515 = vmul.f32 %v1514, %v1463
    %v1516 = vmul.f32 %v1515, %v1514
    %v1517 = vmul.f32 0.5, %v1516
    %v1518 = vsub.f32 1.5, %v1517
    %v1519 = vmul.f32 %v1514, %v1518
    %vm1520 = vweird.f32 %v1463
    %vm1521 = vweird.f32 %v1514
    %vm1522 = vmor %vm1520, %vm1521
    %v1523 = vsel %vm1522, %v1514, %v1519
    %v1524 = vmul.f32 %v1422, %v1473
    %v1525 = vmul.f32 %v1423, %v1483
    %v1526 = vmul.f32 %v1424, %v1493
    %v1527 = vmul.f32 %v1425, %v1503
    %v1528 = vmul.f32 %v1426, %v1513
    %v1529 = vmul.f32 %v1427, %v1523
    %v1530 = vperm.slane %v52, 6
    %v1531 = vmul.f32 %v1524, %v1530
    %v1532 = vmul.f32 %v1525, %v1530
    %v1533 = vmul.f32 %v1526, %v1530
    %v1534 = vmul.f32 %v1527, %v1530
    %v1535 = vmul.f32 %v1528, %v1530
    %v1536 = vmul.f32 %v1529, %v1530
    %v1537 = vperm.slane %v52, 7
    %v1538 = vadd.f32 %v1531, %v1537
    %v1539 = vadd.f32 %v1532, %v1537
    %v1540 = vadd.f32 %v1533, %v1537
    %v1541 = vadd.f32 %v1534, %v1537
    %v1542 = vadd.f32 %v1535, %v1537
    %v1543 = vadd.f32 %v1536, %v1537
    %v1544 = vld [vmem:[%s7] sm:$0xff]
    %v1545 = vld [vmem:[%s7 + $0x8] sm:$0xff]
    %v1546 = vld [vmem:[%s7 + $0x10] sm:$0xff]
    %v1547 = vld [vmem:[%s7 + $0x18] sm:$0xff]
    %v1548 = vld [vmem:[%s7 + $0x20] sm:$0xff]
    %v1549 = vld [vmem:[%s7 + $0x28] sm:$0xff]
    %v1550 = vld [vmem:[%s7 + $0x30] sm:$0xff]
    %v1551 = vld [vmem:[%s7 + $0x38] sm:$0xff]
    %v1552 = vpack.c.bf16 %v1539, %v1538
    %v1553 = vpack.c.bf16 %v1541, %v1540
    %v1554 = vpack.c.bf16 %v1543, %v1542
    %v1555 = vld [vmem:[%s8] ss:$2 sm:$0x3]
    %v1557 = vperm.slane %v1555, 0
    %v1558 = vperm.slane %v1555, 1
    %v1569 = vunpack.c.l.b16 %v1544
    %v1570 = vunpack.c.h.b16 %v1544
    %v1571 = vunpack.c.l.b16 %v1545
    %v1572 = vunpack.c.h.b16 %v1545
    %v1573 = vunpack.c.l.b16 %v1546
    %v1574 = vunpack.c.h.b16 %v1546
    %v1575 = vunpack.c.l.b16 %v1547
    %v1576 = vunpack.c.h.b16 %v1547
    %v1577 = vunpack.c.l.b16 %v1548
    %v1578 = vunpack.c.h.b16 %v1548
    %v1579 = vunpack.c.l.b16 %v1549
    %v1580 = vunpack.c.h.b16 %v1549
    %v1581 = vunpack.c.l.b16 %v1550
    %v1582 = vunpack.c.h.b16 %v1550
    %v1583 = vunpack.c.l.b16 %v1551
    %v1584 = vunpack.c.h.b16 %v1551
    %v1585 = vpack.c.b16 %v1571, %v1569
    %v1586 = vpack.c.b16 %v1572, %v1570
    %v1587 = vpack.c.b16 %v1575, %v1573
    %v1588 = vpack.c.b16 %v1576, %v1574
    %v1589 = vpack.c.b16 %v1579, %v1577
    %v1590 = vpack.c.b16 %v1580, %v1578
    %v1591 = vpack.c.b16 %v1583, %v1581
    %v1592 = vpack.c.b16 %v1584, %v1582
    %v1602 = vsel %vm133, %v1552, 0
    %v1605 = vsel %vm133, %v1553, 0
    %v1608 = vsel %vm133, %v1554, 0
    %1610 = vmatpush.bf16.msra.mxu0 0
    %1611 = vmatpush.bf16.msra.mxu0 0
    %1612 = vmatpush.bf16.msra.mxu0 0
    %1613 = vmatpush.bf16.msra.mxu0 0
    %1614 = vmatpush.bf16.msra.mxu0 %v1591
    %1615 = vmatpush.bf16.msra.mxu0 %v1589
    %1616 = vmatpush.bf16.msra.mxu0 %v1587
    %1617 = vmatpush.bf16.msra.mxu0 %v1585
    %1618 = vmatmul.bf16.gmra.mxu0 %v1602
    %v1619 = vpop.f32.mrf.mxu0
    %v1620 = vadd.f32 %v1557, %v1619
    %v1621 = vpop.f32.mrf.mxu0
    %v1622 = vadd.f32 %v1557, %v1621
    %1623 = vmatmul.bf16.gmra.mxu0 %v1605
    %v1624 = vpop.f32.mrf.mxu0
    %v1625 = vadd.f32 %v1557, %v1624
    %v1626 = vpop.f32.mrf.mxu0
    %v1627 = vadd.f32 %v1557, %v1626
    %1628 = vmatmul.bf16.gmra.mxu0 %v1608
    %v1629 = vpop.f32.mrf.mxu0
    %v1630 = vadd.f32 %v1557, %v1629
    %v1631 = vpop.f32.mrf.mxu0
    %v1632 = vadd.f32 %v1557, %v1631
    %1633 = vdwg.mxu0
    %1634 = vmatpush.bf16.msra.mxu0 0
    %1635 = vmatpush.bf16.msra.mxu0 0
    %1636 = vmatpush.bf16.msra.mxu0 0
    %1637 = vmatpush.bf16.msra.mxu0 0
    %1638 = vmatpush.bf16.msra.mxu0 %v1592
    %1639 = vmatpush.bf16.msra.mxu0 %v1590
    %1640 = vmatpush.bf16.msra.mxu0 %v1588
    %1641 = vmatpush.bf16.msra.mxu0 %v1586
    %1642 = vmatmul.bf16.gmra.mxu0 %v1602
    %v1643 = vpop.f32.mrf.mxu0
    %v1644 = vadd.f32 %v1558, %v1643
    %v1645 = vpop.f32.mrf.mxu0
    %v1646 = vadd.f32 %v1558, %v1645
    %1647 = vmatmul.bf16.gmra.mxu0 %v1605
    %v1648 = vpop.f32.mrf.mxu0
    %v1649 = vadd.f32 %v1558, %v1648
    %v1650 = vpop.f32.mrf.mxu0
    %v1651 = vadd.f32 %v1558, %v1650
    %1652 = vmatmul.bf16.gmra.mxu0 %v1608
    %v1653 = vpop.f32.mrf.mxu0
    %v1654 = vadd.f32 %v1558, %v1653
    %v1655 = vpop.f32.mrf.mxu0
    %v1656 = vadd.f32 %v1558, %v1655
    %1657 = vdwg.mxu0
    %v1658 = vmul.f32 %v1620, 1.702
    %v1659 = vmul.f32 %v1644, 1.702
    %v1660 = vmul.f32 %v1622, 1.702
    %v1661 = vmul.f32 %v1646, 1.702
    %v1662 = vmul.f32 %v1625, 1.702
    %v1663 = vmul.f32 %v1649, 1.702
    %v1664 = vmul.f32 %v1627, 1.702
    %v1665 = vmul.f32 %v1651, 1.702
    %v1666 = vmul.f32 %v1630, 1.702
    %v1667 = vmul.f32 %v1654, 1.702
    %v1668 = vmul.f32 %v1632, 1.702
    %v1669 = vmul.f32 %v1656, 1.702
    %v1670 = vxor.u32 %v1658, 2147483648
    %v1671 = vxor.u32 %v1659, 2147483648
    %v1672 = vxor.u32 %v1660, 2147483648
    %v1673 = vxor.u32 %v1661, 2147483648
    %v1674 = vxor.u32 %v1662, 2147483648
    %v1675 = vxor.u32 %v1663, 2147483648
    %v1676 = vxor.u32 %v1664, 2147483648
    %v1677 = vxor.u32 %v1665, 2147483648
    %v1678 = vxor.u32 %v1666, 2147483648
    %v1679 = vxor.u32 %v1667, 2147483648
    %v1680 = vxor.u32 %v1668, 2147483648
    %v1681 = vxor.u32 %v1669, 2147483648
    %v1682 = vmul.f32 %v1670, 1.442695
    %v1683 = vpow.pop %v1682
    %v1684 = vmul.f32 %v1671, 1.442695
    %v1685 = vpow.pop %v1684
    %v1686 = vmul.f32 %v1672, 1.442695
    %v1687 = vpow.pop %v1686
    %v1688 = vmul.f32 %v1673, 1.442695
    %v1689 = vpow.pop %v1688
    %v1690 = vmul.f32 %v1674, 1.442695
    %v1691 = vpow.pop %v1690
    %v1692 = vmul.f32 %v1675, 1.442695
    %v1693 = vpow.pop %v1692
    %v1694 = vmul.f32 %v1676, 1.442695
    %v1695 = vpow.pop %v1694
    %v1696 = vmul.f32 %v1677, 1.442695
    %v1697 = vpow.pop %v1696
    %v1698 = vmul.f32 %v1678, 1.442695
    %v1699 = vpow.pop %v1698
    %v1700 = vmul.f32 %v1679, 1.442695
    %v1701 = vpow.pop %v1700
    %v1702 = vmul.f32 %v1680, 1.442695
    %v1703 = vpow.pop %v1702
    %v1704 = vmul.f32 %v1681, 1.442695
    %v1705 = vpow.pop %v1704
    %v1706 = vadd.f32 %v1683, 1.0
    %v1707 = vadd.f32 %v1685, 1.0
    %v1708 = vadd.f32 %v1687, 1.0
    %v1709 = vadd.f32 %v1689, 1.0
    %v1710 = vadd.f32 %v1691, 1.0
    %v1711 = vadd.f32 %v1693, 1.0
    %v1712 = vadd.f32 %v1695, 1.0
    %v1713 = vadd.f32 %v1697, 1.0
    %v1714 = vadd.f32 %v1699, 1.0
    %v1715 = vadd.f32 %v1701, 1.0
    %v1716 = vadd.f32 %v1703, 1.0
    %v1717 = vadd.f32 %v1705, 1.0
    %v1718 = vrcp.pop %v1706
    %v1719 = vmul.f32 %v1706, %v1718
    %v1720 = vsub.f32 1.0, %v1719
    %v1721 = vmul.f32 %v1718, %v1720
    %v1722 = vadd.f32 %v1718, %v1721
    %vm1723 = vweird.f32 %v1706
    %vm1724 = vweird.f32 %v1718
    %vm1725 = vmor %vm1723, %vm1724
    %v1726 = vsel %vm1725, %v1718, %v1722
    %v1727 = vand.u32 2147483647, %v1706
    %vm1728 = vcmp.eq.f32.partialorder %v1727, 8.507059e+37
    %v1729 = vand.u32 %v1706, 2147483648
    %v1730 = vor.u32 1.1754944e-38, %v1729
    %v1731 = vsel %vm1728, %v1730, %v1726
    %v1732 = vmul.f32 1.0, %v1731
    %v1733 = vrcp.pop %v1707
    %v1734 = vmul.f32 %v1707, %v1733
    %v1735 = vsub.f32 1.0, %v1734
    %v1736 = vmul.f32 %v1733, %v1735
    %v1737 = vadd.f32 %v1733, %v1736
    %vm1738 = vweird.f32 %v1707
    %vm1739 = vweird.f32 %v1733
    %vm1740 = vmor %vm1738, %vm1739
    %v1741 = vsel %vm1740, %v1733, %v1737
    %v1742 = vand.u32 2147483647, %v1707
    %vm1743 = vcmp.eq.f32.partialorder %v1742, 8.507059e+37
    %v1744 = vand.u32 %v1707, 2147483648
    %v1745 = vor.u32 1.1754944e-38, %v1744
    %v1746 = vsel %vm1743, %v1745, %v1741
    %v1747 = vmul.f32 1.0, %v1746
    %v1748 = vrcp.pop %v1708
    %v1749 = vmul.f32 %v1708, %v1748
    %v1750 = vsub.f32 1.0, %v1749
    %v1751 = vmul.f32 %v1748, %v1750
    %v1752 = vadd.f32 %v1748, %v1751
    %vm1753 = vweird.f32 %v1708
    %vm1754 = vweird.f32 %v1748
    %vm1755 = vmor %vm1753, %vm1754
    %v1756 = vsel %vm1755, %v1748, %v1752
    %v1757 = vand.u32 2147483647, %v1708
    %vm1758 = vcmp.eq.f32.partialorder %v1757, 8.507059e+37
    %v1759 = vand.u32 %v1708, 2147483648
    %v1760 = vor.u32 1.1754944e-38, %v1759
    %v1761 = vsel %vm1758, %v1760, %v1756
    %v1762 = vmul.f32 1.0, %v1761
    %v1763 = vrcp.pop %v1709
    %v1764 = vmul.f32 %v1709, %v1763
    %v1765 = vsub.f32 1.0, %v1764
    %v1766 = vmul.f32 %v1763, %v1765
    %v1767 = vadd.f32 %v1763, %v1766
    %vm1768 = vweird.f32 %v1709
    %vm1769 = vweird.f32 %v1763
    %vm1770 = vmor %vm1768, %vm1769
    %v1771 = vsel %vm1770, %v1763, %v1767
    %v1772 = vand.u32 2147483647, %v1709
    %vm1773 = vcmp.eq.f32.partialorder %v1772, 8.507059e+37
    %v1774 = vand.u32 %v1709, 2147483648
    %v1775 = vor.u32 1.1754944e-38, %v1774
    %v1776 = vsel %vm1773, %v1775, %v1771
    %v1777 = vmul.f32 1.0, %v1776
    %v1778 = vrcp.pop %v1710
    %v1779 = vmul.f32 %v1710, %v1778
    %v1780 = vsub.f32 1.0, %v1779
    %v1781 = vmul.f32 %v1778, %v1780
    %v1782 = vadd.f32 %v1778, %v1781
    %vm1783 = vweird.f32 %v1710
    %vm1784 = vweird.f32 %v1778
    %vm1785 = vmor %vm1783, %vm1784
    %v1786 = vsel %vm1785, %v1778, %v1782
    %v1787 = vand.u32 2147483647, %v1710
    %vm1788 = vcmp.eq.f32.partialorder %v1787, 8.507059e+37
    %v1789 = vand.u32 %v1710, 2147483648
    %v1790 = vor.u32 1.1754944e-38, %v1789
    %v1791 = vsel %vm1788, %v1790, %v1786
    %v1792 = vmul.f32 1.0, %v1791
    %v1793 = vrcp.pop %v1711
    %v1794 = vmul.f32 %v1711, %v1793
    %v1795 = vsub.f32 1.0, %v1794
    %v1796 = vmul.f32 %v1793, %v1795
    %v1797 = vadd.f32 %v1793, %v1796
    %vm1798 = vweird.f32 %v1711
    %vm1799 = vweird.f32 %v1793
    %vm1800 = vmor %vm1798, %vm1799
    %v1801 = vsel %vm1800, %v1793, %v1797
    %v1802 = vand.u32 2147483647, %v1711
    %vm1803 = vcmp.eq.f32.partialorder %v1802, 8.507059e+37
    %v1804 = vand.u32 %v1711, 2147483648
    %v1805 = vor.u32 1.1754944e-38, %v1804
    %v1806 = vsel %vm1803, %v1805, %v1801
    %v1807 = vmul.f32 1.0, %v1806
    %v1808 = vrcp.pop %v1712
    %v1809 = vmul.f32 %v1712, %v1808
    %v1810 = vsub.f32 1.0, %v1809
    %v1811 = vmul.f32 %v1808, %v1810
    %v1812 = vadd.f32 %v1808, %v1811
    %vm1813 = vweird.f32 %v1712
    %vm1814 = vweird.f32 %v1808
    %vm1815 = vmor %vm1813, %vm1814
    %v1816 = vsel %vm1815, %v1808, %v1812
    %v1817 = vand.u32 2147483647, %v1712
    %vm1818 = vcmp.eq.f32.partialorder %v1817, 8.507059e+37
    %v1819 = vand.u32 %v1712, 2147483648
    %v1820 = vor.u32 1.1754944e-38, %v1819
    %v1821 = vsel %vm1818, %v1820, %v1816
    %v1822 = vmul.f32 1.0, %v1821
    %v1823 = vrcp.pop %v1713
    %v1824 = vmul.f32 %v1713, %v1823
    %v1825 = vsub.f32 1.0, %v1824
    %v1826 = vmul.f32 %v1823, %v1825
    %v1827 = vadd.f32 %v1823, %v1826
    %vm1828 = vweird.f32 %v1713
    %vm1829 = vweird.f32 %v1823
    %vm1830 = vmor %vm1828, %vm1829
    %v1831 = vsel %vm1830, %v1823, %v1827
    %v1832 = vand.u32 2147483647, %v1713
    %vm1833 = vcmp.eq.f32.partialorder %v1832, 8.507059e+37
    %v1834 = vand.u32 %v1713, 2147483648
    %v1835 = vor.u32 1.1754944e-38, %v1834
    %v1836 = vsel %vm1833, %v1835, %v1831
    %v1837 = vmul.f32 1.0, %v1836
    %v1838 = vrcp.pop %v1714
    %v1839 = vmul.f32 %v1714, %v1838
    %v1840 = vsub.f32 1.0, %v1839
    %v1841 = vmul.f32 %v1838, %v1840
    %v1842 = vadd.f32 %v1838, %v1841
    %vm1843 = vweird.f32 %v1714
    %vm1844 = vweird.f32 %v1838
    %vm1845 = vmor %vm1843, %vm1844
    %v1846 = vsel %vm1845, %v1838, %v1842
    %v1847 = vand.u32 2147483647, %v1714
    %vm1848 = vcmp.eq.f32.partialorder %v1847, 8.507059e+37
    %v1849 = vand.u32 %v1714, 2147483648
    %v1850 = vor.u32 1.1754944e-38, %v1849
    %v1851 = vsel %vm1848, %v1850, %v1846
    %v1852 = vmul.f32 1.0, %v1851
    %v1853 = vrcp.pop %v1715
    %v1854 = vmul.f32 %v1715, %v1853
    %v1855 = vsub.f32 1.0, %v1854
    %v1856 = vmul.f32 %v1853, %v1855
    %v1857 = vadd.f32 %v1853, %v1856
    %vm1858 = vweird.f32 %v1715
    %vm1859 = vweird.f32 %v1853
    %vm1860 = vmor %vm1858, %vm1859
    %v1861 = vsel %vm1860, %v1853, %v1857
    %v1862 = vand.u32 2147483647, %v1715
    %vm1863 = vcmp.eq.f32.partialorder %v1862, 8.507059e+37
    %v1864 = vand.u32 %v1715, 2147483648
    %v1865 = vor.u32 1.1754944e-38, %v1864
    %v1866 = vsel %vm1863, %v1865, %v1861
    %v1867 = vmul.f32 1.0, %v1866
    %v1868 = vrcp.pop %v1716
    %v1869 = vmul.f32 %v1716, %v1868
    %v1870 = vsub.f32 1.0, %v1869
    %v1871 = vmul.f32 %v1868, %v1870
    %v1872 = vadd.f32 %v1868, %v1871
    %vm1873 = vweird.f32 %v1716
    %vm1874 = vweird.f32 %v1868
    %vm1875 = vmor %vm1873, %vm1874
    %v1876 = vsel %vm1875, %v1868, %v1872
    %v1877 = vand.u32 2147483647, %v1716
    %vm1878 = vcmp.eq.f32.partialorder %v1877, 8.507059e+37
    %v1879 = vand.u32 %v1716, 2147483648
    %v1880 = vor.u32 1.1754944e-38, %v1879
    %v1881 = vsel %vm1878, %v1880, %v1876
    %v1882 = vmul.f32 1.0, %v1881
    %v1883 = vrcp.pop %v1717
    %v1884 = vmul.f32 %v1717, %v1883
    %v1885 = vsub.f32 1.0, %v1884
    %v1886 = vmul.f32 %v1883, %v1885
    %v1887 = vadd.f32 %v1883, %v1886
    %vm1888 = vweird.f32 %v1717
    %vm1889 = vweird.f32 %v1883
    %vm1890 = vmor %vm1888, %vm1889
    %v1891 = vsel %vm1890, %v1883, %v1887
    %v1892 = vand.u32 2147483647, %v1717
    %vm1893 = vcmp.eq.f32.partialorder %v1892, 8.507059e+37
    %v1894 = vand.u32 %v1717, 2147483648
    %v1895 = vor.u32 1.1754944e-38, %v1894
    %v1896 = vsel %vm1893, %v1895, %v1891
    %v1897 = vmul.f32 1.0, %v1896
    %v1898 = vmul.f32 %v1620, %v1732
    %v1899 = vmul.f32 %v1644, %v1747
    %v1900 = vmul.f32 %v1622, %v1762
    %v1901 = vmul.f32 %v1646, %v1777
    %v1902 = vmul.f32 %v1625, %v1792
    %v1903 = vmul.f32 %v1649, %v1807
    %v1904 = vmul.f32 %v1627, %v1822
    %v1905 = vmul.f32 %v1651, %v1837
    %v1906 = vmul.f32 %v1630, %v1852
    %v1907 = vmul.f32 %v1654, %v1867
    %v1908 = vmul.f32 %v1632, %v1882
    %v1909 = vmul.f32 %v1656, %v1897
    %v1910 = vld [vmem:[%s9] sm:$0xf]
    %v1911 = vld [vmem:[%s9 + $0x4] sm:$0xf]
    %v1912 = vld [vmem:[%s9 + $0x8] sm:$0xf]
    %v1913 = vld [vmem:[%s9 + $0xc] sm:$0xf]
    %v1914 = vld [vmem:[%s9 + $0x10] sm:$0xf]
    %v1915 = vld [vmem:[%s9 + $0x14] sm:$0xf]
    %v1916 = vld [vmem:[%s9 + $0x18] sm:$0xf]
    %v1917 = vld [vmem:[%s9 + $0x1c] sm:$0xf]
    %v1918 = vld [vmem:[%s9 + $0x20] sm:$0xf]
    %v1919 = vld [vmem:[%s9 + $0x24] sm:$0xf]
    %v1920 = vld [vmem:[%s9 + $0x28] sm:$0xf]
    %v1921 = vld [vmem:[%s9 + $0x2c] sm:$0xf]
    %v1922 = vld [vmem:[%s9 + $0x30] sm:$0xf]
    %v1923 = vld [vmem:[%s9 + $0x34] sm:$0xf]
    %v1924 = vld [vmem:[%s9 + $0x38] sm:$0xf]
    %v1925 = vld [vmem:[%s9 + $0x3c] sm:$0xf]
    %v1926 = vld [vmem:[%s9 + $0x40] sm:$0xf]
    %v1927 = vld [vmem:[%s9 + $0x44] sm:$0xf]
    %v1928 = vld [vmem:[%s9 + $0x48] sm:$0xf]
    %v1929 = vld [vmem:[%s9 + $0x4c] sm:$0xf]
    %v1930 = vld [vmem:[%s9 + $0x50] sm:$0xf]
    %v1931 = vld [vmem:[%s9 + $0x54] sm:$0xf]
    %v1932 = vld [vmem:[%s9 + $0x58] sm:$0xf]
    %v1933 = vld [vmem:[%s9 + $0x5c] sm:$0xf]
    %v1934 = vld [vmem:[%s9 + $0x60] sm:$0xf]
    %v1935 = vld [vmem:[%s9 + $0x64] sm:$0xf]
    %v1936 = vld [vmem:[%s9 + $0x68] sm:$0xf]
    %v1937 = vld [vmem:[%s9 + $0x6c] sm:$0xf]
    %v1938 = vld [vmem:[%s9 + $0x70] sm:$0xf]
    %v1939 = vld [vmem:[%s9 + $0x74] sm:$0xf]
    %v1940 = vld [vmem:[%s9 + $0x78] sm:$0xf]
    %v1941 = vld [vmem:[%s9 + $0x7c] sm:$0xf]
    %v1942 = vpack.c.bf16 %v1900, %v1898
    %v1943 = vpack.c.bf16 %v1901, %v1899
    %v1944 = vpack.c.bf16 %v1904, %v1902
    %v1945 = vpack.c.bf16 %v1905, %v1903
    %v1946 = vpack.c.bf16 %v1908, %v1906
    %v1947 = vpack.c.bf16 %v1909, %v1907
    %v1980 = vunpack.c.l.b16 %v1910
    %v1981 = vunpack.c.l.b16 %v1911
    %v1982 = vunpack.c.l.b16 %v1912
    %v1983 = vunpack.c.l.b16 %v1913
    %v1984 = vunpack.c.l.b16 %v1914
    %v1985 = vunpack.c.l.b16 %v1915
    %v1986 = vunpack.c.l.b16 %v1916
    %v1987 = vunpack.c.l.b16 %v1917
    %v1988 = vunpack.c.l.b16 %v1918
    %v1989 = vunpack.c.l.b16 %v1919
    %v1990 = vunpack.c.l.b16 %v1920
    %v1991 = vunpack.c.l.b16 %v1921
    %v1992 = vunpack.c.l.b16 %v1922
    %v1993 = vunpack.c.l.b16 %v1923
    %v1994 = vunpack.c.l.b16 %v1924
    %v1995 = vunpack.c.l.b16 %v1925
    %v1996 = vunpack.c.l.b16 %v1926
    %v1997 = vunpack.c.l.b16 %v1927
    %v1998 = vunpack.c.l.b16 %v1928
    %v1999 = vunpack.c.l.b16 %v1929
    %v2000 = vunpack.c.l.b16 %v1930
    %v2001 = vunpack.c.l.b16 %v1931
    %v2002 = vunpack.c.l.b16 %v1932
    %v2003 = vunpack.c.l.b16 %v1933
    %v2004 = vunpack.c.l.b16 %v1934
    %v2005 = vunpack.c.l.b16 %v1935
    %v2006 = vunpack.c.l.b16 %v1936
    %v2007 = vunpack.c.l.b16 %v1937
    %v2008 = vunpack.c.l.b16 %v1938
    %v2009 = vunpack.c.l.b16 %v1939
    %v2010 = vunpack.c.l.b16 %v1940
    %v2011 = vunpack.c.l.b16 %v1941
    %v2012 = vpack.c.b16 %v1981, %v1980
    %v2013 = vpack.c.b16 %v1983, %v1982
    %v2014 = vpack.c.b16 %v1985, %v1984
    %v2015 = vpack.c.b16 %v1987, %v1986
    %v2016 = vpack.c.b16 %v1989, %v1988
    %v2017 = vpack.c.b16 %v1991, %v1990
    %v2018 = vpack.c.b16 %v1993, %v1992
    %v2019 = vpack.c.b16 %v1995, %v1994
    %v2020 = vpack.c.b16 %v1997, %v1996
    %v2021 = vpack.c.b16 %v1999, %v1998
    %v2022 = vpack.c.b16 %v2001, %v2000
    %v2023 = vpack.c.b16 %v2003, %v2002
    %v2024 = vpack.c.b16 %v2005, %v2004
    %v2025 = vpack.c.b16 %v2007, %v2006
    %v2026 = vpack.c.b16 %v2009, %v2008
    %v2027 = vpack.c.b16 %v2011, %v2010
    %2044 = vmatpush.bf16.msra.mxu0 %v2019
    %2045 = vmatpush.bf16.msra.mxu0 %v2018
    %2046 = vmatpush.bf16.msra.mxu0 %v2017
    %2047 = vmatpush.bf16.msra.mxu0 %v2016
    %2048 = vmatpush.bf16.msra.mxu0 %v2015
    %2049 = vmatpush.bf16.msra.mxu0 %v2014
    %2050 = vmatpush.bf16.msra.mxu0 %v2013
    %2051 = vmatpush.bf16.msra.mxu0 %v2012
    %2052 = vmatmul.bf16.gmra.mxu0 %v1942
    %v2053 = vpop.f32.mrf.mxu0
    %v2054 = vadd.f32 0.0, %v2053
    %v2055 = vpop.f32.mrf.mxu0
    %v2056 = vadd.f32 0.0, %v2055
    %2057 = vmatmul.bf16.gmra.mxu0 %v1944
    %v2058 = vpop.f32.mrf.mxu0
    %v2059 = vadd.f32 0.0, %v2058
    %v2060 = vpop.f32.mrf.mxu0
    %v2061 = vadd.f32 0.0, %v2060
    %2062 = vmatmul.bf16.gmra.mxu0 %v1946
    %v2063 = vpop.f32.mrf.mxu0
    %v2064 = vadd.f32 0.0, %v2063
    %v2065 = vpop.f32.mrf.mxu0
    %v2066 = vadd.f32 0.0, %v2065
    %2067 = vdwg.mxu0
    %2068 = vmatpush.bf16.msra.mxu0 %v2027
    %2069 = vmatpush.bf16.msra.mxu0 %v2026
    %2070 = vmatpush.bf16.msra.mxu0 %v2025
    %2071 = vmatpush.bf16.msra.mxu0 %v2024
    %2072 = vmatpush.bf16.msra.mxu0 %v2023
    %2073 = vmatpush.bf16.msra.mxu0 %v2022
    %2074 = vmatpush.bf16.msra.mxu0 %v2021
    %2075 = vmatpush.bf16.msra.mxu0 %v2020
    %2076 = vmatmul.bf16.gmra.mxu0 %v1943
    %v2077 = vpop.f32.mrf.mxu0
    %v2078 = vadd.f32 %v2054, %v2077
    %v2079 = vpop.f32.mrf.mxu0
    %v2080 = vadd.f32 %v2056, %v2079
    %2081 = vmatmul.bf16.gmra.mxu0 %v1945
    %v2082 = vpop.f32.mrf.mxu0
    %v2083 = vadd.f32 %v2059, %v2082
    %v2084 = vpop.f32.mrf.mxu0
    %v2085 = vadd.f32 %v2061, %v2084
    %2086 = vmatmul.bf16.gmra.mxu0 %v1947
    %v2087 = vpop.f32.mrf.mxu0
    %v2088 = vadd.f32 %v2064, %v2087
    %v2089 = vpop.f32.mrf.mxu0
    %v2090 = vadd.f32 %v2066, %v2089
    %2091 = vdwg.mxu0
    %v2092 = vadd.f32 %v1392, %v2078
    %v2093 = vadd.f32 %v1393, %v2080
    %v2094 = vadd.f32 %v1394, %v2083
    %v2095 = vadd.f32 %v1395, %v2085
    %v2096 = vadd.f32 %v1396, %v2088
    %v2097 = vadd.f32 %v1397, %v2090
    %v2098 = vperm.slane %v53, 1
    %v2099 = vadd.f32 %v2092, %v2098
    %v2100 = vadd.f32 %v2093, %v2098
    %v2101 = vadd.f32 %v2094, %v2098
    %v2102 = vadd.f32 %v2095, %v2098
    %v2103 = vadd.f32 %v2096, %v2098
    %v2104 = vadd.f32 %v2097, %v2098
    %v2105 = vsel %vm133, %v2099, 0.0
    %2106 = vadd.xlane.f32.xlu0 %v2105
    %v2107 = vpop.xlane.xlu0 %2106
    %v2108 = vsel %vm133, %v2100, 0.0
    %2109 = vadd.xlane.f32.xlu0 %v2108
    %v2110 = vpop.xlane.xlu0 %2109
    %v2111 = vsel %vm133, %v2101, 0.0
    %2112 = vadd.xlane.f32.xlu0 %v2111
    %v2113 = vpop.xlane.xlu0 %2112
    %v2114 = vsel %vm133, %v2102, 0.0
    %2115 = vadd.xlane.f32.xlu0 %v2114
    %v2116 = vpop.xlane.xlu0 %2115
    %v2117 = vsel %vm133, %v2103, 0.0
    %2118 = vadd.xlane.f32.xlu0 %v2117
    %v2119 = vpop.xlane.xlu0 %2118
    %v2120 = vsel %vm133, %v2104, 0.0
    %2121 = vadd.xlane.f32.xlu0 %v2120
    %v2122 = vpop.xlane.xlu0 %2121
    %v2123 = vmul.f32 %v2107, %v158
    %v2124 = vmul.f32 %v2110, %v158
    %v2125 = vmul.f32 %v2113, %v158
    %v2126 = vmul.f32 %v2116, %v158
    %v2127 = vmul.f32 %v2119, %v158
    %v2128 = vmul.f32 %v2122, %v158
    %v2129 = vsub.f32 %v2099, %v2123
    %v2130 = vsub.f32 %v2100, %v2124
    %v2131 = vsub.f32 %v2101, %v2125
    %v2132 = vsub.f32 %v2102, %v2126
    %v2133 = vsub.f32 %v2103, %v2127
    %v2134 = vsub.f32 %v2104, %v2128
    %v2135 = vmul.f32 %v2129, %v2129
    %v2136 = vmul.f32 %v2130, %v2130
    %v2137 = vmul.f32 %v2131, %v2131
    %v2138 = vmul.f32 %v2132, %v2132
    %v2139 = vmul.f32 %v2133, %v2133
    %v2140 = vmul.f32 %v2134, %v2134
    %v2141 = vsel %vm133, %v2135, 0.0
    %2142 = vadd.xlane.f32.xlu0 %v2141
    %v2143 = vpop.xlane.xlu0 %2142
    %v2144 = vsel %vm133, %v2136, 0.0
    %2145 = vadd.xlane.f32.xlu0 %v2144
    %v2146 = vpop.xlane.xlu0 %2145
    %v2147 = vsel %vm133, %v2137, 0.0
    %2148 = vadd.xlane.f32.xlu0 %v2147
    %v2149 = vpop.xlane.xlu0 %2148
    %v2150 = vsel %vm133, %v2138, 0.0
    %2151 = vadd.xlane.f32.xlu0 %v2150
    %v2152 = vpop.xlane.xlu0 %2151
    %v2153 = vsel %vm133, %v2139, 0.0
    %2154 = vadd.xlane.f32.xlu0 %v2153
    %v2155 = vpop.xlane.xlu0 %2154
    %v2156 = vsel %vm133, %v2140, 0.0
    %2157 = vadd.xlane.f32.xlu0 %v2156
    %v2158 = vpop.xlane.xlu0 %2157
    %v2159 = vmul.f32 %v2143, %v158
    %v2160 = vmul.f32 %v2146, %v158
    %v2161 = vmul.f32 %v2149, %v158
    %v2162 = vmul.f32 %v2152, %v158
    %v2163 = vmul.f32 %v2155, %v158
    %v2164 = vmul.f32 %v2158, %v158
    %v2165 = vadd.f32 %v2159, 1e-05
    %v2166 = vadd.f32 %v2160, 1e-05
    %v2167 = vadd.f32 %v2161, 1e-05
    %v2168 = vadd.f32 %v2162, 1e-05
    %v2169 = vadd.f32 %v2163, 1e-05
    %v2170 = vadd.f32 %v2164, 1e-05
    %v2171 = vrsqrt.pop %v2165
    %v2172 = vmul.f32 %v2171, %v2165
    %v2173 = vmul.f32 %v2172, %v2171
    %v2174 = vmul.f32 0.5, %v2173
    %v2175 = vsub.f32 1.5, %v2174
    %v2176 = vmul.f32 %v2171, %v2175
    %vm2177 = vweird.f32 %v2165
    %vm2178 = vweird.f32 %v2171
    %vm2179 = vmor %vm2177, %vm2178
    %v2180 = vsel %vm2179, %v2171, %v2176
    %v2181 = vrsqrt.pop %v2166
    %v2182 = vmul.f32 %v2181, %v2166
    %v2183 = vmul.f32 %v2182, %v2181
    %v2184 = vmul.f32 0.5, %v2183
    %v2185 = vsub.f32 1.5, %v2184
    %v2186 = vmul.f32 %v2181, %v2185
    %vm2187 = vweird.f32 %v2166
    %vm2188 = vweird.f32 %v2181
    %vm2189 = vmor %vm2187, %vm2188
    %v2190 = vsel %vm2189, %v2181, %v2186
    %v2191 = vrsqrt.pop %v2167
    %v2192 = vmul.f32 %v2191, %v2167
    %v2193 = vmul.f32 %v2192, %v2191
    %v2194 = vmul.f32 0.5, %v2193
    %v2195 = vsub.f32 1.5, %v2194
    %v2196 = vmul.f32 %v2191, %v2195
    %vm2197 = vweird.f32 %v2167
    %vm2198 = vweird.f32 %v2191
    %vm2199 = vmor %vm2197, %vm2198
    %v2200 = vsel %vm2199, %v2191, %v2196
    %v2201 = vrsqrt.pop %v2168
    %v2202 = vmul.f32 %v2201, %v2168
    %v2203 = vmul.f32 %v2202, %v2201
    %v2204 = vmul.f32 0.5, %v2203
    %v2205 = vsub.f32 1.5, %v2204
    %v2206 = vmul.f32 %v2201, %v2205
    %vm2207 = vweird.f32 %v2168
    %vm2208 = vweird.f32 %v2201
    %vm2209 = vmor %vm2207, %vm2208
    %v2210 = vsel %vm2209, %v2201, %v2206
    %v2211 = vrsqrt.pop %v2169
    %v2212 = vmul.f32 %v2211, %v2169
    %v2213 = vmul.f32 %v2212, %v2211
    %v2214 = vmul.f32 0.5, %v2213
    %v2215 = vsub.f32 1.5, %v2214
    %v2216 = vmul.f32 %v2211, %v2215
    %vm2217 = vweird.f32 %v2169
    %vm2218 = vweird.f32 %v2211
    %vm2219 = vmor %vm2217, %vm2218
    %v2220 = vsel %vm2219, %v2211, %v2216
    %v2221 = vrsqrt.pop %v2170
    %v2222 = vmul.f32 %v2221, %v2170
    %v2223 = vmul.f32 %v2222, %v2221
    %v2224 = vmul.f32 0.5, %v2223
    %v2225 = vsub.f32 1.5, %v2224
    %v2226 = vmul.f32 %v2221, %v2225
    %vm2227 = vweird.f32 %v2170
    %vm2228 = vweird.f32 %v2221
    %vm2229 = vmor %vm2227, %vm2228
    %v2230 = vsel %vm2229, %v2221, %v2226
    %v2231 = vmul.f32 %v2129, %v2180
    %v2232 = vmul.f32 %v2130, %v2190
    %v2233 = vmul.f32 %v2131, %v2200
    %v2234 = vmul.f32 %v2132, %v2210
    %v2235 = vmul.f32 %v2133, %v2220
    %v2236 = vmul.f32 %v2134, %v2230
    %v2237 = vperm.slane %v53, 2
    %v2238 = vmul.f32 %v2231, %v2237
    %v2239 = vmul.f32 %v2232, %v2237
    %v2240 = vmul.f32 %v2233, %v2237
    %v2241 = vmul.f32 %v2234, %v2237
    %v2242 = vmul.f32 %v2235, %v2237
    %v2243 = vmul.f32 %v2236, %v2237
    %v2244 = vperm.slane %v53, 3
    %v2245 = vadd.f32 %v2238, %v2244
    %v2246 = vadd.f32 %v2239, %v2244
    %v2247 = vadd.f32 %v2240, %v2244
    %v2248 = vadd.f32 %v2241, %v2244
    %v2249 = vadd.f32 %v2242, %v2244
    %v2250 = vadd.f32 %v2243, %v2244
    %s2251 = scalar_lea.vmem %s4, 64
    %v2252 = vld [vmem:[%s2251] sm:$0xff]
    %v2253 = vld [vmem:[%s2251 + $0x8] sm:$0xff]
    %v2254 = vld [vmem:[%s2251 + $0x10] sm:$0xff]
    %v2255 = vld [vmem:[%s2251 + $0x18] sm:$0xff]
    %v2256 = vld [vmem:[%s2251 + $0x20] sm:$0xff]
    %v2257 = vld [vmem:[%s2251 + $0x28] sm:$0xff]
    %v2258 = vld [vmem:[%s2251 + $0x30] sm:$0xff]
    %v2259 = vld [vmem:[%s2251 + $0x38] sm:$0xff]
    %v2260 = vpack.c.bf16 %v2246, %v2245
    %v2261 = vpack.c.bf16 %v2248, %v2247
    %v2262 = vpack.c.bf16 %v2250, %v2249
    %s2263 = scalar_lea.vmem %s5, 1
    %v2264 = vld [vmem:[%s2263] ss:$2 sm:$0x3]
    %v2266 = vperm.slane %v2264, 0
    %v2267 = vperm.slane %v2264, 1
    %v2278 = vunpack.c.l.b16 %v2252
    %v2279 = vunpack.c.h.b16 %v2252
    %v2280 = vunpack.c.l.b16 %v2253
    %v2281 = vunpack.c.h.b16 %v2253
    %v2282 = vunpack.c.l.b16 %v2254
    %v2283 = vunpack.c.h.b16 %v2254
    %v2284 = vunpack.c.l.b16 %v2255
    %v2285 = vunpack.c.h.b16 %v2255
    %v2286 = vunpack.c.l.b16 %v2256
    %v2287 = vunpack.c.h.b16 %v2256
    %v2288 = vunpack.c.l.b16 %v2257
    %v2289 = vunpack.c.h.b16 %v2257
    %v2290 = vunpack.c.l.b16 %v2258
    %v2291 = vunpack.c.h.b16 %v2258
    %v2292 = vunpack.c.l.b16 %v2259
    %v2293 = vunpack.c.h.b16 %v2259
    %v2294 = vpack.c.b16 %v2280, %v2278
    %v2295 = vpack.c.b16 %v2281, %v2279
    %v2296 = vpack.c.b16 %v2284, %v2282
    %v2297 = vpack.c.b16 %v2285, %v2283
    %v2298 = vpack.c.b16 %v2288, %v2286
    %v2299 = vpack.c.b16 %v2289, %v2287
    %v2300 = vpack.c.b16 %v2292, %v2290
    %v2301 = vpack.c.b16 %v2293, %v2291
    %v2311 = vsel %vm133, %v2260, 0
    %v2314 = vsel %vm133, %v2261, 0
    %v2317 = vsel %vm133, %v2262, 0
    %2319 = vmatpush.bf16.msra.mxu0 0
    %2320 = vmatpush.bf16.msra.mxu0 0
    %2321 = vmatpush.bf16.msra.mxu0 0
    %2322 = vmatpush.bf16.msra.mxu0 0
    %2323 = vmatpush.bf16.msra.mxu0 %v2300
    %2324 = vmatpush.bf16.msra.mxu0 %v2298
    %2325 = vmatpush.bf16.msra.mxu0 %v2296
    %2326 = vmatpush.bf16.msra.mxu0 %v2294
    %2327 = vmatmul.bf16.gmra.mxu0 %v2311
    %v2328 = vpop.f32.mrf.mxu0
    %v2329 = vadd.f32 %v2266, %v2328
    %v2330 = vpop.f32.mrf.mxu0
    %v2331 = vadd.f32 %v2266, %v2330
    %2332 = vmatmul.bf16.gmra.mxu0 %v2314
    %v2333 = vpop.f32.mrf.mxu0
    %v2334 = vadd.f32 %v2266, %v2333
    %v2335 = vpop.f32.mrf.mxu0
    %v2336 = vadd.f32 %v2266, %v2335
    %2337 = vmatmul.bf16.gmra.mxu0 %v2317
    %v2338 = vpop.f32.mrf.mxu0
    %v2339 = vadd.f32 %v2266, %v2338
    %v2340 = vpop.f32.mrf.mxu0
    %v2341 = vadd.f32 %v2266, %v2340
    %2342 = vdwg.mxu0
    %2343 = vmatpush.bf16.msra.mxu0 0
    %2344 = vmatpush.bf16.msra.mxu0 0
    %2345 = vmatpush.bf16.msra.mxu0 0
    %2346 = vmatpush.bf16.msra.mxu0 0
    %2347 = vmatpush.bf16.msra.mxu0 %v2301
    %2348 = vmatpush.bf16.msra.mxu0 %v2299
    %2349 = vmatpush.bf16.msra.mxu0 %v2297
    %2350 = vmatpush.bf16.msra.mxu0 %v2295
    %2351 = vmatmul.bf16.gmra.mxu0 %v2311
    %v2352 = vpop.f32.mrf.mxu0
    %v2353 = vadd.f32 %v2267, %v2352
    %v2354 = vpop.f32.mrf.mxu0
    %v2355 = vadd.f32 %v2267, %v2354
    %2356 = vmatmul.bf16.gmra.mxu0 %v2314
    %v2357 = vpop.f32.mrf.mxu0
    %v2358 = vadd.f32 %v2267, %v2357
    %v2359 = vpop.f32.mrf.mxu0
    %v2360 = vadd.f32 %v2267, %v2359
    %2361 = vmatmul.bf16.gmra.mxu0 %v2317
    %v2362 = vpop.f32.mrf.mxu0
    %v2363 = vadd.f32 %v2267, %v2362
    %v2364 = vpop.f32.mrf.mxu0
    %v2365 = vadd.f32 %v2267, %v2364
    %2366 = vdwg.mxu0
    %v2367 = vpack.c.bf16 %v2353, %v2329
    %v2368 = vpack.c.bf16 %v2355, %v2331
    %v2369 = vpack.c.bf16 %v2358, %v2334
    %v2370 = vpack.c.bf16 %v2360, %v2336
    %v2371 = vpack.c.bf16 %v2363, %v2339
    %v2372 = vpack.c.bf16 %v2365, %v2341
    %v2379 = vunpack.c.l.b16 %v2367
    %v2380 = vunpack.c.l.b16 %v2368
    %v2381 = vunpack.c.l.b16 %v2369
    %v2382 = vunpack.c.l.b16 %v2370
    %v2383 = vunpack.c.l.b16 %v2371
    %v2384 = vunpack.c.l.b16 %v2372
    %v2385 = vpack.c.b16 %v2380, %v2379
    %v2386 = vpack.c.b16 %v2382, %v2381
    %v2387 = vpack.c.b16 %v2384, %v2383
    %2388 = vrot.lane.b32.xlu0 %v2385, 64
    %v2389 = vpop.permute.xlu0 %2388
    %2390 = vrot.lane.b32.xlu0 %v2386, 64
    %v2391 = vpop.permute.xlu0 %2390
    %2392 = vrot.lane.b32.xlu0 %v2387, 64
    %v2393 = vpop.permute.xlu0 %2392
    %v2395 = vsel %vm574, %v2385, 0
    %v2398 = vsel %vm574, %v2386, 0
    %v2401 = vsel %vm574, %v2387, 0
    %v2404 = vsel %vm574, %v2389, 0
    %v2407 = vsel %vm574, %v2391, 0
    %v2410 = vsel %vm574, %v2393, 0
    %2412 = vmatpush.bf16.xpose.msra.mxu0 0
    %2413 = vmatpush.bf16.xpose.msra.mxu0 0
    %2414 = vmatpush.bf16.xpose.msra.mxu0 0
    %2415 = vmatpush.bf16.xpose.msra.mxu0 0
    %2416 = vmatpush.bf16.xpose.msra.mxu0 0
    %2417 = vmatpush.bf16.xpose.msra.mxu0 %v2410
    %2418 = vmatpush.bf16.xpose.msra.mxu0 %v2407
    %2419 = vmatpush.bf16.xpose.msra.mxu0 %v2404
    %2420 = vmatmul.bf16.gmra.mxu0 %v2395
    %v2421 = vpop.f32.mrf.mxu0
    %v2422 = vadd.f32 %v54, %v2421
    %v2423 = vpop.f32.mrf.mxu0
    %v2424 = vadd.f32 %v55, %v2423
    %2425 = vmatmul.bf16.gmra.mxu0 %v2398
    %v2426 = vpop.f32.mrf.mxu0
    %v2427 = vadd.f32 %v56, %v2426
    %v2428 = vpop.f32.mrf.mxu0
    %v2429 = vadd.f32 %v57, %v2428
    %2430 = vmatmul.bf16.gmra.mxu0 %v2401
    %v2431 = vpop.f32.mrf.mxu0
    %v2432 = vadd.f32 %v58, %v2431
    %v2433 = vpop.f32.mrf.mxu0
    %v2434 = vadd.f32 %v59, %v2433
    %2435 = vdwg.mxu0
    %v2436 = vsel %vm99, %v2422, -inf
    %2437 = vmax.xlane.f32.xlu0 %v2436
    %v2438 = vpop.xlane.xlu0 %2437
    %v2439 = vsel %vm99, %v2424, -inf
    %2440 = vmax.xlane.f32.xlu0 %v2439
    %v2441 = vpop.xlane.xlu0 %2440
    %v2442 = vsel %vm99, %v2427, -inf
    %2443 = vmax.xlane.f32.xlu0 %v2442
    %v2444 = vpop.xlane.xlu0 %2443
    %v2445 = vsel %vm99, %v2429, -inf
    %2446 = vmax.xlane.f32.xlu0 %v2445
    %v2447 = vpop.xlane.xlu0 %2446
    %v2448 = vsel %vm99, %v2432, -inf
    %2449 = vmax.xlane.f32.xlu0 %v2448
    %v2450 = vpop.xlane.xlu0 %2449
    %v2451 = vsel %vm99, %v2434, -inf
    %2452 = vmax.xlane.f32.xlu0 %v2451
    %v2453 = vpop.xlane.xlu0 %2452
    %v2454 = vsub.f32 %v2422, %v2438
    %v2455 = vsub.f32 %v2424, %v2441
    %v2456 = vsub.f32 %v2427, %v2444
    %v2457 = vsub.f32 %v2429, %v2447
    %v2458 = vsub.f32 %v2432, %v2450
    %v2459 = vsub.f32 %v2434, %v2453
    %v2460 = vmul.f32 %v2454, 1.442695
    %v2461 = vpow.pop %v2460
    %v2462 = vmul.f32 %v2455, 1.442695
    %v2463 = vpow.pop %v2462
    %v2464 = vmul.f32 %v2456, 1.442695
    %v2465 = vpow.pop %v2464
    %v2466 = vmul.f32 %v2457, 1.442695
    %v2467 = vpow.pop %v2466
    %v2468 = vmul.f32 %v2458, 1.442695
    %v2469 = vpow.pop %v2468
    %v2470 = vmul.f32 %v2459, 1.442695
    %v2471 = vpow.pop %v2470
    %v2472 = vsel %vm99, %v2461, 0.0
    %2473 = vadd.xlane.f32.xlu0 %v2472
    %v2474 = vpop.xlane.xlu0 %2473
    %v2475 = vsel %vm99, %v2463, 0.0
    %2476 = vadd.xlane.f32.xlu0 %v2475
    %v2477 = vpop.xlane.xlu0 %2476
    %v2478 = vsel %vm99, %v2465, 0.0
    %2479 = vadd.xlane.f32.xlu0 %v2478
    %v2480 = vpop.xlane.xlu0 %2479
    %v2481 = vsel %vm99, %v2467, 0.0
    %2482 = vadd.xlane.f32.xlu0 %v2481
    %v2483 = vpop.xlane.xlu0 %2482
    %v2484 = vsel %vm99, %v2469, 0.0
    %2485 = vadd.xlane.f32.xlu0 %v2484
    %v2486 = vpop.xlane.xlu0 %2485
    %v2487 = vsel %vm99, %v2471, 0.0
    %2488 = vadd.xlane.f32.xlu0 %v2487
    %v2489 = vpop.xlane.xlu0 %2488
    %v2490 = vrcp.pop %v2474
    %v2491 = vrcp.pop %v2477
    %v2492 = vrcp.pop %v2480
    %v2493 = vrcp.pop %v2483
    %v2494 = vrcp.pop %v2486
    %v2495 = vrcp.pop %v2489
    %v2496 = vmul.f32 %v2461, %v2490
    %v2497 = vmul.f32 %v2463, %v2491
    %v2498 = vmul.f32 %v2465, %v2492
    %v2499 = vmul.f32 %v2467, %v2493
    %v2500 = vmul.f32 %v2469, %v2494
    %v2501 = vmul.f32 %v2471, %v2495
    %v2502 = vpack.c.bf16 %v2497, %v2496
    %v2503 = vpack.c.bf16 %v2499, %v2498
    %v2504 = vpack.c.bf16 %v2501, %v2500
    %v2505 = vunpack.c.h.b16 %v2367
    %v2506 = vunpack.c.h.b16 %v2368
    %v2507 = vunpack.c.h.b16 %v2369
    %v2508 = vunpack.c.h.b16 %v2370
    %v2509 = vunpack.c.h.b16 %v2371
    %v2510 = vunpack.c.h.b16 %v2372
    %v2511 = vpack.c.b16 %v2506, %v2505
    %v2512 = vpack.c.b16 %v2508, %v2507
    %v2513 = vpack.c.b16 %v2510, %v2509
    %v2518 = vsel %vm99, %v2502, 0
    %v2521 = vsel %vm99, %v2503, 0
    %v2524 = vsel %vm99, %v2504, 0
    %2526 = vmatpush.bf16.msra.mxu0 0
    %2527 = vmatpush.bf16.msra.mxu0 0
    %2528 = vmatpush.bf16.msra.mxu0 0
    %2529 = vmatpush.bf16.msra.mxu0 0
    %2530 = vmatpush.bf16.msra.mxu0 0
    %2531 = vmatpush.bf16.msra.mxu0 %v2513
    %2532 = vmatpush.bf16.msra.mxu0 %v2512
    %2533 = vmatpush.bf16.msra.mxu0 %v2511
    %2534 = vmatmul.bf16.gmra.mxu0 %v2518
    %v2535 = vpop.f32.mrf.mxu0
    %v2536 = vadd.f32 0.0, %v2535
    %v2537 = vpop.f32.mrf.mxu0
    %v2538 = vadd.f32 0.0, %v2537
    %2539 = vmatmul.bf16.gmra.mxu0 %v2521
    %v2540 = vpop.f32.mrf.mxu0
    %v2541 = vadd.f32 0.0, %v2540
    %v2542 = vpop.f32.mrf.mxu0
    %v2543 = vadd.f32 0.0, %v2542
    %2544 = vmatmul.bf16.gmra.mxu0 %v2524
    %v2545 = vpop.f32.mrf.mxu0
    %v2546 = vadd.f32 0.0, %v2545
    %v2547 = vpop.f32.mrf.mxu0
    %v2548 = vadd.f32 0.0, %v2547
    %2549 = vdwg.mxu0
    %2550 = vrot.lane.b32.xlu0 %v2385, 112
    %v2551 = vpop.permute.xlu0 %2550
    %2552 = vrot.lane.b32.xlu0 %v2386, 112
    %v2553 = vpop.permute.xlu0 %2552
    %2554 = vrot.lane.b32.xlu0 %v2387, 112
    %v2555 = vpop.permute.xlu0 %2554
    %2556 = vrot.lane.b32.xlu0 %v2385, 48
    %v2557 = vpop.permute.xlu0 %2556
    %2558 = vrot.lane.b32.xlu0 %v2386, 48
    %v2559 = vpop.permute.xlu0 %2558
    %2560 = vrot.lane.b32.xlu0 %v2387, 48
    %v2561 = vpop.permute.xlu0 %2560
    %v2563 = vsel %vm574, %v2551, 0
    %v2566 = vsel %vm574, %v2553, 0
    %v2569 = vsel %vm574, %v2555, 0
    %v2572 = vsel %vm574, %v2557, 0
    %v2575 = vsel %vm574, %v2559, 0
    %v2578 = vsel %vm574, %v2561, 0
    %2580 = vmatpush.bf16.xpose.msra.mxu0 0
    %2581 = vmatpush.bf16.xpose.msra.mxu0 0
    %2582 = vmatpush.bf16.xpose.msra.mxu0 0
    %2583 = vmatpush.bf16.xpose.msra.mxu0 0
    %2584 = vmatpush.bf16.xpose.msra.mxu0 0
    %2585 = vmatpush.bf16.xpose.msra.mxu0 %v2578
    %2586 = vmatpush.bf16.xpose.msra.mxu0 %v2575
    %2587 = vmatpush.bf16.xpose.msra.mxu0 %v2572
    %2588 = vmatmul.bf16.gmra.mxu0 %v2563
    %v2589 = vpop.f32.mrf.mxu0
    %v2590 = vadd.f32 %v54, %v2589
    %v2591 = vpop.f32.mrf.mxu0
    %v2592 = vadd.f32 %v55, %v2591
    %2593 = vmatmul.bf16.gmra.mxu0 %v2566
    %v2594 = vpop.f32.mrf.mxu0
    %v2595 = vadd.f32 %v56, %v2594
    %v2596 = vpop.f32.mrf.mxu0
    %v2597 = vadd.f32 %v57, %v2596
    %2598 = vmatmul.bf16.gmra.mxu0 %v2569
    %v2599 = vpop.f32.mrf.mxu0
    %v2600 = vadd.f32 %v58, %v2599
    %v2601 = vpop.f32.mrf.mxu0
    %v2602 = vadd.f32 %v59, %v2601
    %2603 = vdwg.mxu0
    %v2604 = vsel %vm99, %v2590, -inf
    %2605 = vmax.xlane.f32.xlu0 %v2604
    %v2606 = vpop.xlane.xlu0 %2605
    %v2607 = vsel %vm99, %v2592, -inf
    %2608 = vmax.xlane.f32.xlu0 %v2607
    %v2609 = vpop.xlane.xlu0 %2608
    %v2610 = vsel %vm99, %v2595, -inf
    %2611 = vmax.xlane.f32.xlu0 %v2610
    %v2612 = vpop.xlane.xlu0 %2611
    %v2613 = vsel %vm99, %v2597, -inf
    %2614 = vmax.xlane.f32.xlu0 %v2613
    %v2615 = vpop.xlane.xlu0 %2614
    %v2616 = vsel %vm99, %v2600, -inf
    %2617 = vmax.xlane.f32.xlu0 %v2616
    %v2618 = vpop.xlane.xlu0 %2617
    %v2619 = vsel %vm99, %v2602, -inf
    %2620 = vmax.xlane.f32.xlu0 %v2619
    %v2621 = vpop.xlane.xlu0 %2620
    %v2622 = vsub.f32 %v2590, %v2606
    %v2623 = vsub.f32 %v2592, %v2609
    %v2624 = vsub.f32 %v2595, %v2612
    %v2625 = vsub.f32 %v2597, %v2615
    %v2626 = vsub.f32 %v2600, %v2618
    %v2627 = vsub.f32 %v2602, %v2621
    %v2628 = vmul.f32 %v2622, 1.442695
    %v2629 = vpow.pop %v2628
    %v2630 = vmul.f32 %v2623, 1.442695
    %v2631 = vpow.pop %v2630
    %v2632 = vmul.f32 %v2624, 1.442695
    %v2633 = vpow.pop %v2632
    %v2634 = vmul.f32 %v2625, 1.442695
    %v2635 = vpow.pop %v2634
    %v2636 = vmul.f32 %v2626, 1.442695
    %v2637 = vpow.pop %v2636
    %v2638 = vmul.f32 %v2627, 1.442695
    %v2639 = vpow.pop %v2638
    %v2640 = vsel %vm99, %v2629, 0.0
    %2641 = vadd.xlane.f32.xlu0 %v2640
    %v2642 = vpop.xlane.xlu0 %2641
    %v2643 = vsel %vm99, %v2631, 0.0
    %2644 = vadd.xlane.f32.xlu0 %v2643
    %v2645 = vpop.xlane.xlu0 %2644
    %v2646 = vsel %vm99, %v2633, 0.0
    %2647 = vadd.xlane.f32.xlu0 %v2646
    %v2648 = vpop.xlane.xlu0 %2647
    %v2649 = vsel %vm99, %v2635, 0.0
    %2650 = vadd.xlane.f32.xlu0 %v2649
    %v2651 = vpop.xlane.xlu0 %2650
    %v2652 = vsel %vm99, %v2637, 0.0
    %2653 = vadd.xlane.f32.xlu0 %v2652
    %v2654 = vpop.xlane.xlu0 %2653
    %v2655 = vsel %vm99, %v2639, 0.0
    %2656 = vadd.xlane.f32.xlu0 %v2655
    %v2657 = vpop.xlane.xlu0 %2656
    %v2658 = vrcp.pop %v2642
    %v2659 = vrcp.pop %v2645
    %v2660 = vrcp.pop %v2648
    %v2661 = vrcp.pop %v2651
    %v2662 = vrcp.pop %v2654
    %v2663 = vrcp.pop %v2657
    %v2664 = vmul.f32 %v2629, %v2658
    %v2665 = vmul.f32 %v2631, %v2659
    %v2666 = vmul.f32 %v2633, %v2660
    %v2667 = vmul.f32 %v2635, %v2661
    %v2668 = vmul.f32 %v2637, %v2662
    %v2669 = vmul.f32 %v2639, %v2663
    %v2670 = vpack.c.bf16 %v2665, %v2664
    %v2671 = vpack.c.bf16 %v2667, %v2666
    %v2672 = vpack.c.bf16 %v2669, %v2668
    %2673 = vrot.lane.b32.xlu0 %v2511, 112
    %v2674 = vpop.permute.xlu0 %2673
    %2675 = vrot.lane.b32.xlu0 %v2512, 112
    %v2676 = vpop.permute.xlu0 %2675
    %2677 = vrot.lane.b32.xlu0 %v2513, 112
    %v2678 = vpop.permute.xlu0 %2677
    %v2683 = vsel %vm99, %v2670, 0
    %v2686 = vsel %vm99, %v2671, 0
    %v2689 = vsel %vm99, %v2672, 0
    %2691 = vmatpush.bf16.msra.mxu0 0
    %2692 = vmatpush.bf16.msra.mxu0 0
    %2693 = vmatpush.bf16.msra.mxu0 0
    %2694 = vmatpush.bf16.msra.mxu0 0
    %2695 = vmatpush.bf16.msra.mxu0 0
    %2696 = vmatpush.bf16.msra.mxu0 %v2678
    %2697 = vmatpush.bf16.msra.mxu0 %v2676
    %2698 = vmatpush.bf16.msra.mxu0 %v2674
    %2699 = vmatmul.bf16.gmra.mxu0 %v2683
    %v2700 = vpop.f32.mrf.mxu0
    %v2701 = vadd.f32 0.0, %v2700
    %v2702 = vpop.f32.mrf.mxu0
    %v2703 = vadd.f32 0.0, %v2702
    %2704 = vmatmul.bf16.gmra.mxu0 %v2686
    %v2705 = vpop.f32.mrf.mxu0
    %v2706 = vadd.f32 0.0, %v2705
    %v2707 = vpop.f32.mrf.mxu0
    %v2708 = vadd.f32 0.0, %v2707
    %2709 = vmatmul.bf16.gmra.mxu0 %v2689
    %v2710 = vpop.f32.mrf.mxu0
    %v2711 = vadd.f32 0.0, %v2710
    %v2712 = vpop.f32.mrf.mxu0
    %v2713 = vadd.f32 0.0, %v2712
    %2714 = vdwg.mxu0
    %2715 = vrot.lane.b32.xlu0 %v2385, 96
    %v2716 = vpop.permute.xlu0 %2715
    %2717 = vrot.lane.b32.xlu0 %v2386, 96
    %v2718 = vpop.permute.xlu0 %2717
    %2719 = vrot.lane.b32.xlu0 %v2387, 96
    %v2720 = vpop.permute.xlu0 %2719
    %2721 = vrot.lane.b32.xlu0 %v2385, 32
    %v2722 = vpop.permute.xlu0 %2721
    %2723 = vrot.lane.b32.xlu0 %v2386, 32
    %v2724 = vpop.permute.xlu0 %2723
    %2725 = vrot.lane.b32.xlu0 %v2387, 32
    %v2726 = vpop.permute.xlu0 %2725
    %v2728 = vsel %vm574, %v2716, 0
    %v2731 = vsel %vm574, %v2718, 0
    %v2734 = vsel %vm574, %v2720, 0
    %v2737 = vsel %vm574, %v2722, 0
    %v2740 = vsel %vm574, %v2724, 0
    %v2743 = vsel %vm574, %v2726, 0
    %2745 = vmatpush.bf16.xpose.msra.mxu0 0
    %2746 = vmatpush.bf16.xpose.msra.mxu0 0
    %2747 = vmatpush.bf16.xpose.msra.mxu0 0
    %2748 = vmatpush.bf16.xpose.msra.mxu0 0
    %2749 = vmatpush.bf16.xpose.msra.mxu0 0
    %2750 = vmatpush.bf16.xpose.msra.mxu0 %v2743
    %2751 = vmatpush.bf16.xpose.msra.mxu0 %v2740
    %2752 = vmatpush.bf16.xpose.msra.mxu0 %v2737
    %2753 = vmatmul.bf16.gmra.mxu0 %v2728
    %v2754 = vpop.f32.mrf.mxu0
    %v2755 = vadd.f32 %v54, %v2754
    %v2756 = vpop.f32.mrf.mxu0
    %v2757 = vadd.f32 %v55, %v2756
    %2758 = vmatmul.bf16.gmra.mxu0 %v2731
    %v2759 = vpop.f32.mrf.mxu0
    %v2760 = vadd.f32 %v56, %v2759
    %v2761 = vpop.f32.mrf.mxu0
    %v2762 = vadd.f32 %v57, %v2761
    %2763 = vmatmul.bf16.gmra.mxu0 %v2734
    %v2764 = vpop.f32.mrf.mxu0
    %v2765 = vadd.f32 %v58, %v2764
    %v2766 = vpop.f32.mrf.mxu0
    %v2767 = vadd.f32 %v59, %v2766
    %2768 = vdwg.mxu0
    %v2769 = vsel %vm99, %v2755, -inf
    %2770 = vmax.xlane.f32.xlu0 %v2769
    %v2771 = vpop.xlane.xlu0 %2770
    %v2772 = vsel %vm99, %v2757, -inf
    %2773 = vmax.xlane.f32.xlu0 %v2772
    %v2774 = vpop.xlane.xlu0 %2773
    %v2775 = vsel %vm99, %v2760, -inf
    %2776 = vmax.xlane.f32.xlu0 %v2775
    %v2777 = vpop.xlane.xlu0 %2776
    %v2778 = vsel %vm99, %v2762, -inf
    %2779 = vmax.xlane.f32.xlu0 %v2778
    %v2780 = vpop.xlane.xlu0 %2779
    %v2781 = vsel %vm99, %v2765, -inf
    %2782 = vmax.xlane.f32.xlu0 %v2781
    %v2783 = vpop.xlane.xlu0 %2782
    %v2784 = vsel %vm99, %v2767, -inf
    %2785 = vmax.xlane.f32.xlu0 %v2784
    %v2786 = vpop.xlane.xlu0 %2785
    %v2787 = vsub.f32 %v2755, %v2771
    %v2788 = vsub.f32 %v2757, %v2774
    %v2789 = vsub.f32 %v2760, %v2777
    %v2790 = vsub.f32 %v2762, %v2780
    %v2791 = vsub.f32 %v2765, %v2783
    %v2792 = vsub.f32 %v2767, %v2786
    %v2793 = vmul.f32 %v2787, 1.442695
    %v2794 = vpow.pop %v2793
    %v2795 = vmul.f32 %v2788, 1.442695
    %v2796 = vpow.pop %v2795
    %v2797 = vmul.f32 %v2789, 1.442695
    %v2798 = vpow.pop %v2797
    %v2799 = vmul.f32 %v2790, 1.442695
    %v2800 = vpow.pop %v2799
    %v2801 = vmul.f32 %v2791, 1.442695
    %v2802 = vpow.pop %v2801
    %v2803 = vmul.f32 %v2792, 1.442695
    %v2804 = vpow.pop %v2803
    %v2805 = vsel %vm99, %v2794, 0.0
    %2806 = vadd.xlane.f32.xlu0 %v2805
    %v2807 = vpop.xlane.xlu0 %2806
    %v2808 = vsel %vm99, %v2796, 0.0
    %2809 = vadd.xlane.f32.xlu0 %v2808
    %v2810 = vpop.xlane.xlu0 %2809
    %v2811 = vsel %vm99, %v2798, 0.0
    %2812 = vadd.xlane.f32.xlu0 %v2811
    %v2813 = vpop.xlane.xlu0 %2812
    %v2814 = vsel %vm99, %v2800, 0.0
    %2815 = vadd.xlane.f32.xlu0 %v2814
    %v2816 = vpop.xlane.xlu0 %2815
    %v2817 = vsel %vm99, %v2802, 0.0
    %2818 = vadd.xlane.f32.xlu0 %v2817
    %v2819 = vpop.xlane.xlu0 %2818
    %v2820 = vsel %vm99, %v2804, 0.0
    %2821 = vadd.xlane.f32.xlu0 %v2820
    %v2822 = vpop.xlane.xlu0 %2821
    %v2823 = vrcp.pop %v2807
    %v2824 = vrcp.pop %v2810
    %v2825 = vrcp.pop %v2813
    %v2826 = vrcp.pop %v2816
    %v2827 = vrcp.pop %v2819
    %v2828 = vrcp.pop %v2822
    %v2829 = vmul.f32 %v2794, %v2823
    %v2830 = vmul.f32 %v2796, %v2824
    %v2831 = vmul.f32 %v2798, %v2825
    %v2832 = vmul.f32 %v2800, %v2826
    %v2833 = vmul.f32 %v2802, %v2827
    %v2834 = vmul.f32 %v2804, %v2828
    %v2835 = vpack.c.bf16 %v2830, %v2829
    %v2836 = vpack.c.bf16 %v2832, %v2831
    %v2837 = vpack.c.bf16 %v2834, %v2833
    %2838 = vrot.lane.b32.xlu0 %v2511, 96
    %v2839 = vpop.permute.xlu0 %2838
    %2840 = vrot.lane.b32.xlu0 %v2512, 96
    %v2841 = vpop.permute.xlu0 %2840
    %2842 = vrot.lane.b32.xlu0 %v2513, 96
    %v2843 = vpop.permute.xlu0 %2842
    %v2848 = vsel %vm99, %v2835, 0
    %v2851 = vsel %vm99, %v2836, 0
    %v2854 = vsel %vm99, %v2837, 0
    %2856 = vmatpush.bf16.msra.mxu0 0
    %2857 = vmatpush.bf16.msra.mxu0 0
    %2858 = vmatpush.bf16.msra.mxu0 0
    %2859 = vmatpush.bf16.msra.mxu0 0
    %2860 = vmatpush.bf16.msra.mxu0 0
    %2861 = vmatpush.bf16.msra.mxu0 %v2843
    %2862 = vmatpush.bf16.msra.mxu0 %v2841
    %2863 = vmatpush.bf16.msra.mxu0 %v2839
    %2864 = vmatmul.bf16.gmra.mxu0 %v2848
    %v2865 = vpop.f32.mrf.mxu0
    %v2866 = vadd.f32 0.0, %v2865
    %v2867 = vpop.f32.mrf.mxu0
    %v2868 = vadd.f32 0.0, %v2867
    %2869 = vmatmul.bf16.gmra.mxu0 %v2851
    %v2870 = vpop.f32.mrf.mxu0
    %v2871 = vadd.f32 0.0, %v2870
    %v2872 = vpop.f32.mrf.mxu0
    %v2873 = vadd.f32 0.0, %v2872
    %2874 = vmatmul.bf16.gmra.mxu0 %v2854
    %v2875 = vpop.f32.mrf.mxu0
    %v2876 = vadd.f32 0.0, %v2875
    %v2877 = vpop.f32.mrf.mxu0
    %v2878 = vadd.f32 0.0, %v2877
    %2879 = vdwg.mxu0
    %2880 = vrot.lane.b32.xlu0 %v2385, 80
    %v2881 = vpop.permute.xlu0 %2880
    %2882 = vrot.lane.b32.xlu0 %v2386, 80
    %v2883 = vpop.permute.xlu0 %2882
    %2884 = vrot.lane.b32.xlu0 %v2387, 80
    %v2885 = vpop.permute.xlu0 %2884
    %2886 = vrot.lane.b32.xlu0 %v2385, 16
    %v2887 = vpop.permute.xlu0 %2886
    %2888 = vrot.lane.b32.xlu0 %v2386, 16
    %v2889 = vpop.permute.xlu0 %2888
    %2890 = vrot.lane.b32.xlu0 %v2387, 16
    %v2891 = vpop.permute.xlu0 %2890
    %v2893 = vsel %vm574, %v2881, 0
    %v2896 = vsel %vm574, %v2883, 0
    %v2899 = vsel %vm574, %v2885, 0
    %v2902 = vsel %vm574, %v2887, 0
    %v2905 = vsel %vm574, %v2889, 0
    %v2908 = vsel %vm574, %v2891, 0
    %2910 = vmatpush.bf16.xpose.msra.mxu0 0
    %2911 = vmatpush.bf16.xpose.msra.mxu0 0
    %2912 = vmatpush.bf16.xpose.msra.mxu0 0
    %2913 = vmatpush.bf16.xpose.msra.mxu0 0
    %2914 = vmatpush.bf16.xpose.msra.mxu0 0
    %2915 = vmatpush.bf16.xpose.msra.mxu0 %v2908
    %2916 = vmatpush.bf16.xpose.msra.mxu0 %v2905
    %2917 = vmatpush.bf16.xpose.msra.mxu0 %v2902
    %2918 = vmatmul.bf16.gmra.mxu0 %v2893
    %v2919 = vpop.f32.mrf.mxu0
    %v2920 = vadd.f32 %v54, %v2919
    %v2921 = vpop.f32.mrf.mxu0
    %v2922 = vadd.f32 %v55, %v2921
    %2923 = vmatmul.bf16.gmra.mxu0 %v2896
    %v2924 = vpop.f32.mrf.mxu0
    %v2925 = vadd.f32 %v56, %v2924
    %v2926 = vpop.f32.mrf.mxu0
    %v2927 = vadd.f32 %v57, %v2926
    %2928 = vmatmul.bf16.gmra.mxu0 %v2899
    %v2929 = vpop.f32.mrf.mxu0
    %v2930 = vadd.f32 %v58, %v2929
    %v2931 = vpop.f32.mrf.mxu0
    %v2932 = vadd.f32 %v59, %v2931
    %2933 = vdwg.mxu0
    %v2934 = vsel %vm99, %v2920, -inf
    %2935 = vmax.xlane.f32.xlu0 %v2934
    %v2936 = vpop.xlane.xlu0 %2935
    %v2937 = vsel %vm99, %v2922, -inf
    %2938 = vmax.xlane.f32.xlu0 %v2937
    %v2939 = vpop.xlane.xlu0 %2938
    %v2940 = vsel %vm99, %v2925, -inf
    %2941 = vmax.xlane.f32.xlu0 %v2940
    %v2942 = vpop.xlane.xlu0 %2941
    %v2943 = vsel %vm99, %v2927, -inf
    %2944 = vmax.xlane.f32.xlu0 %v2943
    %v2945 = vpop.xlane.xlu0 %2944
    %v2946 = vsel %vm99, %v2930, -inf
    %2947 = vmax.xlane.f32.xlu0 %v2946
    %v2948 = vpop.xlane.xlu0 %2947
    %v2949 = vsel %vm99, %v2932, -inf
    %2950 = vmax.xlane.f32.xlu0 %v2949
    %v2951 = vpop.xlane.xlu0 %2950
    %v2952 = vsub.f32 %v2920, %v2936
    %v2953 = vsub.f32 %v2922, %v2939
    %v2954 = vsub.f32 %v2925, %v2942
    %v2955 = vsub.f32 %v2927, %v2945
    %v2956 = vsub.f32 %v2930, %v2948
    %v2957 = vsub.f32 %v2932, %v2951
    %v2958 = vmul.f32 %v2952, 1.442695
    %v2959 = vpow.pop %v2958
    %v2960 = vmul.f32 %v2953, 1.442695
    %v2961 = vpow.pop %v2960
    %v2962 = vmul.f32 %v2954, 1.442695
    %v2963 = vpow.pop %v2962
    %v2964 = vmul.f32 %v2955, 1.442695
    %v2965 = vpow.pop %v2964
    %v2966 = vmul.f32 %v2956, 1.442695
    %v2967 = vpow.pop %v2966
    %v2968 = vmul.f32 %v2957, 1.442695
    %v2969 = vpow.pop %v2968
    %v2970 = vsel %vm99, %v2959, 0.0
    %2971 = vadd.xlane.f32.xlu0 %v2970
    %v2972 = vpop.xlane.xlu0 %2971
    %v2973 = vsel %vm99, %v2961, 0.0
    %2974 = vadd.xlane.f32.xlu0 %v2973
    %v2975 = vpop.xlane.xlu0 %2974
    %v2976 = vsel %vm99, %v2963, 0.0
    %2977 = vadd.xlane.f32.xlu0 %v2976
    %v2978 = vpop.xlane.xlu0 %2977
    %v2979 = vsel %vm99, %v2965, 0.0
    %2980 = vadd.xlane.f32.xlu0 %v2979
    %v2981 = vpop.xlane.xlu0 %2980
    %v2982 = vsel %vm99, %v2967, 0.0
    %2983 = vadd.xlane.f32.xlu0 %v2982
    %v2984 = vpop.xlane.xlu0 %2983
    %v2985 = vsel %vm99, %v2969, 0.0
    %2986 = vadd.xlane.f32.xlu0 %v2985
    %v2987 = vpop.xlane.xlu0 %2986
    %v2988 = vrcp.pop %v2972
    %v2989 = vrcp.pop %v2975
    %v2990 = vrcp.pop %v2978
    %v2991 = vrcp.pop %v2981
    %v2992 = vrcp.pop %v2984
    %v2993 = vrcp.pop %v2987
    %v2994 = vmul.f32 %v2959, %v2988
    %v2995 = vmul.f32 %v2961, %v2989
    %v2996 = vmul.f32 %v2963, %v2990
    %v2997 = vmul.f32 %v2965, %v2991
    %v2998 = vmul.f32 %v2967, %v2992
    %v2999 = vmul.f32 %v2969, %v2993
    %v3000 = vpack.c.bf16 %v2995, %v2994
    %v3001 = vpack.c.bf16 %v2997, %v2996
    %v3002 = vpack.c.bf16 %v2999, %v2998
    %3003 = vrot.lane.b32.xlu0 %v2511, 80
    %v3004 = vpop.permute.xlu0 %3003
    %3005 = vrot.lane.b32.xlu0 %v2512, 80
    %v3006 = vpop.permute.xlu0 %3005
    %3007 = vrot.lane.b32.xlu0 %v2513, 80
    %v3008 = vpop.permute.xlu0 %3007
    %v3013 = vsel %vm99, %v3000, 0
    %v3016 = vsel %vm99, %v3001, 0
    %v3019 = vsel %vm99, %v3002, 0
    %3021 = vmatpush.bf16.msra.mxu0 0
    %3022 = vmatpush.bf16.msra.mxu0 0
    %3023 = vmatpush.bf16.msra.mxu0 0
    %3024 = vmatpush.bf16.msra.mxu0 0
    %3025 = vmatpush.bf16.msra.mxu0 0
    %3026 = vmatpush.bf16.msra.mxu0 %v3008
    %3027 = vmatpush.bf16.msra.mxu0 %v3006
    %3028 = vmatpush.bf16.msra.mxu0 %v3004
    %3029 = vmatmul.bf16.gmra.mxu0 %v3013
    %v3030 = vpop.f32.mrf.mxu0
    %v3031 = vadd.f32 0.0, %v3030
    %v3032 = vpop.f32.mrf.mxu0
    %v3033 = vadd.f32 0.0, %v3032
    %3034 = vmatmul.bf16.gmra.mxu0 %v3016
    %v3035 = vpop.f32.mrf.mxu0
    %v3036 = vadd.f32 0.0, %v3035
    %v3037 = vpop.f32.mrf.mxu0
    %v3038 = vadd.f32 0.0, %v3037
    %3039 = vmatmul.bf16.gmra.mxu0 %v3019
    %v3040 = vpop.f32.mrf.mxu0
    %v3041 = vadd.f32 0.0, %v3040
    %v3042 = vpop.f32.mrf.mxu0
    %v3043 = vadd.f32 0.0, %v3042
    %3044 = vdwg.mxu0
    %3051 = vrot.lane.b32.xlu0 %v2701, 16
    %v3052 = vpop.permute.xlu0 %3051
    %3053 = vrot.lane.b32.xlu0 %v2703, 16
    %v3054 = vpop.permute.xlu0 %3053
    %3055 = vrot.lane.b32.xlu0 %v2706, 16
    %v3056 = vpop.permute.xlu0 %3055
    %3057 = vrot.lane.b32.xlu0 %v2708, 16
    %v3058 = vpop.permute.xlu0 %3057
    %3059 = vrot.lane.b32.xlu0 %v2711, 16
    %v3060 = vpop.permute.xlu0 %3059
    %3061 = vrot.lane.b32.xlu0 %v2713, 16
    %v3062 = vpop.permute.xlu0 %3061
    %3075 = vrot.lane.b32.xlu0 %v2866, 32
    %v3076 = vpop.permute.xlu0 %3075
    %3077 = vrot.lane.b32.xlu0 %v2868, 32
    %v3078 = vpop.permute.xlu0 %3077
    %3079 = vrot.lane.b32.xlu0 %v2871, 32
    %v3080 = vpop.permute.xlu0 %3079
    %3081 = vrot.lane.b32.xlu0 %v2873, 32
    %v3082 = vpop.permute.xlu0 %3081
    %3083 = vrot.lane.b32.xlu0 %v2876, 32
    %v3084 = vpop.permute.xlu0 %3083
    %3085 = vrot.lane.b32.xlu0 %v2878, 32
    %v3086 = vpop.permute.xlu0 %3085
    %3099 = vrot.lane.b32.xlu0 %v3031, 48
    %v3100 = vpop.permute.xlu0 %3099
    %3101 = vrot.lane.b32.xlu0 %v3033, 48
    %v3102 = vpop.permute.xlu0 %3101
    %3103 = vrot.lane.b32.xlu0 %v3036, 48
    %v3104 = vpop.permute.xlu0 %3103
    %3105 = vrot.lane.b32.xlu0 %v3038, 48
    %v3106 = vpop.permute.xlu0 %3105
    %3107 = vrot.lane.b32.xlu0 %v3041, 48
    %v3108 = vpop.permute.xlu0 %3107
    %3109 = vrot.lane.b32.xlu0 %v3043, 48
    %v3110 = vpop.permute.xlu0 %3109
    %v3117 = vsel %vm574, %v2536, %v3052
    %v3118 = vsel %vm574, %v2538, %v3054
    %v3119 = vsel %vm574, %v2541, %v3056
    %v3120 = vsel %vm574, %v2543, %v3058
    %v3121 = vsel %vm574, %v2546, %v3060
    %v3122 = vsel %vm574, %v2548, %v3062
    %v3123 = vsel %vm1304, %v3117, %v3076
    %v3124 = vsel %vm1304, %v3118, %v3078
    %v3125 = vsel %vm1304, %v3119, %v3080
    %v3126 = vsel %vm1304, %v3120, %v3082
    %v3127 = vsel %vm1304, %v3121, %v3084
    %v3128 = vsel %vm1304, %v3122, %v3086
    %v3129 = vsel %vm99, %v3123, %v3100
    %v3130 = vsel %vm99, %v3124, %v3102
    %v3131 = vsel %vm99, %v3125, %v3104
    %v3132 = vsel %vm99, %v3126, %v3106
    %v3133 = vsel %vm99, %v3127, %v3108
    %v3134 = vsel %vm99, %v3128, %v3110
    %v3135 = vpack.c.bf16 %v3130, %v3129
    %v3136 = vpack.c.bf16 %v3132, %v3131
    %v3137 = vpack.c.bf16 %v3134, %v3133
    %s3138 = scalar_lea.vmem %s6, 32
    %v3139 = vld [vmem:[%s3138] sm:$0xf]
    %v3140 = vld [vmem:[%s3138 + $0x4] sm:$0xf]
    %v3141 = vld [vmem:[%s3138 + $0x8] sm:$0xf]
    %v3142 = vld [vmem:[%s3138 + $0xc] sm:$0xf]
    %v3143 = vld [vmem:[%s3138 + $0x10] sm:$0xf]
    %v3144 = vld [vmem:[%s3138 + $0x14] sm:$0xf]
    %v3145 = vld [vmem:[%s3138 + $0x18] sm:$0xf]
    %v3146 = vld [vmem:[%s3138 + $0x1c] sm:$0xf]
    %v3155 = vunpack.c.l.b16 %v3139
    %v3156 = vunpack.c.l.b16 %v3140
    %v3157 = vunpack.c.l.b16 %v3141
    %v3158 = vunpack.c.l.b16 %v3142
    %v3159 = vunpack.c.l.b16 %v3143
    %v3160 = vunpack.c.l.b16 %v3144
    %v3161 = vunpack.c.l.b16 %v3145
    %v3162 = vunpack.c.l.b16 %v3146
    %v3163 = vpack.c.b16 %v3156, %v3155
    %v3164 = vpack.c.b16 %v3158, %v3157
    %v3165 = vpack.c.b16 %v3160, %v3159
    %v3166 = vpack.c.b16 %v3162, %v3161
    %v3172 = vsel %vm133, %v3135, 0
    %v3175 = vsel %vm133, %v3136, 0
    %v3178 = vsel %vm133, %v3137, 0
    %3180 = vmatpush.bf16.msra.mxu0 0
    %3181 = vmatpush.bf16.msra.mxu0 0
    %3182 = vmatpush.bf16.msra.mxu0 0
    %3183 = vmatpush.bf16.msra.mxu0 0
    %3184 = vmatpush.bf16.msra.mxu0 %v3166
    %3185 = vmatpush.bf16.msra.mxu0 %v3165
    %3186 = vmatpush.bf16.msra.mxu0 %v3164
    %3187 = vmatpush.bf16.msra.mxu0 %v3163
    %3188 = vmatmul.bf16.gmra.mxu0 %v3172
    %v3189 = vpop.f32.mrf.mxu0
    %v3190 = vadd.f32 0.0, %v3189
    %v3191 = vpop.f32.mrf.mxu0
    %v3192 = vadd.f32 0.0, %v3191
    %3193 = vmatmul.bf16.gmra.mxu0 %v3175
    %v3194 = vpop.f32.mrf.mxu0
    %v3195 = vadd.f32 0.0, %v3194
    %v3196 = vpop.f32.mrf.mxu0
    %v3197 = vadd.f32 0.0, %v3196
    %3198 = vmatmul.bf16.gmra.mxu0 %v3178
    %v3199 = vpop.f32.mrf.mxu0
    %v3200 = vadd.f32 0.0, %v3199
    %v3201 = vpop.f32.mrf.mxu0
    %v3202 = vadd.f32 0.0, %v3201
    %3203 = vdwg.mxu0
    %v3204 = vadd.f32 %v2099, %v3190
    %v3205 = vadd.f32 %v2100, %v3192
    %v3206 = vadd.f32 %v2101, %v3195
    %v3207 = vadd.f32 %v2102, %v3197
    %v3208 = vadd.f32 %v2103, %v3200
    %v3209 = vadd.f32 %v2104, %v3202
    %v3210 = vperm.slane %v53, 6
    %v3211 = vadd.f32 %v3204, %v3210
    %v3212 = vadd.f32 %v3205, %v3210
    %v3213 = vadd.f32 %v3206, %v3210
    %v3214 = vadd.f32 %v3207, %v3210
    %v3215 = vadd.f32 %v3208, %v3210
    %v3216 = vadd.f32 %v3209, %v3210
    %v3217 = vsel %vm133, %v3211, 0.0
    %3218 = vadd.xlane.f32.xlu0 %v3217
    %v3219 = vpop.xlane.xlu0 %3218
    %v3220 = vsel %vm133, %v3212, 0.0
    %3221 = vadd.xlane.f32.xlu0 %v3220
    %v3222 = vpop.xlane.xlu0 %3221
    %v3223 = vsel %vm133, %v3213, 0.0
    %3224 = vadd.xlane.f32.xlu0 %v3223
    %v3225 = vpop.xlane.xlu0 %3224
    %v3226 = vsel %vm133, %v3214, 0.0
    %3227 = vadd.xlane.f32.xlu0 %v3226
    %v3228 = vpop.xlane.xlu0 %3227
    %v3229 = vsel %vm133, %v3215, 0.0
    %3230 = vadd.xlane.f32.xlu0 %v3229
    %v3231 = vpop.xlane.xlu0 %3230
    %v3232 = vsel %vm133, %v3216, 0.0
    %3233 = vadd.xlane.f32.xlu0 %v3232
    %v3234 = vpop.xlane.xlu0 %3233
    %v3235 = vmul.f32 %v3219, %v158
    %v3236 = vmul.f32 %v3222, %v158
    %v3237 = vmul.f32 %v3225, %v158
    %v3238 = vmul.f32 %v3228, %v158
    %v3239 = vmul.f32 %v3231, %v158
    %v3240 = vmul.f32 %v3234, %v158
    %v3241 = vsub.f32 %v3211, %v3235
    %v3242 = vsub.f32 %v3212, %v3236
    %v3243 = vsub.f32 %v3213, %v3237
    %v3244 = vsub.f32 %v3214, %v3238
    %v3245 = vsub.f32 %v3215, %v3239
    %v3246 = vsub.f32 %v3216, %v3240
    %v3247 = vmul.f32 %v3241, %v3241
    %v3248 = vmul.f32 %v3242, %v3242
    %v3249 = vmul.f32 %v3243, %v3243
    %v3250 = vmul.f32 %v3244, %v3244
    %v3251 = vmul.f32 %v3245, %v3245
    %v3252 = vmul.f32 %v3246, %v3246
    %v3253 = vsel %vm133, %v3247, 0.0
    %3254 = vadd.xlane.f32.xlu0 %v3253
    %v3255 = vpop.xlane.xlu0 %3254
    %v3256 = vsel %vm133, %v3248, 0.0
    %3257 = vadd.xlane.f32.xlu0 %v3256
    %v3258 = vpop.xlane.xlu0 %3257
    %v3259 = vsel %vm133, %v3249, 0.0
    %3260 = vadd.xlane.f32.xlu0 %v3259
    %v3261 = vpop.xlane.xlu0 %3260
    %v3262 = vsel %vm133, %v3250, 0.0
    %3263 = vadd.xlane.f32.xlu0 %v3262
    %v3264 = vpop.xlane.xlu0 %3263
    %v3265 = vsel %vm133, %v3251, 0.0
    %3266 = vadd.xlane.f32.xlu0 %v3265
    %v3267 = vpop.xlane.xlu0 %3266
    %v3268 = vsel %vm133, %v3252, 0.0
    %3269 = vadd.xlane.f32.xlu0 %v3268
    %v3270 = vpop.xlane.xlu0 %3269
    %v3271 = vmul.f32 %v3255, %v158
    %v3272 = vmul.f32 %v3258, %v158
    %v3273 = vmul.f32 %v3261, %v158
    %v3274 = vmul.f32 %v3264, %v158
    %v3275 = vmul.f32 %v3267, %v158
    %v3276 = vmul.f32 %v3270, %v158
    %v3277 = vadd.f32 %v3271, 1e-05
    %v3278 = vadd.f32 %v3272, 1e-05
    %v3279 = vadd.f32 %v3273, 1e-05
    %v3280 = vadd.f32 %v3274, 1e-05
    %v3281 = vadd.f32 %v3275, 1e-05
    %v3282 = vadd.f32 %v3276, 1e-05
    %v3283 = vrsqrt.pop %v3277
    %v3284 = vmul.f32 %v3283, %v3277
    %v3285 = vmul.f32 %v3284, %v3283
    %v3286 = vmul.f32 0.5, %v3285
    %v3287 = vsub.f32 1.5, %v3286
    %v3288 = vmul.f32 %v3283, %v3287
    %vm3289 = vweird.f32 %v3277
    %vm3290 = vweird.f32 %v3283
    %vm3291 = vmor %vm3289, %vm3290
    %v3292 = vsel %vm3291, %v3283, %v3288
    %v3293 = vrsqrt.pop %v3278
    %v3294 = vmul.f32 %v3293, %v3278
    %v3295 = vmul.f32 %v3294, %v3293
    %v3296 = vmul.f32 0.5, %v3295
    %v3297 = vsub.f32 1.5, %v3296
    %v3298 = vmul.f32 %v3293, %v3297
    %vm3299 = vweird.f32 %v3278
    %vm3300 = vweird.f32 %v3293
    %vm3301 = vmor %vm3299, %vm3300
    %v3302 = vsel %vm3301, %v3293, %v3298
    %v3303 = vrsqrt.pop %v3279
    %v3304 = vmul.f32 %v3303, %v3279
    %v3305 = vmul.f32 %v3304, %v3303
    %v3306 = vmul.f32 0.5, %v3305
    %v3307 = vsub.f32 1.5, %v3306
    %v3308 = vmul.f32 %v3303, %v3307
    %vm3309 = vweird.f32 %v3279
    %vm3310 = vweird.f32 %v3303
    %vm3311 = vmor %vm3309, %vm3310
    %v3312 = vsel %vm3311, %v3303, %v3308
    %v3313 = vrsqrt.pop %v3280
    %v3314 = vmul.f32 %v3313, %v3280
    %v3315 = vmul.f32 %v3314, %v3313
    %v3316 = vmul.f32 0.5, %v3315
    %v3317 = vsub.f32 1.5, %v3316
    %v3318 = vmul.f32 %v3313, %v3317
    %vm3319 = vweird.f32 %v3280
    %vm3320 = vweird.f32 %v3313
    %vm3321 = vmor %vm3319, %vm3320
    %v3322 = vsel %vm3321, %v3313, %v3318
    %v3323 = vrsqrt.pop %v3281
    %v3324 = vmul.f32 %v3323, %v3281
    %v3325 = vmul.f32 %v3324, %v3323
    %v3326 = vmul.f32 0.5, %v3325
    %v3327 = vsub.f32 1.5, %v3326
    %v3328 = vmul.f32 %v3323, %v3327
    %vm3329 = vweird.f32 %v3281
    %vm3330 = vweird.f32 %v3323
    %vm3331 = vmor %vm3329, %vm3330
    %v3332 = vsel %vm3331, %v3323, %v3328
    %v3333 = vrsqrt.pop %v3282
    %v3334 = vmul.f32 %v3333, %v3282
    %v3335 = vmul.f32 %v3334, %v3333
    %v3336 = vmul.f32 0.5, %v3335
    %v3337 = vsub.f32 1.5, %v3336
    %v3338 = vmul.f32 %v3333, %v3337
    %vm3339 = vweird.f32 %v3282
    %vm3340 = vweird.f32 %v3333
    %vm3341 = vmor %vm3339, %vm3340
    %v3342 = vsel %vm3341, %v3333, %v3338
    %v3343 = vmul.f32 %v3241, %v3292
    %v3344 = vmul.f32 %v3242, %v3302
    %v3345 = vmul.f32 %v3243, %v3312
    %v3346 = vmul.f32 %v3244, %v3322
    %v3347 = vmul.f32 %v3245, %v3332
    %v3348 = vmul.f32 %v3246, %v3342
    %v3349 = vperm.slane %v53, 4
    %v3350 = vmul.f32 %v3343, %v3349
    %v3351 = vmul.f32 %v3344, %v3349
    %v3352 = vmul.f32 %v3345, %v3349
    %v3353 = vmul.f32 %v3346, %v3349
    %v3354 = vmul.f32 %v3347, %v3349
    %v3355 = vmul.f32 %v3348, %v3349
    %v3356 = vperm.slane %v53, 5
    %v3357 = vadd.f32 %v3350, %v3356
    %v3358 = vadd.f32 %v3351, %v3356
    %v3359 = vadd.f32 %v3352, %v3356
    %v3360 = vadd.f32 %v3353, %v3356
    %v3361 = vadd.f32 %v3354, %v3356
    %v3362 = vadd.f32 %v3355, %v3356
    %s3363 = scalar_lea.vmem %s7, 64
    %v3364 = vld [vmem:[%s3363] sm:$0xff]
    %v3365 = vld [vmem:[%s3363 + $0x8] sm:$0xff]
    %v3366 = vld [vmem:[%s3363 + $0x10] sm:$0xff]
    %v3367 = vld [vmem:[%s3363 + $0x18] sm:$0xff]
    %v3368 = vld [vmem:[%s3363 + $0x20] sm:$0xff]
    %v3369 = vld [vmem:[%s3363 + $0x28] sm:$0xff]
    %v3370 = vld [vmem:[%s3363 + $0x30] sm:$0xff]
    %v3371 = vld [vmem:[%s3363 + $0x38] sm:$0xff]
    %v3372 = vpack.c.bf16 %v3358, %v3357
    %v3373 = vpack.c.bf16 %v3360, %v3359
    %v3374 = vpack.c.bf16 %v3362, %v3361
    %s3375 = scalar_lea.vmem %s8, 1
    %v3376 = vld [vmem:[%s3375] ss:$2 sm:$0x3]
    %v3378 = vperm.slane %v3376, 0
    %v3379 = vperm.slane %v3376, 1
    %v3390 = vunpack.c.l.b16 %v3364
    %v3391 = vunpack.c.h.b16 %v3364
    %v3392 = vunpack.c.l.b16 %v3365
    %v3393 = vunpack.c.h.b16 %v3365
    %v3394 = vunpack.c.l.b16 %v3366
    %v3395 = vunpack.c.h.b16 %v3366
    %v3396 = vunpack.c.l.b16 %v3367
    %v3397 = vunpack.c.h.b16 %v3367
    %v3398 = vunpack.c.l.b16 %v3368
    %v3399 = vunpack.c.h.b16 %v3368
    %v3400 = vunpack.c.l.b16 %v3369
    %v3401 = vunpack.c.h.b16 %v3369
    %v3402 = vunpack.c.l.b16 %v3370
    %v3403 = vunpack.c.h.b16 %v3370
    %v3404 = vunpack.c.l.b16 %v3371
    %v3405 = vunpack.c.h.b16 %v3371
    %v3406 = vpack.c.b16 %v3392, %v3390
    %v3407 = vpack.c.b16 %v3393, %v3391
    %v3408 = vpack.c.b16 %v3396, %v3394
    %v3409 = vpack.c.b16 %v3397, %v3395
    %v3410 = vpack.c.b16 %v3400, %v3398
    %v3411 = vpack.c.b16 %v3401, %v3399
    %v3412 = vpack.c.b16 %v3404, %v3402
    %v3413 = vpack.c.b16 %v3405, %v3403
    %v3423 = vsel %vm133, %v3372, 0
    %v3426 = vsel %vm133, %v3373, 0
    %v3429 = vsel %vm133, %v3374, 0
    %3431 = vmatpush.bf16.msra.mxu0 0
    %3432 = vmatpush.bf16.msra.mxu0 0
    %3433 = vmatpush.bf16.msra.mxu0 0
    %3434 = vmatpush.bf16.msra.mxu0 0
    %3435 = vmatpush.bf16.msra.mxu0 %v3412
    %3436 = vmatpush.bf16.msra.mxu0 %v3410
    %3437 = vmatpush.bf16.msra.mxu0 %v3408
    %3438 = vmatpush.bf16.msra.mxu0 %v3406
    %3439 = vmatmul.bf16.gmra.mxu0 %v3423
    %v3440 = vpop.f32.mrf.mxu0
    %v3441 = vadd.f32 %v3378, %v3440
    %v3442 = vpop.f32.mrf.mxu0
    %v3443 = vadd.f32 %v3378, %v3442
    %3444 = vmatmul.bf16.gmra.mxu0 %v3426
    %v3445 = vpop.f32.mrf.mxu0
    %v3446 = vadd.f32 %v3378, %v3445
    %v3447 = vpop.f32.mrf.mxu0
    %v3448 = vadd.f32 %v3378, %v3447
    %3449 = vmatmul.bf16.gmra.mxu0 %v3429
    %v3450 = vpop.f32.mrf.mxu0
    %v3451 = vadd.f32 %v3378, %v3450
    %v3452 = vpop.f32.mrf.mxu0
    %v3453 = vadd.f32 %v3378, %v3452
    %3454 = vdwg.mxu0
    %3455 = vmatpush.bf16.msra.mxu0 0
    %3456 = vmatpush.bf16.msra.mxu0 0
    %3457 = vmatpush.bf16.msra.mxu0 0
    %3458 = vmatpush.bf16.msra.mxu0 0
    %3459 = vmatpush.bf16.msra.mxu0 %v3413
    %3460 = vmatpush.bf16.msra.mxu0 %v3411
    %3461 = vmatpush.bf16.msra.mxu0 %v3409
    %3462 = vmatpush.bf16.msra.mxu0 %v3407
    %3463 = vmatmul.bf16.gmra.mxu0 %v3423
    %v3464 = vpop.f32.mrf.mxu0
    %v3465 = vadd.f32 %v3379, %v3464
    %v3466 = vpop.f32.mrf.mxu0
    %v3467 = vadd.f32 %v3379, %v3466
    %3468 = vmatmul.bf16.gmra.mxu0 %v3426
    %v3469 = vpop.f32.mrf.mxu0
    %v3470 = vadd.f32 %v3379, %v3469
    %v3471 = vpop.f32.mrf.mxu0
    %v3472 = vadd.f32 %v3379, %v3471
    %3473 = vmatmul.bf16.gmra.mxu0 %v3429
    %v3474 = vpop.f32.mrf.mxu0
    %v3475 = vadd.f32 %v3379, %v3474
    %v3476 = vpop.f32.mrf.mxu0
    %v3477 = vadd.f32 %v3379, %v3476
    %3478 = vdwg.mxu0
    %v3479 = vmul.f32 %v3441, 1.702
    %v3480 = vmul.f32 %v3465, 1.702
    %v3481 = vmul.f32 %v3443, 1.702
    %v3482 = vmul.f32 %v3467, 1.702
    %v3483 = vmul.f32 %v3446, 1.702
    %v3484 = vmul.f32 %v3470, 1.702
    %v3485 = vmul.f32 %v3448, 1.702
    %v3486 = vmul.f32 %v3472, 1.702
    %v3487 = vmul.f32 %v3451, 1.702
    %v3488 = vmul.f32 %v3475, 1.702
    %v3489 = vmul.f32 %v3453, 1.702
    %v3490 = vmul.f32 %v3477, 1.702
    %v3491 = vxor.u32 %v3479, 2147483648
    %v3492 = vxor.u32 %v3480, 2147483648
    %v3493 = vxor.u32 %v3481, 2147483648
    %v3494 = vxor.u32 %v3482, 2147483648
    %v3495 = vxor.u32 %v3483, 2147483648
    %v3496 = vxor.u32 %v3484, 2147483648
    %v3497 = vxor.u32 %v3485, 2147483648
    %v3498 = vxor.u32 %v3486, 2147483648
    %v3499 = vxor.u32 %v3487, 2147483648
    %v3500 = vxor.u32 %v3488, 2147483648
    %v3501 = vxor.u32 %v3489, 2147483648
    %v3502 = vxor.u32 %v3490, 2147483648
    %v3503 = vmul.f32 %v3491, 1.442695
    %v3504 = vpow.pop %v3503
    %v3505 = vmul.f32 %v3492, 1.442695
    %v3506 = vpow.pop %v3505
    %v3507 = vmul.f32 %v3493, 1.442695
    %v3508 = vpow.pop %v3507
    %v3509 = vmul.f32 %v3494, 1.442695
    %v3510 = vpow.pop %v3509
    %v3511 = vmul.f32 %v3495, 1.442695
    %v3512 = vpow.pop %v3511
    %v3513 = vmul.f32 %v3496, 1.442695
    %v3514 = vpow.pop %v3513
    %v3515 = vmul.f32 %v3497, 1.442695
    %v3516 = vpow.pop %v3515
    %v3517 = vmul.f32 %v3498, 1.442695
    %v3518 = vpow.pop %v3517
    %v3519 = vmul.f32 %v3499, 1.442695
    %v3520 = vpow.pop %v3519
    %v3521 = vmul.f32 %v3500, 1.442695
    %v3522 = vpow.pop %v3521
    %v3523 = vmul.f32 %v3501, 1.442695
    %v3524 = vpow.pop %v3523
    %v3525 = vmul.f32 %v3502, 1.442695
    %v3526 = vpow.pop %v3525
    %v3527 = vadd.f32 %v3504, 1.0
    %v3528 = vadd.f32 %v3506, 1.0
    %v3529 = vadd.f32 %v3508, 1.0
    %v3530 = vadd.f32 %v3510, 1.0
    %v3531 = vadd.f32 %v3512, 1.0
    %v3532 = vadd.f32 %v3514, 1.0
    %v3533 = vadd.f32 %v3516, 1.0
    %v3534 = vadd.f32 %v3518, 1.0
    %v3535 = vadd.f32 %v3520, 1.0
    %v3536 = vadd.f32 %v3522, 1.0
    %v3537 = vadd.f32 %v3524, 1.0
    %v3538 = vadd.f32 %v3526, 1.0
    %v3539 = vrcp.pop %v3527
    %v3540 = vmul.f32 %v3527, %v3539
    %v3541 = vsub.f32 1.0, %v3540
    %v3542 = vmul.f32 %v3539, %v3541
    %v3543 = vadd.f32 %v3539, %v3542
    %vm3544 = vweird.f32 %v3527
    %vm3545 = vweird.f32 %v3539
    %vm3546 = vmor %vm3544, %vm3545
    %v3547 = vsel %vm3546, %v3539, %v3543
    %v3548 = vand.u32 2147483647, %v3527
    %vm3549 = vcmp.eq.f32.partialorder %v3548, 8.507059e+37
    %v3550 = vand.u32 %v3527, 2147483648
    %v3551 = vor.u32 1.1754944e-38, %v3550
    %v3552 = vsel %vm3549, %v3551, %v3547
    %v3553 = vmul.f32 1.0, %v3552
    %v3554 = vrcp.pop %v3528
    %v3555 = vmul.f32 %v3528, %v3554
    %v3556 = vsub.f32 1.0, %v3555
    %v3557 = vmul.f32 %v3554, %v3556
    %v3558 = vadd.f32 %v3554, %v3557
    %vm3559 = vweird.f32 %v3528
    %vm3560 = vweird.f32 %v3554
    %vm3561 = vmor %vm3559, %vm3560
    %v3562 = vsel %vm3561, %v3554, %v3558
    %v3563 = vand.u32 2147483647, %v3528
    %vm3564 = vcmp.eq.f32.partialorder %v3563, 8.507059e+37
    %v3565 = vand.u32 %v3528, 2147483648
    %v3566 = vor.u32 1.1754944e-38, %v3565
    %v3567 = vsel %vm3564, %v3566, %v3562
    %v3568 = vmul.f32 1.0, %v3567
    %v3569 = vrcp.pop %v3529
    %v3570 = vmul.f32 %v3529, %v3569
    %v3571 = vsub.f32 1.0, %v3570
    %v3572 = vmul.f32 %v3569, %v3571
    %v3573 = vadd.f32 %v3569, %v3572
    %vm3574 = vweird.f32 %v3529
    %vm3575 = vweird.f32 %v3569
    %vm3576 = vmor %vm3574, %vm3575
    %v3577 = vsel %vm3576, %v3569, %v3573
    %v3578 = vand.u32 2147483647, %v3529
    %vm3579 = vcmp.eq.f32.partialorder %v3578, 8.507059e+37
    %v3580 = vand.u32 %v3529, 2147483648
    %v3581 = vor.u32 1.1754944e-38, %v3580
    %v3582 = vsel %vm3579, %v3581, %v3577
    %v3583 = vmul.f32 1.0, %v3582
    %v3584 = vrcp.pop %v3530
    %v3585 = vmul.f32 %v3530, %v3584
    %v3586 = vsub.f32 1.0, %v3585
    %v3587 = vmul.f32 %v3584, %v3586
    %v3588 = vadd.f32 %v3584, %v3587
    %vm3589 = vweird.f32 %v3530
    %vm3590 = vweird.f32 %v3584
    %vm3591 = vmor %vm3589, %vm3590
    %v3592 = vsel %vm3591, %v3584, %v3588
    %v3593 = vand.u32 2147483647, %v3530
    %vm3594 = vcmp.eq.f32.partialorder %v3593, 8.507059e+37
    %v3595 = vand.u32 %v3530, 2147483648
    %v3596 = vor.u32 1.1754944e-38, %v3595
    %v3597 = vsel %vm3594, %v3596, %v3592
    %v3598 = vmul.f32 1.0, %v3597
    %v3599 = vrcp.pop %v3531
    %v3600 = vmul.f32 %v3531, %v3599
    %v3601 = vsub.f32 1.0, %v3600
    %v3602 = vmul.f32 %v3599, %v3601
    %v3603 = vadd.f32 %v3599, %v3602
    %vm3604 = vweird.f32 %v3531
    %vm3605 = vweird.f32 %v3599
    %vm3606 = vmor %vm3604, %vm3605
    %v3607 = vsel %vm3606, %v3599, %v3603
    %v3608 = vand.u32 2147483647, %v3531
    %vm3609 = vcmp.eq.f32.partialorder %v3608, 8.507059e+37
    %v3610 = vand.u32 %v3531, 2147483648
    %v3611 = vor.u32 1.1754944e-38, %v3610
    %v3612 = vsel %vm3609, %v3611, %v3607
    %v3613 = vmul.f32 1.0, %v3612
    %v3614 = vrcp.pop %v3532
    %v3615 = vmul.f32 %v3532, %v3614
    %v3616 = vsub.f32 1.0, %v3615
    %v3617 = vmul.f32 %v3614, %v3616
    %v3618 = vadd.f32 %v3614, %v3617
    %vm3619 = vweird.f32 %v3532
    %vm3620 = vweird.f32 %v3614
    %vm3621 = vmor %vm3619, %vm3620
    %v3622 = vsel %vm3621, %v3614, %v3618
    %v3623 = vand.u32 2147483647, %v3532
    %vm3624 = vcmp.eq.f32.partialorder %v3623, 8.507059e+37
    %v3625 = vand.u32 %v3532, 2147483648
    %v3626 = vor.u32 1.1754944e-38, %v3625
    %v3627 = vsel %vm3624, %v3626, %v3622
    %v3628 = vmul.f32 1.0, %v3627
    %v3629 = vrcp.pop %v3533
    %v3630 = vmul.f32 %v3533, %v3629
    %v3631 = vsub.f32 1.0, %v3630
    %v3632 = vmul.f32 %v3629, %v3631
    %v3633 = vadd.f32 %v3629, %v3632
    %vm3634 = vweird.f32 %v3533
    %vm3635 = vweird.f32 %v3629
    %vm3636 = vmor %vm3634, %vm3635
    %v3637 = vsel %vm3636, %v3629, %v3633
    %v3638 = vand.u32 2147483647, %v3533
    %vm3639 = vcmp.eq.f32.partialorder %v3638, 8.507059e+37
    %v3640 = vand.u32 %v3533, 2147483648
    %v3641 = vor.u32 1.1754944e-38, %v3640
    %v3642 = vsel %vm3639, %v3641, %v3637
    %v3643 = vmul.f32 1.0, %v3642
    %v3644 = vrcp.pop %v3534
    %v3645 = vmul.f32 %v3534, %v3644
    %v3646 = vsub.f32 1.0, %v3645
    %v3647 = vmul.f32 %v3644, %v3646
    %v3648 = vadd.f32 %v3644, %v3647
    %vm3649 = vweird.f32 %v3534
    %vm3650 = vweird.f32 %v3644
    %vm3651 = vmor %vm3649, %vm3650
    %v3652 = vsel %vm3651, %v3644, %v3648
    %v3653 = vand.u32 2147483647, %v3534
    %vm3654 = vcmp.eq.f32.partialorder %v3653, 8.507059e+37
    %v3655 = vand.u32 %v3534, 2147483648
    %v3656 = vor.u32 1.1754944e-38, %v3655
    %v3657 = vsel %vm3654, %v3656, %v3652
    %v3658 = vmul.f32 1.0, %v3657
    %v3659 = vrcp.pop %v3535
    %v3660 = vmul.f32 %v3535, %v3659
    %v3661 = vsub.f32 1.0, %v3660
    %v3662 = vmul.f32 %v3659, %v3661
    %v3663 = vadd.f32 %v3659, %v3662
    %vm3664 = vweird.f32 %v3535
    %vm3665 = vweird.f32 %v3659
    %vm3666 = vmor %vm3664, %vm3665
    %v3667 = vsel %vm3666, %v3659, %v3663
    %v3668 = vand.u32 2147483647, %v3535
    %vm3669 = vcmp.eq.f32.partialorder %v3668, 8.507059e+37
    %v3670 = vand.u32 %v3535, 2147483648
    %v3671 = vor.u32 1.1754944e-38, %v3670
    %v3672 = vsel %vm3669, %v3671, %v3667
    %v3673 = vmul.f32 1.0, %v3672
    %v3674 = vrcp.pop %v3536
    %v3675 = vmul.f32 %v3536, %v3674
    %v3676 = vsub.f32 1.0, %v3675
    %v3677 = vmul.f32 %v3674, %v3676
    %v3678 = vadd.f32 %v3674, %v3677
    %vm3679 = vweird.f32 %v3536
    %vm3680 = vweird.f32 %v3674
    %vm3681 = vmor %vm3679, %vm3680
    %v3682 = vsel %vm3681, %v3674, %v3678
    %v3683 = vand.u32 2147483647, %v3536
    %vm3684 = vcmp.eq.f32.partialorder %v3683, 8.507059e+37
    %v3685 = vand.u32 %v3536, 2147483648
    %v3686 = vor.u32 1.1754944e-38, %v3685
    %v3687 = vsel %vm3684, %v3686, %v3682
    %v3688 = vmul.f32 1.0, %v3687
    %v3689 = vrcp.pop %v3537
    %v3690 = vmul.f32 %v3537, %v3689
    %v3691 = vsub.f32 1.0, %v3690
    %v3692 = vmul.f32 %v3689, %v3691
    %v3693 = vadd.f32 %v3689, %v3692
    %vm3694 = vweird.f32 %v3537
    %vm3695 = vweird.f32 %v3689
    %vm3696 = vmor %vm3694, %vm3695
    %v3697 = vsel %vm3696, %v3689, %v3693
    %v3698 = vand.u32 2147483647, %v3537
    %vm3699 = vcmp.eq.f32.partialorder %v3698, 8.507059e+37
    %v3700 = vand.u32 %v3537, 2147483648
    %v3701 = vor.u32 1.1754944e-38, %v3700
    %v3702 = vsel %vm3699, %v3701, %v3697
    %v3703 = vmul.f32 1.0, %v3702
    %v3704 = vrcp.pop %v3538
    %v3705 = vmul.f32 %v3538, %v3704
    %v3706 = vsub.f32 1.0, %v3705
    %v3707 = vmul.f32 %v3704, %v3706
    %v3708 = vadd.f32 %v3704, %v3707
    %vm3709 = vweird.f32 %v3538
    %vm3710 = vweird.f32 %v3704
    %vm3711 = vmor %vm3709, %vm3710
    %v3712 = vsel %vm3711, %v3704, %v3708
    %v3713 = vand.u32 2147483647, %v3538
    %vm3714 = vcmp.eq.f32.partialorder %v3713, 8.507059e+37
    %v3715 = vand.u32 %v3538, 2147483648
    %v3716 = vor.u32 1.1754944e-38, %v3715
    %v3717 = vsel %vm3714, %v3716, %v3712
    %v3718 = vmul.f32 1.0, %v3717
    %v3719 = vmul.f32 %v3441, %v3553
    %v3720 = vmul.f32 %v3465, %v3568
    %v3721 = vmul.f32 %v3443, %v3583
    %v3722 = vmul.f32 %v3467, %v3598
    %v3723 = vmul.f32 %v3446, %v3613
    %v3724 = vmul.f32 %v3470, %v3628
    %v3725 = vmul.f32 %v3448, %v3643
    %v3726 = vmul.f32 %v3472, %v3658
    %v3727 = vmul.f32 %v3451, %v3673
    %v3728 = vmul.f32 %v3475, %v3688
    %v3729 = vmul.f32 %v3453, %v3703
    %v3730 = vmul.f32 %v3477, %v3718
    %s3731 = scalar_lea.vmem %s9, 128
    %v3732 = vld [vmem:[%s3731] sm:$0xf]
    %v3733 = vld [vmem:[%s3731 + $0x4] sm:$0xf]
    %v3734 = vld [vmem:[%s3731 + $0x8] sm:$0xf]
    %v3735 = vld [vmem:[%s3731 + $0xc] sm:$0xf]
    %v3736 = vld [vmem:[%s3731 + $0x10] sm:$0xf]
    %v3737 = vld [vmem:[%s3731 + $0x14] sm:$0xf]
    %v3738 = vld [vmem:[%s3731 + $0x18] sm:$0xf]
    %v3739 = vld [vmem:[%s3731 + $0x1c] sm:$0xf]
    %v3740 = vld [vmem:[%s3731 + $0x20] sm:$0xf]
    %v3741 = vld [vmem:[%s3731 + $0x24] sm:$0xf]
    %v3742 = vld [vmem:[%s3731 + $0x28] sm:$0xf]
    %v3743 = vld [vmem:[%s3731 + $0x2c] sm:$0xf]
    %v3744 = vld [vmem:[%s3731 + $0x30] sm:$0xf]
    %v3745 = vld [vmem:[%s3731 + $0x34] sm:$0xf]
    %v3746 = vld [vmem:[%s3731 + $0x38] sm:$0xf]
    %v3747 = vld [vmem:[%s3731 + $0x3c] sm:$0xf]
    %v3748 = vld [vmem:[%s3731 + $0x40] sm:$0xf]
    %v3749 = vld [vmem:[%s3731 + $0x44] sm:$0xf]
    %v3750 = vld [vmem:[%s3731 + $0x48] sm:$0xf]
    %v3751 = vld [vmem:[%s3731 + $0x4c] sm:$0xf]
    %v3752 = vld [vmem:[%s3731 + $0x50] sm:$0xf]
    %v3753 = vld [vmem:[%s3731 + $0x54] sm:$0xf]
    %v3754 = vld [vmem:[%s3731 + $0x58] sm:$0xf]
    %v3755 = vld [vmem:[%s3731 + $0x5c] sm:$0xf]
    %v3756 = vld [vmem:[%s3731 + $0x60] sm:$0xf]
    %v3757 = vld [vmem:[%s3731 + $0x64] sm:$0xf]
    %v3758 = vld [vmem:[%s3731 + $0x68] sm:$0xf]
    %v3759 = vld [vmem:[%s3731 + $0x6c] sm:$0xf]
    %v3760 = vld [vmem:[%s3731 + $0x70] sm:$0xf]
    %v3761 = vld [vmem:[%s3731 + $0x74] sm:$0xf]
    %v3762 = vld [vmem:[%s3731 + $0x78] sm:$0xf]
    %v3763 = vld [vmem:[%s3731 + $0x7c] sm:$0xf]
    %v3764 = vpack.c.bf16 %v3721, %v3719
    %v3765 = vpack.c.bf16 %v3722, %v3720
    %v3766 = vpack.c.bf16 %v3725, %v3723
    %v3767 = vpack.c.bf16 %v3726, %v3724
    %v3768 = vpack.c.bf16 %v3729, %v3727
    %v3769 = vpack.c.bf16 %v3730, %v3728
    %v3802 = vunpack.c.l.b16 %v3732
    %v3803 = vunpack.c.l.b16 %v3733
    %v3804 = vunpack.c.l.b16 %v3734
    %v3805 = vunpack.c.l.b16 %v3735
    %v3806 = vunpack.c.l.b16 %v3736
    %v3807 = vunpack.c.l.b16 %v3737
    %v3808 = vunpack.c.l.b16 %v3738
    %v3809 = vunpack.c.l.b16 %v3739
    %v3810 = vunpack.c.l.b16 %v3740
    %v3811 = vunpack.c.l.b16 %v3741
    %v3812 = vunpack.c.l.b16 %v3742
    %v3813 = vunpack.c.l.b16 %v3743
    %v3814 = vunpack.c.l.b16 %v3744
    %v3815 = vunpack.c.l.b16 %v3745
    %v3816 = vunpack.c.l.b16 %v3746
    %v3817 = vunpack.c.l.b16 %v3747
    %v3818 = vunpack.c.l.b16 %v3748
    %v3819 = vunpack.c.l.b16 %v3749
    %v3820 = vunpack.c.l.b16 %v3750
    %v3821 = vunpack.c.l.b16 %v3751
    %v3822 = vunpack.c.l.b16 %v3752
    %v3823 = vunpack.c.l.b16 %v3753
    %v3824 = vunpack.c.l.b16 %v3754
    %v3825 = vunpack.c.l.b16 %v3755
    %v3826 = vunpack.c.l.b16 %v3756
    %v3827 = vunpack.c.l.b16 %v3757
    %v3828 = vunpack.c.l.b16 %v3758
    %v3829 = vunpack.c.l.b16 %v3759
    %v3830 = vunpack.c.l.b16 %v3760
    %v3831 = vunpack.c.l.b16 %v3761
    %v3832 = vunpack.c.l.b16 %v3762
    %v3833 = vunpack.c.l.b16 %v3763
    %v3834 = vpack.c.b16 %v3803, %v3802
    %v3835 = vpack.c.b16 %v3805, %v3804
    %v3836 = vpack.c.b16 %v3807, %v3806
    %v3837 = vpack.c.b16 %v3809, %v3808
    %v3838 = vpack.c.b16 %v3811, %v3810
    %v3839 = vpack.c.b16 %v3813, %v3812
    %v3840 = vpack.c.b16 %v3815, %v3814
    %v3841 = vpack.c.b16 %v3817, %v3816
    %v3842 = vpack.c.b16 %v3819, %v3818
    %v3843 = vpack.c.b16 %v3821, %v3820
    %v3844 = vpack.c.b16 %v3823, %v3822
    %v3845 = vpack.c.b16 %v3825, %v3824
    %v3846 = vpack.c.b16 %v3827, %v3826
    %v3847 = vpack.c.b16 %v3829, %v3828
    %v3848 = vpack.c.b16 %v3831, %v3830
    %v3849 = vpack.c.b16 %v3833, %v3832
    %3866 = vmatpush.bf16.msra.mxu0 %v3841
    %3867 = vmatpush.bf16.msra.mxu0 %v3840
    %3868 = vmatpush.bf16.msra.mxu0 %v3839
    %3869 = vmatpush.bf16.msra.mxu0 %v3838
    %3870 = vmatpush.bf16.msra.mxu0 %v3837
    %3871 = vmatpush.bf16.msra.mxu0 %v3836
    %3872 = vmatpush.bf16.msra.mxu0 %v3835
    %3873 = vmatpush.bf16.msra.mxu0 %v3834
    %3874 = vmatmul.bf16.gmra.mxu0 %v3764
    %v3875 = vpop.f32.mrf.mxu0
    %v3876 = vadd.f32 0.0, %v3875
    %v3877 = vpop.f32.mrf.mxu0
    %3878 = vmatmul.bf16.gmra.mxu0 %v3766
    %v3879 = vpop.f32.mrf.mxu0
    %v3880 = vpop.f32.mrf.mxu0
    %v3881 = vadd.f32 0.0, %v3880
    %3882 = vmatmul.bf16.gmra.mxu0 %v3768
    %v3883 = vpop.f32.mrf.mxu0
    %v3884 = vpop.f32.mrf.mxu0
    %3885 = vdwg.mxu0
    %3886 = vmatpush.bf16.msra.mxu0 %v3849
    %3887 = vmatpush.bf16.msra.mxu0 %v3848
    %3888 = vmatpush.bf16.msra.mxu0 %v3847
    %3889 = vmatpush.bf16.msra.mxu0 %v3846
    %3890 = vmatpush.bf16.msra.mxu0 %v3845
    %3891 = vmatpush.bf16.msra.mxu0 %v3844
    %3892 = vmatpush.bf16.msra.mxu0 %v3843
    %3893 = vmatpush.bf16.msra.mxu0 %v3842
    %3894 = vmatmul.bf16.gmra.mxu0 %v3765
    %v3895 = vpop.f32.mrf.mxu0
    %v3896 = vadd.f32 %v3876, %v3895
    %v3897 = vpop.f32.mrf.mxu0
    %3898 = vmatmul.bf16.gmra.mxu0 %v3767
    %v3899 = vpop.f32.mrf.mxu0
    %v3900 = vpop.f32.mrf.mxu0
    %v3901 = vadd.f32 %v3881, %v3900
    %3902 = vmatmul.bf16.gmra.mxu0 %v3769
    %v3903 = vpop.f32.mrf.mxu0
    %v3904 = vpop.f32.mrf.mxu0
    %3905 = vdwg.mxu0
    %v3906 = vadd.f32 %v3211, %v3896
    %v3907 = vadd.f32 %v3214, %v3901
    %v3908 = vperm.slane %v53, 7
    %v3909 = vadd.f32 %v3906, %v3908
    %v3910 = vadd.f32 %v3907, %v3908
    %v3912 = vrot.slane %v3910, 7
    %vm3914 = vcmask 1040384
    %v3915 = vsel %vm3914, %v3909, %v3912
    %vm3916 = vcmask 517120
    %v3917 = vsel %vm3916, %v3915, 0.0
    %3918 = vadd.xlane.f32.xlu0 %v3917
    %v3919 = vpop.xlane.xlu0 %3918
    %v3920 = vmul.f32 %v3919, %v158
    %v3921 = vsub.f32 %v3915, %v3920
    %v3922 = vmul.f32 %v3921, %v3921
    %v3923 = vsel %vm3916, %v3922, 0.0
    %3924 = vadd.xlane.f32.xlu0 %v3923
    %v3925 = vpop.xlane.xlu0 %3924
    %v3926 = vmul.f32 %v3925, %v158
    %v3927 = vadd.f32 %v3926, 1e-05
    %v3928 = vrsqrt.pop %v3927
    %v3929 = vmul.f32 %v3928, %v3927
    %v3930 = vmul.f32 %v3929, %v3928
    %v3931 = vmul.f32 0.5, %v3930
    %v3932 = vsub.f32 1.5, %v3931
    %v3933 = vmul.f32 %v3928, %v3932
    %vm3934 = vweird.f32 %v3927
    %vm3935 = vweird.f32 %v3928
    %vm3936 = vmor %vm3934, %vm3935
    %v3937 = vsel %vm3936, %v3928, %v3933
    %v3938 = vmul.f32 %v3921, %v3937
    %v3939 = vperm.slane %v52, 2
    %v3940 = vmul.f32 %v3938, %v3939
    %v3941 = vperm.slane %v52, 3
    %v3942 = vadd.f32 %v3940, %v3941
    %v3943 = vld [vmem:[%s11] sm:$0xf]
    %v3944 = vld [vmem:[%s11 + $0x4] sm:$0xf]
    %v3945 = vld [vmem:[%s11 + $0x8] sm:$0xf]
    %v3946 = vld [vmem:[%s11 + $0xc] sm:$0xf]
    %v3947 = vld [vmem:[%s11 + $0x10] sm:$0xf]
    %v3948 = vld [vmem:[%s11 + $0x14] sm:$0xf]
    %v3949 = vld [vmem:[%s11 + $0x18] sm:$0xf]
    %v3950 = vld [vmem:[%s11 + $0x1c] sm:$0xf]
    %v3951 = vpack.c.bf16 %v3942, %v3942
    %v3960 = vunpack.c.l.b16 %v3943
    %v3961 = vunpack.c.l.b16 %v3944
    %v3962 = vunpack.c.l.b16 %v3945
    %v3963 = vunpack.c.l.b16 %v3946
    %v3964 = vunpack.c.l.b16 %v3947
    %v3965 = vunpack.c.l.b16 %v3948
    %v3966 = vunpack.c.l.b16 %v3949
    %v3967 = vunpack.c.l.b16 %v3950
    %v3968 = vpack.c.b16 %v3961, %v3960
    %v3969 = vpack.c.b16 %v3963, %v3962
    %v3970 = vpack.c.b16 %v3965, %v3964
    %v3971 = vpack.c.b16 %v3967, %v3966
    %v3977 = vsel %vm133, %v3951, 0
    %3979 = vmatpush.bf16.msra.mxu0 0
    %3980 = vmatpush.bf16.msra.mxu0 0
    %3981 = vmatpush.bf16.msra.mxu0 0
    %3982 = vmatpush.bf16.msra.mxu0 0
    %3983 = vmatpush.bf16.msra.mxu0 %v3971
    %3984 = vmatpush.bf16.msra.mxu0 %v3970
    %3985 = vmatpush.bf16.msra.mxu0 %v3969
    %3986 = vmatpush.bf16.msra.mxu0 %v3968
    %3987 = vmatmul.bf16.gmra.mxu0 %v3977
    %v3988 = vpop.f32.mrf.mxu0
    %v3989 = vadd.f32 0.0, %v3988
    %v3990 = vpop.f32.mrf.mxu0
    %3991 = vdwg.mxu0
    %v3992 = vld [vmem:[%s12] sm:$0xf]
    %v3993 = vld [vmem:[%s12 + $0x4] sm:$0xf]
    %v3994 = vld [vmem:[%s12 + $0x8] sm:$0xf]
    %v3995 = vld [vmem:[%s12 + $0xc] sm:$0xf]
    %v3996 = vpack.c.bf16 %v3989, %v3989
    %v3997 = vld [vmem:[%s14] sm:$0x1]
    %v3998 = vperm.slane %v3997, 0
    %v4003 = vunpack.c.l.b16 %v3992
    %v4004 = vunpack.c.l.b16 %v3993
    %v4005 = vunpack.c.l.b16 %v3994
    %v4006 = vunpack.c.l.b16 %v3995
    %v4007 = vpack.c.b16 %v4004, %v4003
    %v4008 = vpack.c.b16 %v4006, %v4005
    %v4012 = vsel %vm1304, %v3996, 0
    %4014 = vmatpush.bf16.msra.mxu0 0
    %4015 = vmatpush.bf16.msra.mxu0 0
    %4016 = vmatpush.bf16.msra.mxu0 0
    %4017 = vmatpush.bf16.msra.mxu0 0
    %4018 = vmatpush.bf16.msra.mxu0 0
    %4019 = vmatpush.bf16.msra.mxu0 0
    %4020 = vmatpush.bf16.msra.mxu0 %v4008
    %4021 = vmatpush.bf16.msra.mxu0 %v4007
    %4022 = vmatmul.bf16.gmra.mxu0 %v4012
    %v4023 = vpop.f32.mrf.mxu0
    %v4024 = vadd.f32 %v3998, %v4023
    %v4025 = vpop.f32.mrf.mxu0
    %4026 = vdwg.mxu0
    %v4027 = vmax.f32 %v4024, 0.0
    %v4028 = vand.u32 2147483647, %v4024
    %v4029 = vsub.f32 0.0, %v4028
    %v4030 = vmul.f32 %v4029, 1.442695
    %v4031 = vpow.pop %v4030
    %v4032 = vadd.f32 %v4031, 1.0
    %v4033 = vlog2.pop %v4032
    %v4034 = vmul.f32 %v4033, 0.6931472
    %v4035 = vmul.f32 -0.5, %v4031
    %v4036 = vadd.f32 %v4035, 1.0
    %v4037 = vmul.f32 %v4036, %v4031
    %v4038 = vand.u32 2147483647, %v4031
    %vm4039 = vcmp.lt.f32.partialorder %v4038, 0.0004427343
    %v4040 = vsel %vm4039, %v4037, %v4034
    %v4041 = vadd.f32 %v4027, %v4040
    %v4042 = vld [vmem:[%s13] sm:$0xf]
    %v4043 = vld [vmem:[%s13 + $0x4] sm:$0xf]
    %v4044 = vld [vmem:[%s13 + $0x8] sm:$0xf]
    %v4045 = vld [vmem:[%s13 + $0xc] sm:$0xf]
    %v4046 = vpack.c.bf16 %v4041, %v4041
    %v4047 = vld [vmem:[%s14 + $0x1] sm:$0x1]
    %v4048 = vperm.slane %v4047, 0
    %v4053 = vunpack.c.l.b16 %v4042
    %v4054 = vunpack.c.l.b16 %v4043
    %v4055 = vunpack.c.l.b16 %v4044
    %v4056 = vunpack.c.l.b16 %v4045
    %v4057 = vpack.c.b16 %v4054, %v4053
    %v4058 = vpack.c.b16 %v4056, %v4055
    %v4062 = vsel %vm1304, %v4046, 0
    %4064 = vmatpush.bf16.msra.mxu0 0
    %4065 = vmatpush.bf16.msra.mxu0 0
    %4066 = vmatpush.bf16.msra.mxu0 0
    %4067 = vmatpush.bf16.msra.mxu0 0
    %4068 = vmatpush.bf16.msra.mxu0 0
    %4069 = vmatpush.bf16.msra.mxu0 0
    %4070 = vmatpush.bf16.msra.mxu0 %v4058
    %4071 = vmatpush.bf16.msra.mxu0 %v4057
    %4072 = vmatmul.bf16.gmra.mxu0 %v4062
    %v4073 = vpop.f32.mrf.mxu0
    %v4074 = vadd.f32 %v4048, %v4073
    %v4075 = vpop.f32.mrf.mxu0
    %4076 = vdwg.mxu0
    %v4077 = vmax.f32 %v4074, 0.0
    %v4078 = vand.u32 2147483647, %v4074
    %v4079 = vsub.f32 0.0, %v4078
    %v4080 = vmul.f32 %v4079, 1.442695
    %v4081 = vpow.pop %v4080
    %v4082 = vadd.f32 %v4081, 1.0
    %v4083 = vlog2.pop %v4082
    %v4084 = vmul.f32 %v4083, 0.6931472
    %v4085 = vmul.f32 -0.5, %v4081
    %v4086 = vadd.f32 %v4085, 1.0
    %v4087 = vmul.f32 %v4086, %v4081
    %v4088 = vand.u32 2147483647, %v4081
    %vm4089 = vcmp.lt.f32.partialorder %v4088, 0.0004427343
    %v4090 = vsel %vm4089, %v4087, %v4084
    %v4091 = vadd.f32 %v4077, %v4090
    %vm4092 = vcmask 254976
    %4093 = vst.msk [vmem:[#allocation2] sm:$0x3] %vm4092, %v4091
    // Predicated region
    $region62: #{clip_img_adapter_forward.1} parent=1 // pred_check
      _
    $region63: #{clip_img_adapter_forward.1} parent=1 // pred_check_branch
      %4095 = sbr.rel (0) target = $region65
    $region64: #{clip_img_adapter_forward.1} parent=1 // pred_region
      %4097 = vsyncadd [#allocation3], 0
      %s4099 = sshll.u32 [#allocation2], 4
      %s4100 = int_to_ptr.vmem [resolvable:$true] %s4099
      %s4101 = sshll.u32 %s15, 4
      %s4102 = int_to_ptr.hbm [resolvable:$true] %s4101
      %4104 = dma.vmem_to_hbm [thread:$0]  %s4100, 32, %s4102, [#allocation3]
    $region65: #{clip_img_adapter_forward.1} parent=1 // pred_fallthru
      _
    // Predicated region
    $region66: #{clip_img_adapter_forward.1} parent=1 // pred_check
      _
    $region67: #{clip_img_adapter_forward.1} parent=1 // pred_check_branch
      %4106 = sbr.rel (0) target = $region69
    $region68: #{clip_img_adapter_forward.1} parent=1 // pred_region
      %4108 = dma.done [#allocation3], 32
    $region69: #{clip_img_adapter_forward.1} parent=1 // pred_fallthru
      _
    %4109 = vsyncpa [#allocation3], 1

</llo_original>
